<compile_context>
chip_gen: v7x
topology: tpu7x:2x2x1
jax: 0.10.0
libtpu: 0.0.40
codegen_flags: <defaults>
</compile_context>

<pallas_src>
import functools

import jax
import jax.numpy as jnp
import numpy as np
from jax.experimental import pallas as pl
from jax.experimental.pallas import tpu as pltpu

_MIB = 1024 * 1024


# ---------------------------------------------------------------------------
# Stage 1: conditional MLPs (one-shot, batched over all rows)
# ---------------------------------------------------------------------------

def _cond_mlp_kernel(mem_ref, w1_ref, b1_ref, w2_ref, b2_ref, gb_ref, g_ref, b_ref):
    """grid=(1,).  gamma_hat/beta_hat = gamma/beta + MLP(memory) for ALL batch rows.

    mem_ref : (B, m_in)     memory rows (f32)
    w1_ref  : (2, m_in, D)  stack(mlp_gamma.W1, mlp_beta.W1)
    b1_ref  : (2, 1, D)     stacked first-layer biases
    w2_ref  : (2, D, D)     stack(mlp_gamma.W2, mlp_beta.W2)
    b2_ref  : (2, 1, D)     stacked second-layer biases
    gb_ref  : (2, 1, D)     [gamma ; beta]
    g_ref   : (B, D)        out: gamma_hat rows
    b_ref   : (B, D)        out: beta_hat rows
    """
    m = mem_ref[...]                                                       # (B, m_in)
    hg = jnp.maximum(
        jnp.dot(m, w1_ref[0], preferred_element_type=jnp.float32) + b1_ref[0], 0.0)
    hb = jnp.maximum(
        jnp.dot(m, w1_ref[1], preferred_element_type=jnp.float32) + b1_ref[1], 0.0)
    g_ref[...] = (jnp.dot(hg, w2_ref[0], preferred_element_type=jnp.float32)
                  + b2_ref[0] + gb_ref[0])
    b_ref[...] = (jnp.dot(hb, w2_ref[1], preferred_element_type=jnp.float32)
                  + b2_ref[1] + gb_ref[1])


# ---------------------------------------------------------------------------
# Stage 2: layer-norm sweep (HBM-bound streaming kernel, no weights resident)
# ---------------------------------------------------------------------------

def _cond_ln_kernel(g_ref, b_ref, x_ref, o_ref, *, eps, inv_nm1):
    """grid=(batch_tiles, seq_tiles), both 'parallel' (no cross-step carry / scratch).

    g_ref, b_ref : (TB, 1, D)   per-batch-row gamma_hat / beta_hat (broadcast over seq)
    x_ref, o_ref : (TB, TL, D)  streamed tiles; I/O dtype follows x, math in f32
    """
    x = x_ref[...].astype(jnp.float32)
    mean = jnp.mean(x, axis=-1, keepdims=True)
    diff = x - mean
    var = jnp.sum(diff * diff, axis=-1, keepdims=True) * inv_nm1          # unbiased (ddof=1)
    inv = 1.0 / (jnp.sqrt(var) + eps)                                      # exact (std+eps) denom
    o_ref[...] = (g_ref[...] * (diff * inv) + b_ref[...]).astype(o_ref.dtype)


def _choose_tiles(B, L, D, itemsize, tile_budget_bytes=2 * _MIB):
    """Pick (TB, TL, padded_L) so each grid step moves a ~MiB-scale, lane-dense tile."""
    if L <= 1024:
        TL, Lp = L, L                       # full-extent seq block is always legal
    else:
        TL = None
        for t in (1024, 512, 256, 128, 64, 32, 16, 8):
            if L % t == 0:
                TL = t
                break
        if TL is None:                      # ragged long L: pad + slice, never one giant block
            TL = 1024
        Lp = ((L + TL - 1) // TL) * TL
    # Block over batch as well when a single row's tile is small (amortizes step overhead).
    TB = 1
    for t in range(min(B, 128), 0, -1):
        if B % t == 0 and t * TL * D * itemsize <= tile_budget_bytes:
            TB = t
            break
    return TB, TL, Lp


# ---------------------------------------------------------------------------
# Module wrapper (parameters built once at init in stacked, kernel-ready layout)
# ---------------------------------------------------------------------------

class ConditionalLayerNormPallas:
    def __init__(self, d_model, rm_num_slots, rm_d_model, key, eps=1e-6):
        # The reference wires mlp_gamma's 2nd layer as Linear(rm_d_model, rm_d_model);
        # it only type-checks when d_model == rm_d_model (as in the original model, 512).
        assert d_model == rm_d_model, "reference wiring requires d_model == rm_d_model"
        self.d_model = d_model
        self.rm_num_slots = rm_num_slots
        self.rm_d_model = rm_d_model
        self.m_in = rm_num_slots * rm_d_model
        self.eps = float(eps)

        def xavier(k, fan_in, fan_out):
            lim = float(np.sqrt(6.0 / (fan_in + fan_out)))
            return jax.random.uniform(k, (fan_in, fan_out), jnp.float32, -lim, lim)

        ks = jax.random.split(key, 4)
        D = d_model
        # Stacked along a leading axis: no lane concatenates or lane slices inside kernels.
        self.w1s = jnp.stack([xavier(ks[0], self.m_in, D),
                              xavier(ks[2], self.m_in, D)], axis=0)          # (2, m_in, D)
        self.w2s = jnp.stack([xavier(ks[1], D, D),
                              xavier(ks[3], D, D)], axis=0)                  # (2, D, D)
        self.b1s = jnp.full((2, 1, D), 0.1, jnp.float32)
        self.b2s = jnp.full((2, 1, D), 0.1, jnp.float32)
        self.gb = jnp.stack([jnp.ones((1, D), jnp.float32),                  # gamma
                             jnp.zeros((1, D), jnp.float32)], axis=0)        # beta -> (2,1,D)

    # -- stage 1 -------------------------------------------------------------
    def _gamma_beta_hat(self, memory2d):
        B = memory2d.shape[0]
        D, m_in = self.d_model, self.m_in
        # TODO(synk): tile this kernel over batch if B ever gets large enough that the
        # (B, m_in) block stops fitting comfortably in VMEM.
        grid_spec = pltpu.PrefetchScalarGridSpec(
            num_scalar_prefetch=0,
            grid=(1,),
            in_specs=[
                pl.BlockSpec((B, m_in), lambda i: (0, 0)),        # memory rows
                pl.BlockSpec((2, m_in, D), lambda i: (0, 0, 0)),  # W1 stack
                pl.BlockSpec((2, 1, D), lambda i: (0, 0, 0)),     # b1 stack
                pl.BlockSpec((2, D, D), lambda i: (0, 0, 0)),     # W2 stack
                pl.BlockSpec((2, 1, D), lambda i: (0, 0, 0)),     # b2 stack
                pl.BlockSpec((2, 1, D), lambda i: (0, 0, 0)),     # gamma/beta
            ],
            out_specs=[
                pl.BlockSpec((B, D), lambda i: (0, 0)),
                pl.BlockSpec((B, D), lambda i: (0, 0)),
            ],
        )
        return pl.pallas_call(
            _cond_mlp_kernel,
            grid_spec=grid_spec,
            out_shape=(jax.ShapeDtypeStruct((B, D), jnp.float32),
                       jax.ShapeDtypeStruct((B, D), jnp.float32)),
            compiler_params=pltpu.CompilerParams(
                dimension_semantics=("arbitrary",),
                vmem_limit_bytes=40 * _MIB,   # ~17 MiB actual; safe on v5e/v6e/v7x
            ),
        )(memory2d, self.w1s, self.b1s, self.w2s, self.b2s, self.gb)

    # -- full forward ----------------------------------------------------------
    def __call__(self, x, memory):
        B, L, D = x.shape
        assert D == self.d_model
        assert memory.shape == (B, 1, self.m_in), memory.shape

        # Stage 1 (hoisted): conditional MLPs for all batch rows in one batched matmul.
        gamma_hat, beta_hat = self._gamma_beta_hat(
            memory.reshape(B, self.m_in).astype(jnp.float32))
        g3 = gamma_hat[:, None, :]        # (B, 1, D): tiny, broadcast over seq in the kernel
        b3 = beta_hat[:, None, :]

        # Stage 2: HBM-bound LN sweep over large, lane-dense tiles; no weights resident.
        itemsize = jnp.dtype(x.dtype).itemsize
        TB, TL, Lp = _choose_tiles(B, L, D, itemsize)
        xp = x if Lp == L else jnp.pad(x, ((0, 0), (0, Lp - L), (0, 0)))
        nB, nL = B // TB, Lp // TL

        grid_spec = pltpu.PrefetchScalarGridSpec(
            num_scalar_prefetch=0,
            grid=(nB, nL),
            in_specs=[
                pl.BlockSpec((TB, 1, D), lambda b, l: (b, 0, 0)),    # gamma_hat rows
                pl.BlockSpec((TB, 1, D), lambda b, l: (b, 0, 0)),    # beta_hat rows
                pl.BlockSpec((TB, TL, D), lambda b, l: (b, l, 0)),   # x tile
            ],
            out_specs=pl.BlockSpec((TB, TL, D), lambda b, l: (b, l, 0)),
        )
        out = pl.pallas_call(
            functools.partial(_cond_ln_kernel, eps=self.eps, inv_nm1=1.0 / (D - 1)),
            grid_spec=grid_spec,
            out_shape=jax.ShapeDtypeStruct((B, Lp, D), x.dtype),     # dtype follows x (bf16 ok)
            compiler_params=pltpu.CompilerParams(
                # No scratch carry any more -> both axes safely 'parallel' (2-TC / megacore).
                dimension_semantics=("parallel", "parallel"),
                vmem_limit_bytes=32 * _MIB,                          # ~8 MiB actual at 2 MiB tiles
            ),
        )(g3, b3, xp)
        return out if Lp == L else out[:, :L, :]

    # Pure-JAX reference (mirrors the PyTorch forward) for correctness checks.
    def reference(self, x, memory):
        mg_w1, mb_w1 = self.w1s[0], self.w1s[1]
        mg_w2, mb_w2 = self.w2s[0], self.w2s[1]
        mg_b1, mb_b1 = self.b1s[0], self.b1s[1]
        mg_b2, mb_b2 = self.b2s[0], self.b2s[1]
        gamma, beta = self.gb[0], self.gb[1]

        hg = jax.nn.relu(memory @ mg_w1 + mg_b1)
        delta_gamma = hg @ mg_w2 + mg_b2                    # (B, 1, D)
        hb = jax.nn.relu(memory @ mb_w1 + mb_b1)
        delta_beta = hb @ mb_w2 + mb_b2                     # (B, 1, D)

        x = x.astype(jnp.float32)
        mean = jnp.mean(x, axis=-1, keepdims=True)
        std = jnp.std(x, axis=-1, ddof=1, keepdims=True)    # torch unbiased std
        return (gamma + delta_gamma) * (x - mean) / (std + self.eps) + (beta + delta_beta)


# ---------------------------------------------------------------------------
# Demo
# ---------------------------------------------------------------------------

if __name__ == "__main__":
    key = jax.random.PRNGKey(0)
    k_param, k_x, k_mem = jax.random.split(key, 3)

    B, L = 2, 8
    d_model, rm_num_slots, rm_d_model = 512, 3, 512

    cln = ConditionalLayerNormPallas(d_model, rm_num_slots, rm_d_model, k_param)

    x = jax.random.normal(k_x, (B, L, d_model), jnp.float32)
    memory = jax.random.normal(k_mem, (B, 1, rm_num_slots * rm_d_model), jnp.float32)

    # f32 path: exact comparison against the pure-JAX reference.
    out = cln(x, memory)
    jax.block_until_ready(out)
    ref = cln.reference(x, memory)
    assert out.shape == (B, L, d_model) and out.dtype == x.dtype
    assert bool(jnp.all(jnp.isfinite(out)))
    assert bool(jnp.allclose(out, ref, atol=2e-2, rtol=2e-2)), float(jnp.max(jnp.abs(out - ref)))

    # bf16 I/O path (halves HBM traffic on the bandwidth-bound sweep; math stays f32 in-kernel).
    x_bf = x.astype(jnp.bfloat16)
    out_bf = cln(x_bf, memory)
    jax.block_until_ready(out_bf)
    assert out_bf.dtype == jnp.bfloat16 and out_bf.shape == (B, L, d_model)
    ref_bf = cln.reference(x_bf.astype(jnp.float32), memory)
    assert bool(jnp.all(jnp.isfinite(out_bf.astype(jnp.float32))))
    assert bool(jnp.allclose(out_bf.astype(jnp.float32), ref_bf, atol=1e-1, rtol=5e-2))

    print("KERNEL_OK")
</pallas_src>

<mosaic_0001>
module attributes {stable_mosaic.version = 11 : i64} {
  func.func @_cond_mlp_kernel(%arg0: i32, %arg1: memref<2x1536xf32, #tpu.memory_space<vmem>>, %arg2: memref<2x1536x512xf32, #tpu.memory_space<vmem>>, %arg3: memref<2x1x512xf32, #tpu.memory_space<vmem>>, %arg4: memref<2x512x512xf32, #tpu.memory_space<vmem>>, %arg5: memref<2x1x512xf32, #tpu.memory_space<vmem>>, %arg6: memref<2x1x512xf32, #tpu.memory_space<vmem>>, %arg7: memref<2x512xf32, #tpu.memory_space<vmem>>, %arg8: memref<2x512xf32, #tpu.memory_space<vmem>>) attributes {dimension_semantics = [#tpu.dimension_semantics<arbitrary>], iteration_bounds = array<i64: 1>, scalar_prefetch = 0 : i64, scratch_operands = 0 : i64, tpu.core_type = #tpu.core_type<tc>, window_params = [{pipeline_mode = #tpu.pipeline_mode<synchronous>, transform_indices = @transform_0, window_bounds = array<i64: 2, 1536>}, {pipeline_mode = #tpu.pipeline_mode<synchronous>, transform_indices = @transform_1, window_bounds = array<i64: 2, 1536, 512>}, {pipeline_mode = #tpu.pipeline_mode<synchronous>, transform_indices = @transform_2, window_bounds = array<i64: 2, 1, 512>}, {pipeline_mode = #tpu.pipeline_mode<synchronous>, transform_indices = @transform_3, window_bounds = array<i64: 2, 512, 512>}, {pipeline_mode = #tpu.pipeline_mode<synchronous>, transform_indices = @transform_4, window_bounds = array<i64: 2, 1, 512>}, {pipeline_mode = #tpu.pipeline_mode<synchronous>, transform_indices = @transform_5, window_bounds = array<i64: 2, 1, 512>}, {pipeline_mode = #tpu.pipeline_mode<synchronous>, transform_indices = @transform_6, window_bounds = array<i64: 2, 512>}, {pipeline_mode = #tpu.pipeline_mode<synchronous>, transform_indices = @transform_7, window_bounds = array<i64: 2, 512>}]} {
    %c0 = arith.constant 0 : index
    %c0_0 = arith.constant 0 : index
    %0 = vector.load %arg1[%c0, %c0_0] : memref<2x1536xf32, #tpu.memory_space<vmem>>, vector<2x1536xf32>
    %c0_1 = arith.constant 0 : index
    %c0_2 = arith.constant 0 : index
    %c0_3 = arith.constant 0 : index
    %1 = vector.load %arg2[%c0_1, %c0_2, %c0_3] : memref<2x1536x512xf32, #tpu.memory_space<vmem>>, vector<1x1536x512xf32>
    %2 = vector.shape_cast %1 : vector<1x1536x512xf32> to vector<1536x512xf32>
    %cst = arith.constant dense<0.000000e+00> : vector<2x512xf32>
    %3 = tpu.matmul %0, %2, %cst {dimension_numbers = #tpu.dot_dimension_numbers<[1], [0], [0], [1], [0, 0, 1, 1], [], []>} : vector<2x1536xf32>, vector<1536x512xf32>, vector<2x512xf32> -> vector<2x512xf32>
    %c0_4 = arith.constant 0 : index
    %c0_5 = arith.constant 0 : index
    %c0_6 = arith.constant 0 : index
    %4 = vector.load %arg3[%c0_4, %c0_5, %c0_6] : memref<2x1x512xf32, #tpu.memory_space<vmem>>, vector<1x1x512xf32>
    %5 = vector.shape_cast %4 : vector<1x1x512xf32> to vector<1x512xf32>
    %6 = vector.broadcast %5 : vector<1x512xf32> to vector<2x512xf32>
    %7 = arith.addf %3, %6 : vector<2x512xf32>
    %cst_7 = arith.constant 0.000000e+00 : f32
    %8 = vector.broadcast %cst_7 : f32 to vector<2x512xf32>
    %9 = arith.maximumf %7, %8 : vector<2x512xf32>
    %c1 = arith.constant 1 : index
    %c0_8 = arith.constant 0 : index
    %c0_9 = arith.constant 0 : index
    %10 = vector.load %arg2[%c1, %c0_8, %c0_9] : memref<2x1536x512xf32, #tpu.memory_space<vmem>>, vector<1x1536x512xf32>
    %11 = vector.shape_cast %10 : vector<1x1536x512xf32> to vector<1536x512xf32>
    %cst_10 = arith.constant dense<0.000000e+00> : vector<2x512xf32>
    %12 = tpu.matmul %0, %11, %cst_10 {dimension_numbers = #tpu.dot_dimension_numbers<[1], [0], [0], [1], [0, 0, 1, 1], [], []>} : vector<2x1536xf32>, vector<1536x512xf32>, vector<2x512xf32> -> vector<2x512xf32>
    %c1_11 = arith.constant 1 : index
    %c0_12 = arith.constant 0 : index
    %c0_13 = arith.constant 0 : index
    %13 = vector.load %arg3[%c1_11, %c0_12, %c0_13] : memref<2x1x512xf32, #tpu.memory_space<vmem>>, vector<1x1x512xf32>
    %14 = vector.shape_cast %13 : vector<1x1x512xf32> to vector<1x512xf32>
    %15 = vector.broadcast %14 : vector<1x512xf32> to vector<2x512xf32>
    %16 = arith.addf %12, %15 : vector<2x512xf32>
    %cst_14 = arith.constant 0.000000e+00 : f32
    %17 = vector.broadcast %cst_14 : f32 to vector<2x512xf32>
    %18 = arith.maximumf %16, %17 : vector<2x512xf32>
    %c0_15 = arith.constant 0 : index
    %c0_16 = arith.constant 0 : index
    %c0_17 = arith.constant 0 : index
    %19 = vector.load %arg4[%c0_15, %c0_16, %c0_17] : memref<2x512x512xf32, #tpu.memory_space<vmem>>, vector<1x512x512xf32>
    %20 = vector.shape_cast %19 : vector<1x512x512xf32> to vector<512x512xf32>
    %cst_18 = arith.constant dense<0.000000e+00> : vector<2x512xf32>
    %21 = tpu.matmul %9, %20, %cst_18 {dimension_numbers = #tpu.dot_dimension_numbers<[1], [0], [0], [1], [0, 0, 1, 1], [], []>} : vector<2x512xf32>, vector<512x512xf32>, vector<2x512xf32> -> vector<2x512xf32>
    %c0_19 = arith.constant 0 : index
    %c0_20 = arith.constant 0 : index
    %c0_21 = arith.constant 0 : index
    %22 = vector.load %arg5[%c0_19, %c0_20, %c0_21] : memref<2x1x512xf32, #tpu.memory_space<vmem>>, vector<1x1x512xf32>
    %23 = vector.shape_cast %22 : vector<1x1x512xf32> to vector<1x512xf32>
    %24 = vector.broadcast %23 : vector<1x512xf32> to vector<2x512xf32>
    %25 = arith.addf %21, %24 : vector<2x512xf32>
    %c0_22 = arith.constant 0 : index
    %c0_23 = arith.constant 0 : index
    %c0_24 = arith.constant 0 : index
    %26 = vector.load %arg6[%c0_22, %c0_23, %c0_24] : memref<2x1x512xf32, #tpu.memory_space<vmem>>, vector<1x1x512xf32>
    %27 = vector.shape_cast %26 : vector<1x1x512xf32> to vector<1x512xf32>
    %28 = vector.broadcast %27 : vector<1x512xf32> to vector<2x512xf32>
    %29 = arith.addf %25, %28 : vector<2x512xf32>
    %c0_25 = arith.constant 0 : index
    %c0_26 = arith.constant 0 : index
    %30 = vector.load %arg7[%c0_25, %c0_26] : memref<2x512xf32, #tpu.memory_space<vmem>>, vector<2x512xf32>
    tpu.vector_store %arg7[%c0_25, %c0_26], %29 {strides = array<i32>} : memref<2x512xf32, #tpu.memory_space<vmem>>, vector<2x512xf32>,
    %c1_27 = arith.constant 1 : index
    %c0_28 = arith.constant 0 : index
    %c0_29 = arith.constant 0 : index
    %31 = vector.load %arg4[%c1_27, %c0_28, %c0_29] : memref<2x512x512xf32, #tpu.memory_space<vmem>>, vector<1x512x512xf32>
    %32 = vector.shape_cast %31 : vector<1x512x512xf32> to vector<512x512xf32>
    %cst_30 = arith.constant dense<0.000000e+00> : vector<2x512xf32>
    %33 = tpu.matmul %18, %32, %cst_30 {dimension_numbers = #tpu.dot_dimension_numbers<[1], [0], [0], [1], [0, 0, 1, 1], [], []>} : vector<2x512xf32>, vector<512x512xf32>, vector<2x512xf32> -> vector<2x512xf32>
    %c1_31 = arith.constant 1 : index
    %c0_32 = arith.constant 0 : index
    %c0_33 = arith.constant 0 : index
    %34 = vector.load %arg5[%c1_31, %c0_32, %c0_33] : memref<2x1x512xf32, #tpu.memory_space<vmem>>, vector<1x1x512xf32>
    %35 = vector.shape_cast %34 : vector<1x1x512xf32> to vector<1x512xf32>
    %36 = vector.broadcast %35 : vector<1x512xf32> to vector<2x512xf32>
    %37 = arith.addf %33, %36 : vector<2x512xf32>
    %c1_34 = arith.constant 1 : index
    %c0_35 = arith.constant 0 : index
    %c0_36 = arith.constant 0 : index
    %38 = vector.load %arg6[%c1_34, %c0_35, %c0_36] : memref<2x1x512xf32, #tpu.memory_space<vmem>>, vector<1x1x512xf32>
    %39 = vector.shape_cast %38 : vector<1x1x512xf32> to vector<1x512xf32>
    %40 = vector.broadcast %39 : vector<1x512xf32> to vector<2x512xf32>
    %41 = arith.addf %37, %40 : vector<2x512xf32>
    %c0_37 = arith.constant 0 : index
    %c0_38 = arith.constant 0 : index
    %42 = vector.load %arg8[%c0_37, %c0_38] : memref<2x512xf32, #tpu.memory_space<vmem>>, vector<2x512xf32>
    tpu.vector_store %arg8[%c0_37, %c0_38], %41 {strides = array<i32>} : memref<2x512xf32, #tpu.memory_space<vmem>>, vector<2x512xf32>,
    return
  }
  func.func @transform_0(%arg0: i32) -> (i32, i32) {
    %c0_i32 = arith.constant 0 : i32
    %c0_i32_0 = arith.constant 0 : i32
    %c0_i32_1 = arith.constant 0 : i32
    return %c0_i32, %c0_i32_0 : i32, i32
  }
  func.func @transform_1(%arg0: i32) -> (i32, i32, i32) {
    %c0_i32 = arith.constant 0 : i32
    %c0_i32_0 = arith.constant 0 : i32
    %c0_i32_1 = arith.constant 0 : i32
    %c0_i32_2 = arith.constant 0 : i32
    return %c0_i32, %c0_i32_0, %c0_i32_1 : i32, i32, i32
  }
  func.func @transform_2(%arg0: i32) -> (i32, i32, i32) {
    %c0_i32 = arith.constant 0 : i32
    %c0_i32_0 = arith.constant 0 : i32
    %c0_i32_1 = arith.constant 0 : i32
    %c0_i32_2 = arith.constant 0 : i32
    return %c0_i32, %c0_i32_0, %c0_i32_1 : i32, i32, i32
  }
  func.func @transform_3(%arg0: i32) -> (i32, i32, i32) {
    %c0_i32 = arith.constant 0 : i32
    %c0_i32_0 = arith.constant 0 : i32
    %c0_i32_1 = arith.constant 0 : i32
    %c0_i32_2 = arith.constant 0 : i32
    return %c0_i32, %c0_i32_0, %c0_i32_1 : i32, i32, i32
  }
  func.func @transform_4(%arg0: i32) -> (i32, i32, i32) {
    %c0_i32 = arith.constant 0 : i32
    %c0_i32_0 = arith.constant 0 : i32
    %c0_i32_1 = arith.constant 0 : i32
    %c0_i32_2 = arith.constant 0 : i32
    return %c0_i32, %c0_i32_0, %c0_i32_1 : i32, i32, i32
  }
  func.func @transform_5(%arg0: i32) -> (i32, i32, i32) {
    %c0_i32 = arith.constant 0 : i32
    %c0_i32_0 = arith.constant 0 : i32
    %c0_i32_1 = arith.constant 0 : i32
    %c0_i32_2 = arith.constant 0 : i32
    return %c0_i32, %c0_i32_0, %c0_i32_1 : i32, i32, i32
  }
  func.func @transform_6(%arg0: i32) -> (i32, i32) {
    %c0_i32 = arith.constant 0 : i32
    %c0_i32_0 = arith.constant 0 : i32
    %c0_i32_1 = arith.constant 0 : i32
    return %c0_i32, %c0_i32_0 : i32, i32
  }
  func.func @transform_7(%arg0: i32) -> (i32, i32) {
    %c0_i32 = arith.constant 0 : i32
    %c0_i32_0 = arith.constant 0 : i32
    %c0_i32_1 = arith.constant 0 : i32
    return %c0_i32, %c0_i32_0 : i32, i32
  }
}

</mosaic_0001>

<llo_original>
// kernel: tpu_custom_call.1
$region0: #{tpu_custom_call.1}
  #allocation0 [shape = 'u32[]', space=smem, size = 0x4, offset = 0x4, fixed_abs, tag = 'smem constant byte address 0x4 - core index']
  #allocation1 [shape = 'u32[144,128]{1,0:T(1,128)}', space=vmem, size = 0x12000, scoped, tag = 'internal scratch']
  %s0 = inlined_call_operand.hbm [shape: f32[2,1536], index: 0, kind: input, shape index: {}]
  %s1 = inlined_call_operand.hbm [shape: f32[2,1536,512], index: 1, kind: input, shape index: {}]
  %s2 = inlined_call_operand.hbm [shape: f32[2,1,512], index: 2, kind: input, shape index: {}]
  %s3 = inlined_call_operand.hbm [shape: f32[2,512,512], index: 3, kind: input, shape index: {}]
  %s4 = inlined_call_operand.hbm [shape: f32[2,1,512], index: 4, kind: input, shape index: {}]
  %s5 = inlined_call_operand.hbm [shape: f32[2,1,512], index: 5, kind: input, shape index: {}]
  %s6 = inlined_call_operand.hbm [shape: f32[2,512], index: 6, kind: output, shape index: {0}]
  %s7 = inlined_call_operand.hbm [shape: f32[2,512], index: 7, kind: output, shape index: {1}]
  %8 = xla_tuple %s6, %s7
  %s9 = sld [smem:[#allocation0]]
  $region66: #{tpu_custom_call.1} parent=0
    _
  %s11 = ssub.s32 1, %s9
  %s12 = scalar_select 0, %s11, %s9
  $region1: #{tpu_custom_call.1} parent=0
    #allocation2 [shape = 'u8[12288]{0}', space=vmem, size = 0x3000, scoped, tag = 'input window, operand 0, single buffered']
    #allocation3 [shape = 's32[1]{0}', space=sflag, size = 0x4, scoped, tag = 'scoped memory for tpu_custom_call.1']
    #allocation4 [shape = 's32[1]{0}', space=sflag, size = 0x4, scoped, tag = 'scoped memory for tpu_custom_call.1']
    #allocation5 [shape = 'u8[6291456]{0}', space=vmem, size = 0x600000, scoped, tag = 'input window, operand 1, single buffered']
    #allocation6 [shape = 's32[1]{0}', space=sflag, size = 0x4, scoped, tag = 'scoped memory for tpu_custom_call.1']
    #allocation7 [shape = 'u8[4096]{0}', space=vmem, size = 0x1000, scoped, tag = 'input window, operand 2, single buffered']
    #allocation8 [shape = 'u8[2097152]{0}', space=vmem, size = 0x200000, scoped, tag = 'input window, operand 3, single buffered']
    #allocation9 [shape = 's32[1]{0}', space=sflag, size = 0x4, scoped, tag = 'scoped memory for tpu_custom_call.1']
    #allocation10 [shape = 'u8[4096]{0}', space=vmem, size = 0x1000, scoped, tag = 'input window, operand 4, single buffered']
    #allocation11 [shape = 'u8[4096]{0}', space=vmem, size = 0x1000, scoped, tag = 'input window, operand 5, single buffered']
    #allocation12 [shape = 's32[1]{0}', space=sflag, size = 0x4, scoped, tag = 'scoped memory for tpu_custom_call.1']
    #allocation13 [shape = 'u8[4096]{0}', space=vmem, size = 0x1000, scoped, tag = 'output window, operand 0, single buffered']
    #allocation14 [shape = 'u8[4096]{0}', space=vmem, size = 0x1000, scoped, tag = 'output window, operand 1, single buffered']
    #allocation15 [shape = 's32[1]{0}', space=sflag, size = 0x4, scoped, tag = 'scoped memory for tpu_custom_call.1']
    %13 = vsyncpa [#allocation3], 0
    %14 = vsyncpa [#allocation6], 0
    %15 = vsyncpa [#allocation9], 0
    %16 = vsyncpa [#allocation12], 0
    %17 = vsyncpa [#allocation4], 0
    %18 = vsyncpa [#allocation15], 0
    // Predicated region
    $region2: #{tpu_custom_call.1} parent=1 // pred_check
      _
    $region3: #{tpu_custom_call.1} parent=1 // pred_check_branch
      %20 = sbr.rel (0) target = $region5
    $region4: #{tpu_custom_call.1} parent=1 // pred_region
      %s22 = ssub.s32 384, 384
      %23 = vsyncadd [#allocation3], %s22
      %s25 = sshll.u32 [#allocation2], 4
      %s26 = int_to_ptr.vmem [resolvable:$true] %s25
      %28 = dma.hbm_to_vmem [thread:$0]  %s0, 384, %s26, [#allocation3]
    $region5: #{tpu_custom_call.1} parent=1 // pred_fallthru
      _
    // Predicated region
    $region6: #{tpu_custom_call.1} parent=1 // pred_check
      _
    $region7: #{tpu_custom_call.1} parent=1 // pred_check_branch
      %30 = sbr.rel (0) target = $region9
    $region8: #{tpu_custom_call.1} parent=1 // pred_region
      %s32 = ssub.s32 196608, 196608
      %33 = vsyncadd [#allocation6], %s32
      %s34 = sshll.u32 [#allocation5], 4
      %s35 = int_to_ptr.vmem [resolvable:$true] %s34
      %40 = dma.hbm_to_vmem [thread:$0]  %s1, 196608, %s35, [#allocation6], 512, 512, 32
    $region9: #{tpu_custom_call.1} parent=1 // pred_fallthru
      _
    // Predicated region
    $region10: #{tpu_custom_call.1} parent=1 // pred_check
      _
    $region11: #{tpu_custom_call.1} parent=1 // pred_check_branch
      %42 = sbr.rel (0) target = $region13
    $region12: #{tpu_custom_call.1} parent=1 // pred_region
      %s44 = ssub.s32 128, 128
      %45 = vsyncadd [#allocation6], %s44
      %s46 = sshll.u32 [#allocation7], 4
      %s47 = int_to_ptr.vmem [resolvable:$true] %s46
      %52 = dma.hbm_to_vmem [thread:$0]  %s2, 128, %s47, [#allocation6], 64, 64, 4
    $region13: #{tpu_custom_call.1} parent=1 // pred_fallthru
      _
    // Predicated region
    $region14: #{tpu_custom_call.1} parent=1 // pred_check
      _
    $region15: #{tpu_custom_call.1} parent=1 // pred_check_branch
      %54 = sbr.rel (0) target = $region17
    $region16: #{tpu_custom_call.1} parent=1 // pred_region
      %s56 = ssub.s32 65536, 65536
      %57 = vsyncadd [#allocation9], %s56
      %s58 = sshll.u32 [#allocation8], 4
      %s59 = int_to_ptr.vmem [resolvable:$true] %s58
      %64 = dma.hbm_to_vmem [thread:$0]  %s3, 65536, %s59, [#allocation9], 512, 512, 32
    $region17: #{tpu_custom_call.1} parent=1 // pred_fallthru
      _
    // Predicated region
    $region18: #{tpu_custom_call.1} parent=1 // pred_check
      _
    $region19: #{tpu_custom_call.1} parent=1 // pred_check_branch
      %66 = sbr.rel (0) target = $region21
    $region20: #{tpu_custom_call.1} parent=1 // pred_region
      %s68 = ssub.s32 128, 128
      %69 = vsyncadd [#allocation9], %s68
      %s70 = sshll.u32 [#allocation10], 4
      %s71 = int_to_ptr.vmem [resolvable:$true] %s70
      %76 = dma.hbm_to_vmem [thread:$0]  %s4, 128, %s71, [#allocation9], 64, 64, 4
    $region21: #{tpu_custom_call.1} parent=1 // pred_fallthru
      _
    // Predicated region
    $region22: #{tpu_custom_call.1} parent=1 // pred_check
      _
    $region23: #{tpu_custom_call.1} parent=1 // pred_check_branch
      %78 = sbr.rel (0) target = $region25
    $region24: #{tpu_custom_call.1} parent=1 // pred_region
      %s80 = ssub.s32 128, 128
      %81 = vsyncadd [#allocation12], %s80
      %s82 = sshll.u32 [#allocation11], 4
      %s83 = int_to_ptr.vmem [resolvable:$true] %s82
      %88 = dma.hbm_to_vmem [thread:$0]  %s5, 128, %s83, [#allocation12], 64, 64, 4
    $region25: #{tpu_custom_call.1} parent=1 // pred_fallthru
      _
    // Predicated region
    $region26: #{tpu_custom_call.1} parent=1 // pred_check
      _
    $region27: #{tpu_custom_call.1} parent=1 // pred_check_branch
      %90 = sbr.rel (0) target = $region29
    $region28: #{tpu_custom_call.1} parent=1 // pred_region
      %91 = dma.done [#allocation3], 384
    $region29: #{tpu_custom_call.1} parent=1 // pred_fallthru
      _
    // Predicated region
    $region30: #{tpu_custom_call.1} parent=1 // pred_check
      _
    $region31: #{tpu_custom_call.1} parent=1 // pred_check_branch
      %93 = sbr.rel (0) target = $region33
    $region32: #{tpu_custom_call.1} parent=1 // pred_region
      %94 = dma.done [#allocation6], 196608
    $region33: #{tpu_custom_call.1} parent=1 // pred_fallthru
      _
    // Predicated region
    $region34: #{tpu_custom_call.1} parent=1 // pred_check
      _
    $region35: #{tpu_custom_call.1} parent=1 // pred_check_branch
      %96 = sbr.rel (0) target = $region37
    $region36: #{tpu_custom_call.1} parent=1 // pred_region
      %97 = dma.done [#allocation6], 128
    $region37: #{tpu_custom_call.1} parent=1 // pred_fallthru
      _
    // Predicated region
    $region38: #{tpu_custom_call.1} parent=1 // pred_check
      _
    $region39: #{tpu_custom_call.1} parent=1 // pred_check_branch
      %99 = sbr.rel (0) target = $region41
    $region40: #{tpu_custom_call.1} parent=1 // pred_region
      %100 = dma.done [#allocation9], 65536
    $region41: #{tpu_custom_call.1} parent=1 // pred_fallthru
      _
    // Predicated region
    $region42: #{tpu_custom_call.1} parent=1 // pred_check
      _
    $region43: #{tpu_custom_call.1} parent=1 // pred_check_branch
      %102 = sbr.rel (0) target = $region45
    $region44: #{tpu_custom_call.1} parent=1 // pred_region
      %103 = dma.done [#allocation9], 128
    $region45: #{tpu_custom_call.1} parent=1 // pred_fallthru
      _
    // Predicated region
    $region46: #{tpu_custom_call.1} parent=1 // pred_check
      _
    $region47: #{tpu_custom_call.1} parent=1 // pred_check_branch
      %105 = sbr.rel (0) target = $region49
    $region48: #{tpu_custom_call.1} parent=1 // pred_region
      %106 = dma.done [#allocation12], 128
    $region49: #{tpu_custom_call.1} parent=1 // pred_fallthru
      _
    %v107 = vld [vmem:[#allocation2] sm:$0xff]
    %v108 = vld [vmem:[#allocation2 + $0x8] sm:$0xff]
    %v109 = vld [vmem:[#allocation2 + $0x10] sm:$0xff]
    %v110 = vld [vmem:[#allocation5] sm:$0xff]
    %v111 = vld [vmem:[#allocation5 + $0x8] sm:$0xff]
    %v112 = vld [vmem:[#allocation5 + $0x10] sm:$0xff]
    %v113 = vld [vmem:[#allocation5 + $0x18] sm:$0xff]
    %v114 = vld [vmem:[#allocation5 + $0x20] sm:$0xff]
    %v115 = vld [vmem:[#allocation5 + $0x28] sm:$0xff]
    %v116 = vld [vmem:[#allocation5 + $0x30] sm:$0xff]
    %v117 = vld [vmem:[#allocation5 + $0x38] sm:$0xff]
    %v118 = vld [vmem:[#allocation5 + $0x40] sm:$0xff]
    %v119 = vld [vmem:[#allocation5 + $0x48] sm:$0xff]
    %v120 = vld [vmem:[#allocation5 + $0x50] sm:$0xff]
    %v121 = vld [vmem:[#allocation5 + $0x58] sm:$0xff]
    %v122 = vld [vmem:[#allocation5 + $0x60] sm:$0xff]
    %v123 = vld [vmem:[#allocation5 + $0x68] sm:$0xff]
    %v124 = vld [vmem:[#allocation5 + $0x70] sm:$0xff]
    %v125 = vld [vmem:[#allocation5 + $0x78] sm:$0xff]
    %v126 = vld [vmem:[#allocation5 + $0x80] sm:$0xff]
    %v127 = vld [vmem:[#allocation5 + $0x88] sm:$0xff]
    %v128 = vld [vmem:[#allocation5 + $0x90] sm:$0xff]
    %v129 = vld [vmem:[#allocation5 + $0x98] sm:$0xff]
    %v130 = vld [vmem:[#allocation5 + $0xa0] sm:$0xff]
    %v131 = vld [vmem:[#allocation5 + $0xa8] sm:$0xff]
    %v132 = vld [vmem:[#allocation5 + $0xb0] sm:$0xff]
    %v133 = vld [vmem:[#allocation5 + $0xb8] sm:$0xff]
    %v134 = vld [vmem:[#allocation5 + $0xc0] sm:$0xff]
    %v135 = vld [vmem:[#allocation5 + $0xc8] sm:$0xff]
    %v136 = vld [vmem:[#allocation5 + $0xd0] sm:$0xff]
    %v137 = vld [vmem:[#allocation5 + $0xd8] sm:$0xff]
    %v138 = vld [vmem:[#allocation5 + $0xe0] sm:$0xff]
    %v139 = vld [vmem:[#allocation5 + $0xe8] sm:$0xff]
    %v140 = vld [vmem:[#allocation5 + $0xf0] sm:$0xff]
    %v141 = vld [vmem:[#allocation5 + $0xf8] sm:$0xff]
    %v142 = vld [vmem:[#allocation5 + $0x100] sm:$0xff]
    %v143 = vld [vmem:[#allocation5 + $0x108] sm:$0xff]
    %v144 = vld [vmem:[#allocation5 + $0x110] sm:$0xff]
    %v145 = vld [vmem:[#allocation5 + $0x118] sm:$0xff]
    %v146 = vld [vmem:[#allocation5 + $0x120] sm:$0xff]
    %v147 = vld [vmem:[#allocation5 + $0x128] sm:$0xff]
    %v148 = vld [vmem:[#allocation5 + $0x130] sm:$0xff]
    %v149 = vld [vmem:[#allocation5 + $0x138] sm:$0xff]
    %v150 = vld [vmem:[#allocation5 + $0x140] sm:$0xff]
    %v151 = vld [vmem:[#allocation5 + $0x148] sm:$0xff]
    %v152 = vld [vmem:[#allocation5 + $0x150] sm:$0xff]
    %v153 = vld [vmem:[#allocation5 + $0x158] sm:$0xff]
    %v154 = vld [vmem:[#allocation5 + $0x160] sm:$0xff]
    %v155 = vld [vmem:[#allocation5 + $0x168] sm:$0xff]
    %v156 = vld [vmem:[#allocation5 + $0x170] sm:$0xff]
    %v157 = vld [vmem:[#allocation5 + $0x178] sm:$0xff]
    %v158 = vld [vmem:[#allocation5 + $0x180] sm:$0xff]
    %v159 = vld [vmem:[#allocation5 + $0x188] sm:$0xff]
    %v160 = vld [vmem:[#allocation5 + $0x190] sm:$0xff]
    %v161 = vld [vmem:[#allocation5 + $0x198] sm:$0xff]
    %v162 = vld [vmem:[#allocation5 + $0x1a0] sm:$0xff]
    %v163 = vld [vmem:[#allocation5 + $0x1a8] sm:$0xff]
    %v164 = vld [vmem:[#allocation5 + $0x1b0] sm:$0xff]
    %v165 = vld [vmem:[#allocation5 + $0x1b8] sm:$0xff]
    %v166 = vld [vmem:[#allocation5 + $0x1c0] sm:$0xff]
    %v167 = vld [vmem:[#allocation5 + $0x1c8] sm:$0xff]
    %v168 = vld [vmem:[#allocation5 + $0x1d0] sm:$0xff]
    %v169 = vld [vmem:[#allocation5 + $0x1d8] sm:$0xff]
    %v170 = vld [vmem:[#allocation5 + $0x1e0] sm:$0xff]
    %v171 = vld [vmem:[#allocation5 + $0x1e8] sm:$0xff]
    %v172 = vld [vmem:[#allocation5 + $0x1f0] sm:$0xff]
    %v173 = vld [vmem:[#allocation5 + $0x1f8] sm:$0xff]
    %v174 = vld [vmem:[#allocation5 + $0x200] sm:$0xff]
    %v175 = vld [vmem:[#allocation5 + $0x208] sm:$0xff]
    %v176 = vld [vmem:[#allocation5 + $0x210] sm:$0xff]
    %v177 = vld [vmem:[#allocation5 + $0x218] sm:$0xff]
    %v178 = vld [vmem:[#allocation5 + $0x220] sm:$0xff]
    %v179 = vld [vmem:[#allocation5 + $0x228] sm:$0xff]
    %v180 = vld [vmem:[#allocation5 + $0x230] sm:$0xff]
    %v181 = vld [vmem:[#allocation5 + $0x238] sm:$0xff]
    %v182 = vld [vmem:[#allocation5 + $0x240] sm:$0xff]
    %v183 = vld [vmem:[#allocation5 + $0x248] sm:$0xff]
    %v184 = vld [vmem:[#allocation5 + $0x250] sm:$0xff]
    %v185 = vld [vmem:[#allocation5 + $0x258] sm:$0xff]
    %v186 = vld [vmem:[#allocation5 + $0x260] sm:$0xff]
    %v187 = vld [vmem:[#allocation5 + $0x268] sm:$0xff]
    %v188 = vld [vmem:[#allocation5 + $0x270] sm:$0xff]
    %v189 = vld [vmem:[#allocation5 + $0x278] sm:$0xff]
    %v190 = vld [vmem:[#allocation5 + $0x280] sm:$0xff]
    %v191 = vld [vmem:[#allocation5 + $0x288] sm:$0xff]
    %v192 = vld [vmem:[#allocation5 + $0x290] sm:$0xff]
    %v193 = vld [vmem:[#allocation5 + $0x298] sm:$0xff]
    %v194 = vld [vmem:[#allocation5 + $0x2a0] sm:$0xff]
    %v195 = vld [vmem:[#allocation5 + $0x2a8] sm:$0xff]
    %v196 = vld [vmem:[#allocation5 + $0x2b0] sm:$0xff]
    %v197 = vld [vmem:[#allocation5 + $0x2b8] sm:$0xff]
    %v198 = vld [vmem:[#allocation5 + $0x2c0] sm:$0xff]
    %v199 = vld [vmem:[#allocation5 + $0x2c8] sm:$0xff]
    %v200 = vld [vmem:[#allocation5 + $0x2d0] sm:$0xff]
    %v201 = vld [vmem:[#allocation5 + $0x2d8] sm:$0xff]
    %v202 = vld [vmem:[#allocation5 + $0x2e0] sm:$0xff]
    %v203 = vld [vmem:[#allocation5 + $0x2e8] sm:$0xff]
    %v204 = vld [vmem:[#allocation5 + $0x2f0] sm:$0xff]
    %v205 = vld [vmem:[#allocation5 + $0x2f8] sm:$0xff]
    %v206 = vld [vmem:[#allocation5 + $0x300] sm:$0xff]
    %v207 = vld [vmem:[#allocation5 + $0x308] sm:$0xff]
    %v208 = vld [vmem:[#allocation5 + $0x310] sm:$0xff]
    %v209 = vld [vmem:[#allocation5 + $0x318] sm:$0xff]
    %v210 = vld [vmem:[#allocation5 + $0x320] sm:$0xff]
    %v211 = vld [vmem:[#allocation5 + $0x328] sm:$0xff]
    %v212 = vld [vmem:[#allocation5 + $0x330] sm:$0xff]
    %v213 = vld [vmem:[#allocation5 + $0x338] sm:$0xff]
    %v214 = vld [vmem:[#allocation5 + $0x340] sm:$0xff]
    %v215 = vld [vmem:[#allocation5 + $0x348] sm:$0xff]
    %v216 = vld [vmem:[#allocation5 + $0x350] sm:$0xff]
    %v217 = vld [vmem:[#allocation5 + $0x358] sm:$0xff]
    %v218 = vld [vmem:[#allocation5 + $0x360] sm:$0xff]
    %v219 = vld [vmem:[#allocation5 + $0x368] sm:$0xff]
    %v220 = vld [vmem:[#allocation5 + $0x370] sm:$0xff]
    %v221 = vld [vmem:[#allocation5 + $0x378] sm:$0xff]
    %v222 = vld [vmem:[#allocation5 + $0x380] sm:$0xff]
    %v223 = vld [vmem:[#allocation5 + $0x388] sm:$0xff]
    %v224 = vld [vmem:[#allocation5 + $0x390] sm:$0xff]
    %v225 = vld [vmem:[#allocation5 + $0x398] sm:$0xff]
    %v226 = vld [vmem:[#allocation5 + $0x3a0] sm:$0xff]
    %v227 = vld [vmem:[#allocation5 + $0x3a8] sm:$0xff]
    %v228 = vld [vmem:[#allocation5 + $0x3b0] sm:$0xff]
    %v229 = vld [vmem:[#allocation5 + $0x3b8] sm:$0xff]
    %v230 = vld [vmem:[#allocation5 + $0x3c0] sm:$0xff]
    %v231 = vld [vmem:[#allocation5 + $0x3c8] sm:$0xff]
    %v232 = vld [vmem:[#allocation5 + $0x3d0] sm:$0xff]
    %v233 = vld [vmem:[#allocation5 + $0x3d8] sm:$0xff]
    %v234 = vld [vmem:[#allocation5 + $0x3e0] sm:$0xff]
    %v235 = vld [vmem:[#allocation5 + $0x3e8] sm:$0xff]
    %v236 = vld [vmem:[#allocation5 + $0x3f0] sm:$0xff]
    %v237 = vld [vmem:[#allocation5 + $0x3f8] sm:$0xff]
    %v238 = vld [vmem:[#allocation5 + $0x400] sm:$0xff]
    %v239 = vld [vmem:[#allocation5 + $0x408] sm:$0xff]
    %v240 = vld [vmem:[#allocation5 + $0x410] sm:$0xff]
    %v241 = vld [vmem:[#allocation5 + $0x418] sm:$0xff]
    %v242 = vld [vmem:[#allocation5 + $0x420] sm:$0xff]
    %v243 = vld [vmem:[#allocation5 + $0x428] sm:$0xff]
    %v244 = vld [vmem:[#allocation5 + $0x430] sm:$0xff]
    %v245 = vld [vmem:[#allocation5 + $0x438] sm:$0xff]
    %v246 = vld [vmem:[#allocation5 + $0x440] sm:$0xff]
    %v247 = vld [vmem:[#allocation5 + $0x448] sm:$0xff]
    %v248 = vld [vmem:[#allocation5 + $0x450] sm:$0xff]
    %v249 = vld [vmem:[#allocation5 + $0x458] sm:$0xff]
    %v250 = vld [vmem:[#allocation5 + $0x460] sm:$0xff]
    %v251 = vld [vmem:[#allocation5 + $0x468] sm:$0xff]
    %v252 = vld [vmem:[#allocation5 + $0x470] sm:$0xff]
    %v253 = vld [vmem:[#allocation5 + $0x478] sm:$0xff]
    %v254 = vld [vmem:[#allocation5 + $0x480] sm:$0xff]
    %v255 = vld [vmem:[#allocation5 + $0x488] sm:$0xff]
    %v256 = vld [vmem:[#allocation5 + $0x490] sm:$0xff]
    %v257 = vld [vmem:[#allocation5 + $0x498] sm:$0xff]
    %v258 = vld [vmem:[#allocation5 + $0x4a0] sm:$0xff]
    %v259 = vld [vmem:[#allocation5 + $0x4a8] sm:$0xff]
    %v260 = vld [vmem:[#allocation5 + $0x4b0] sm:$0xff]
    %v261 = vld [vmem:[#allocation5 + $0x4b8] sm:$0xff]
    %v262 = vld [vmem:[#allocation5 + $0x4c0] sm:$0xff]
    %v263 = vld [vmem:[#allocation5 + $0x4c8] sm:$0xff]
    %v264 = vld [vmem:[#allocation5 + $0x4d0] sm:$0xff]
    %v265 = vld [vmem:[#allocation5 + $0x4d8] sm:$0xff]
    %v266 = vld [vmem:[#allocation5 + $0x4e0] sm:$0xff]
    %v267 = vld [vmem:[#allocation5 + $0x4e8] sm:$0xff]
    %v268 = vld [vmem:[#allocation5 + $0x4f0] sm:$0xff]
    %v269 = vld [vmem:[#allocation5 + $0x4f8] sm:$0xff]
    %v270 = vld [vmem:[#allocation5 + $0x500] sm:$0xff]
    %v271 = vld [vmem:[#allocation5 + $0x508] sm:$0xff]
    %v272 = vld [vmem:[#allocation5 + $0x510] sm:$0xff]
    %v273 = vld [vmem:[#allocation5 + $0x518] sm:$0xff]
    %v274 = vld [vmem:[#allocation5 + $0x520] sm:$0xff]
    %v275 = vld [vmem:[#allocation5 + $0x528] sm:$0xff]
    %v276 = vld [vmem:[#allocation5 + $0x530] sm:$0xff]
    %v277 = vld [vmem:[#allocation5 + $0x538] sm:$0xff]
    %v278 = vld [vmem:[#allocation5 + $0x540] sm:$0xff]
    %v279 = vld [vmem:[#allocation5 + $0x548] sm:$0xff]
    %v280 = vld [vmem:[#allocation5 + $0x550] sm:$0xff]
    %v281 = vld [vmem:[#allocation5 + $0x558] sm:$0xff]
    %v282 = vld [vmem:[#allocation5 + $0x560] sm:$0xff]
    %v283 = vld [vmem:[#allocation5 + $0x568] sm:$0xff]
    %v284 = vld [vmem:[#allocation5 + $0x570] sm:$0xff]
    %v285 = vld [vmem:[#allocation5 + $0x578] sm:$0xff]
    %v286 = vld [vmem:[#allocation5 + $0x580] sm:$0xff]
    %v287 = vld [vmem:[#allocation5 + $0x588] sm:$0xff]
    %v288 = vld [vmem:[#allocation5 + $0x590] sm:$0xff]
    %v289 = vld [vmem:[#allocation5 + $0x598] sm:$0xff]
    %v290 = vld [vmem:[#allocation5 + $0x5a0] sm:$0xff]
    %v291 = vld [vmem:[#allocation5 + $0x5a8] sm:$0xff]
    %v292 = vld [vmem:[#allocation5 + $0x5b0] sm:$0xff]
    %v293 = vld [vmem:[#allocation5 + $0x5b8] sm:$0xff]
    %v294 = vld [vmem:[#allocation5 + $0x5c0] sm:$0xff]
    %v295 = vld [vmem:[#allocation5 + $0x5c8] sm:$0xff]
    %v296 = vld [vmem:[#allocation5 + $0x5d0] sm:$0xff]
    %v297 = vld [vmem:[#allocation5 + $0x5d8] sm:$0xff]
    %v298 = vld [vmem:[#allocation5 + $0x5e0] sm:$0xff]
    %v299 = vld [vmem:[#allocation5 + $0x5e8] sm:$0xff]
    %v300 = vld [vmem:[#allocation5 + $0x5f0] sm:$0xff]
    %v301 = vld [vmem:[#allocation5 + $0x5f8] sm:$0xff]
    %v302 = vld [vmem:[#allocation5 + $0x600] sm:$0xff]
    %v303 = vld [vmem:[#allocation5 + $0x608] sm:$0xff]
    %v304 = vld [vmem:[#allocation5 + $0x610] sm:$0xff]
    %v305 = vld [vmem:[#allocation5 + $0x618] sm:$0xff]
    %v306 = vld [vmem:[#allocation5 + $0x620] sm:$0xff]
    %v307 = vld [vmem:[#allocation5 + $0x628] sm:$0xff]
    %v308 = vld [vmem:[#allocation5 + $0x630] sm:$0xff]
    %v309 = vld [vmem:[#allocation5 + $0x638] sm:$0xff]
    %v310 = vld [vmem:[#allocation5 + $0x640] sm:$0xff]
    %v311 = vld [vmem:[#allocation5 + $0x648] sm:$0xff]
    %v312 = vld [vmem:[#allocation5 + $0x650] sm:$0xff]
    %v313 = vld [vmem:[#allocation5 + $0x658] sm:$0xff]
    %v314 = vld [vmem:[#allocation5 + $0x660] sm:$0xff]
    %v315 = vld [vmem:[#allocation5 + $0x668] sm:$0xff]
    %v316 = vld [vmem:[#allocation5 + $0x670] sm:$0xff]
    %v317 = vld [vmem:[#allocation5 + $0x678] sm:$0xff]
    %v318 = vld [vmem:[#allocation5 + $0x680] sm:$0xff]
    %v319 = vld [vmem:[#allocation5 + $0x688] sm:$0xff]
    %v320 = vld [vmem:[#allocation5 + $0x690] sm:$0xff]
    %v321 = vld [vmem:[#allocation5 + $0x698] sm:$0xff]
    %v322 = vld [vmem:[#allocation5 + $0x6a0] sm:$0xff]
    %v323 = vld [vmem:[#allocation5 + $0x6a8] sm:$0xff]
    %v324 = vld [vmem:[#allocation5 + $0x6b0] sm:$0xff]
    %v325 = vld [vmem:[#allocation5 + $0x6b8] sm:$0xff]
    %v326 = vld [vmem:[#allocation5 + $0x6c0] sm:$0xff]
    %v327 = vld [vmem:[#allocation5 + $0x6c8] sm:$0xff]
    %v328 = vld [vmem:[#allocation5 + $0x6d0] sm:$0xff]
    %v329 = vld [vmem:[#allocation5 + $0x6d8] sm:$0xff]
    %v330 = vld [vmem:[#allocation5 + $0x6e0] sm:$0xff]
    %v331 = vld [vmem:[#allocation5 + $0x6e8] sm:$0xff]
    %v332 = vld [vmem:[#allocation5 + $0x6f0] sm:$0xff]
    %v333 = vld [vmem:[#allocation5 + $0x6f8] sm:$0xff]
    %v334 = vld [vmem:[#allocation5 + $0x700] sm:$0xff]
    %v335 = vld [vmem:[#allocation5 + $0x708] sm:$0xff]
    %v336 = vld [vmem:[#allocation5 + $0x710] sm:$0xff]
    %v337 = vld [vmem:[#allocation5 + $0x718] sm:$0xff]
    %v338 = vld [vmem:[#allocation5 + $0x720] sm:$0xff]
    %v339 = vld [vmem:[#allocation5 + $0x728] sm:$0xff]
    %v340 = vld [vmem:[#allocation5 + $0x730] sm:$0xff]
    %v341 = vld [vmem:[#allocation5 + $0x738] sm:$0xff]
    %v342 = vld [vmem:[#allocation5 + $0x740] sm:$0xff]
    %v343 = vld [vmem:[#allocation5 + $0x748] sm:$0xff]
    %v344 = vld [vmem:[#allocation5 + $0x750] sm:$0xff]
    %v345 = vld [vmem:[#allocation5 + $0x758] sm:$0xff]
    %v346 = vld [vmem:[#allocation5 + $0x760] sm:$0xff]
    %v347 = vld [vmem:[#allocation5 + $0x768] sm:$0xff]
    %v348 = vld [vmem:[#allocation5 + $0x770] sm:$0xff]
    %v349 = vld [vmem:[#allocation5 + $0x778] sm:$0xff]
    %v350 = vld [vmem:[#allocation5 + $0x780] sm:$0xff]
    %v351 = vld [vmem:[#allocation5 + $0x788] sm:$0xff]
    %v352 = vld [vmem:[#allocation5 + $0x790] sm:$0xff]
    %v353 = vld [vmem:[#allocation5 + $0x798] sm:$0xff]
    %v354 = vld [vmem:[#allocation5 + $0x7a0] sm:$0xff]
    %v355 = vld [vmem:[#allocation5 + $0x7a8] sm:$0xff]
    %v356 = vld [vmem:[#allocation5 + $0x7b0] sm:$0xff]
    %v357 = vld [vmem:[#allocation5 + $0x7b8] sm:$0xff]
    %v358 = vld [vmem:[#allocation5 + $0x7c0] sm:$0xff]
    %v359 = vld [vmem:[#allocation5 + $0x7c8] sm:$0xff]
    %v360 = vld [vmem:[#allocation5 + $0x7d0] sm:$0xff]
    %v361 = vld [vmem:[#allocation5 + $0x7d8] sm:$0xff]
    %v362 = vld [vmem:[#allocation5 + $0x7e0] sm:$0xff]
    %v363 = vld [vmem:[#allocation5 + $0x7e8] sm:$0xff]
    %v364 = vld [vmem:[#allocation5 + $0x7f0] sm:$0xff]
    %v365 = vld [vmem:[#allocation5 + $0x7f8] sm:$0xff]
    %v366 = vld [vmem:[#allocation5 + $0x800] sm:$0xff]
    %v367 = vld [vmem:[#allocation5 + $0x808] sm:$0xff]
    %v368 = vld [vmem:[#allocation5 + $0x810] sm:$0xff]
    %v369 = vld [vmem:[#allocation5 + $0x818] sm:$0xff]
    %v370 = vld [vmem:[#allocation5 + $0x820] sm:$0xff]
    %v371 = vld [vmem:[#allocation5 + $0x828] sm:$0xff]
    %v372 = vld [vmem:[#allocation5 + $0x830] sm:$0xff]
    %v373 = vld [vmem:[#allocation5 + $0x838] sm:$0xff]
    %v374 = vld [vmem:[#allocation5 + $0x840] sm:$0xff]
    %v375 = vld [vmem:[#allocation5 + $0x848] sm:$0xff]
    %v376 = vld [vmem:[#allocation5 + $0x850] sm:$0xff]
    %v377 = vld [vmem:[#allocation5 + $0x858] sm:$0xff]
    %v378 = vld [vmem:[#allocation5 + $0x860] sm:$0xff]
    %v379 = vld [vmem:[#allocation5 + $0x868] sm:$0xff]
    %v380 = vld [vmem:[#allocation5 + $0x870] sm:$0xff]
    %v381 = vld [vmem:[#allocation5 + $0x878] sm:$0xff]
    %v382 = vld [vmem:[#allocation5 + $0x880] sm:$0xff]
    %v383 = vld [vmem:[#allocation5 + $0x888] sm:$0xff]
    %v384 = vld [vmem:[#allocation5 + $0x890] sm:$0xff]
    %v385 = vld [vmem:[#allocation5 + $0x898] sm:$0xff]
    %v386 = vld [vmem:[#allocation5 + $0x8a0] sm:$0xff]
    %v387 = vld [vmem:[#allocation5 + $0x8a8] sm:$0xff]
    %v388 = vld [vmem:[#allocation5 + $0x8b0] sm:$0xff]
    %v389 = vld [vmem:[#allocation5 + $0x8b8] sm:$0xff]
    %v390 = vld [vmem:[#allocation5 + $0x8c0] sm:$0xff]
    %v391 = vld [vmem:[#allocation5 + $0x8c8] sm:$0xff]
    %v392 = vld [vmem:[#allocation5 + $0x8d0] sm:$0xff]
    %v393 = vld [vmem:[#allocation5 + $0x8d8] sm:$0xff]
    %v394 = vld [vmem:[#allocation5 + $0x8e0] sm:$0xff]
    %v395 = vld [vmem:[#allocation5 + $0x8e8] sm:$0xff]
    %v396 = vld [vmem:[#allocation5 + $0x8f0] sm:$0xff]
    %v397 = vld [vmem:[#allocation5 + $0x8f8] sm:$0xff]
    %v398 = vld [vmem:[#allocation5 + $0x900] sm:$0xff]
    %v399 = vld [vmem:[#allocation5 + $0x908] sm:$0xff]
    %v400 = vld [vmem:[#allocation5 + $0x910] sm:$0xff]
    %v401 = vld [vmem:[#allocation5 + $0x918] sm:$0xff]
    %v402 = vld [vmem:[#allocation5 + $0x920] sm:$0xff]
    %v403 = vld [vmem:[#allocation5 + $0x928] sm:$0xff]
    %v404 = vld [vmem:[#allocation5 + $0x930] sm:$0xff]
    %v405 = vld [vmem:[#allocation5 + $0x938] sm:$0xff]
    %v406 = vld [vmem:[#allocation5 + $0x940] sm:$0xff]
    %v407 = vld [vmem:[#allocation5 + $0x948] sm:$0xff]
    %v408 = vld [vmem:[#allocation5 + $0x950] sm:$0xff]
    %v409 = vld [vmem:[#allocation5 + $0x958] sm:$0xff]
    %v410 = vld [vmem:[#allocation5 + $0x960] sm:$0xff]
    %v411 = vld [vmem:[#allocation5 + $0x968] sm:$0xff]
    %v412 = vld [vmem:[#allocation5 + $0x970] sm:$0xff]
    %v413 = vld [vmem:[#allocation5 + $0x978] sm:$0xff]
    %v414 = vld [vmem:[#allocation5 + $0x980] sm:$0xff]
    %v415 = vld [vmem:[#allocation5 + $0x988] sm:$0xff]
    %v416 = vld [vmem:[#allocation5 + $0x990] sm:$0xff]
    %v417 = vld [vmem:[#allocation5 + $0x998] sm:$0xff]
    %v418 = vld [vmem:[#allocation5 + $0x9a0] sm:$0xff]
    %v419 = vld [vmem:[#allocation5 + $0x9a8] sm:$0xff]
    %v420 = vld [vmem:[#allocation5 + $0x9b0] sm:$0xff]
    %v421 = vld [vmem:[#allocation5 + $0x9b8] sm:$0xff]
    %v422 = vld [vmem:[#allocation5 + $0x9c0] sm:$0xff]
    %v423 = vld [vmem:[#allocation5 + $0x9c8] sm:$0xff]
    %v424 = vld [vmem:[#allocation5 + $0x9d0] sm:$0xff]
    %v425 = vld [vmem:[#allocation5 + $0x9d8] sm:$0xff]
    %v426 = vld [vmem:[#allocation5 + $0x9e0] sm:$0xff]
    %v427 = vld [vmem:[#allocation5 + $0x9e8] sm:$0xff]
    %v428 = vld [vmem:[#allocation5 + $0x9f0] sm:$0xff]
    %v429 = vld [vmem:[#allocation5 + $0x9f8] sm:$0xff]
    %v430 = vld [vmem:[#allocation5 + $0xa00] sm:$0xff]
    %v431 = vld [vmem:[#allocation5 + $0xa08] sm:$0xff]
    %v432 = vld [vmem:[#allocation5 + $0xa10] sm:$0xff]
    %v433 = vld [vmem:[#allocation5 + $0xa18] sm:$0xff]
    %v434 = vld [vmem:[#allocation5 + $0xa20] sm:$0xff]
    %v435 = vld [vmem:[#allocation5 + $0xa28] sm:$0xff]
    %v436 = vld [vmem:[#allocation5 + $0xa30] sm:$0xff]
    %v437 = vld [vmem:[#allocation5 + $0xa38] sm:$0xff]
    %v438 = vld [vmem:[#allocation5 + $0xa40] sm:$0xff]
    %v439 = vld [vmem:[#allocation5 + $0xa48] sm:$0xff]
    %v440 = vld [vmem:[#allocation5 + $0xa50] sm:$0xff]
    %v441 = vld [vmem:[#allocation5 + $0xa58] sm:$0xff]
    %v442 = vld [vmem:[#allocation5 + $0xa60] sm:$0xff]
    %v443 = vld [vmem:[#allocation5 + $0xa68] sm:$0xff]
    %v444 = vld [vmem:[#allocation5 + $0xa70] sm:$0xff]
    %v445 = vld [vmem:[#allocation5 + $0xa78] sm:$0xff]
    %v446 = vld [vmem:[#allocation5 + $0xa80] sm:$0xff]
    %v447 = vld [vmem:[#allocation5 + $0xa88] sm:$0xff]
    %v448 = vld [vmem:[#allocation5 + $0xa90] sm:$0xff]
    %v449 = vld [vmem:[#allocation5 + $0xa98] sm:$0xff]
    %v450 = vld [vmem:[#allocation5 + $0xaa0] sm:$0xff]
    %v451 = vld [vmem:[#allocation5 + $0xaa8] sm:$0xff]
    %v452 = vld [vmem:[#allocation5 + $0xab0] sm:$0xff]
    %v453 = vld [vmem:[#allocation5 + $0xab8] sm:$0xff]
    %v454 = vld [vmem:[#allocation5 + $0xac0] sm:$0xff]
    %v455 = vld [vmem:[#allocation5 + $0xac8] sm:$0xff]
    %v456 = vld [vmem:[#allocation5 + $0xad0] sm:$0xff]
    %v457 = vld [vmem:[#allocation5 + $0xad8] sm:$0xff]
    %v458 = vld [vmem:[#allocation5 + $0xae0] sm:$0xff]
    %v459 = vld [vmem:[#allocation5 + $0xae8] sm:$0xff]
    %v460 = vld [vmem:[#allocation5 + $0xaf0] sm:$0xff]
    %v461 = vld [vmem:[#allocation5 + $0xaf8] sm:$0xff]
    %v462 = vld [vmem:[#allocation5 + $0xb00] sm:$0xff]
    %v463 = vld [vmem:[#allocation5 + $0xb08] sm:$0xff]
    %v464 = vld [vmem:[#allocation5 + $0xb10] sm:$0xff]
    %v465 = vld [vmem:[#allocation5 + $0xb18] sm:$0xff]
    %v466 = vld [vmem:[#allocation5 + $0xb20] sm:$0xff]
    %v467 = vld [vmem:[#allocation5 + $0xb28] sm:$0xff]
    %v468 = vld [vmem:[#allocation5 + $0xb30] sm:$0xff]
    %v469 = vld [vmem:[#allocation5 + $0xb38] sm:$0xff]
    %v470 = vld [vmem:[#allocation5 + $0xb40] sm:$0xff]
    %v471 = vld [vmem:[#allocation5 + $0xb48] sm:$0xff]
    %v472 = vld [vmem:[#allocation5 + $0xb50] sm:$0xff]
    %v473 = vld [vmem:[#allocation5 + $0xb58] sm:$0xff]
    %v474 = vld [vmem:[#allocation5 + $0xb60] sm:$0xff]
    %v475 = vld [vmem:[#allocation5 + $0xb68] sm:$0xff]
    %v476 = vld [vmem:[#allocation5 + $0xb70] sm:$0xff]
    %v477 = vld [vmem:[#allocation5 + $0xb78] sm:$0xff]
    %v478 = vld [vmem:[#allocation5 + $0xb80] sm:$0xff]
    %v479 = vld [vmem:[#allocation5 + $0xb88] sm:$0xff]
    %v480 = vld [vmem:[#allocation5 + $0xb90] sm:$0xff]
    %v481 = vld [vmem:[#allocation5 + $0xb98] sm:$0xff]
    %v482 = vld [vmem:[#allocation5 + $0xba0] sm:$0xff]
    %v483 = vld [vmem:[#allocation5 + $0xba8] sm:$0xff]
    %v484 = vld [vmem:[#allocation5 + $0xbb0] sm:$0xff]
    %v485 = vld [vmem:[#allocation5 + $0xbb8] sm:$0xff]
    %v486 = vld [vmem:[#allocation5 + $0xbc0] sm:$0xff]
    %v487 = vld [vmem:[#allocation5 + $0xbc8] sm:$0xff]
    %v488 = vld [vmem:[#allocation5 + $0xbd0] sm:$0xff]
    %v489 = vld [vmem:[#allocation5 + $0xbd8] sm:$0xff]
    %v490 = vld [vmem:[#allocation5 + $0xbe0] sm:$0xff]
    %v491 = vld [vmem:[#allocation5 + $0xbe8] sm:$0xff]
    %v492 = vld [vmem:[#allocation5 + $0xbf0] sm:$0xff]
    %v493 = vld [vmem:[#allocation5 + $0xbf8] sm:$0xff]
    %v494 = vld [vmem:[#allocation5 + $0xc00] sm:$0xff]
    %v495 = vld [vmem:[#allocation5 + $0xc08] sm:$0xff]
    %v496 = vld [vmem:[#allocation5 + $0xc10] sm:$0xff]
    %v497 = vld [vmem:[#allocation5 + $0xc18] sm:$0xff]
    %v498 = vld [vmem:[#allocation5 + $0xc20] sm:$0xff]
    %v499 = vld [vmem:[#allocation5 + $0xc28] sm:$0xff]
    %v500 = vld [vmem:[#allocation5 + $0xc30] sm:$0xff]
    %v501 = vld [vmem:[#allocation5 + $0xc38] sm:$0xff]
    %v502 = vld [vmem:[#allocation5 + $0xc40] sm:$0xff]
    %v503 = vld [vmem:[#allocation5 + $0xc48] sm:$0xff]
    %v504 = vld [vmem:[#allocation5 + $0xc50] sm:$0xff]
    %v505 = vld [vmem:[#allocation5 + $0xc58] sm:$0xff]
    %v506 = vld [vmem:[#allocation5 + $0xc60] sm:$0xff]
    %v507 = vld [vmem:[#allocation5 + $0xc68] sm:$0xff]
    %v508 = vld [vmem:[#allocation5 + $0xc70] sm:$0xff]
    %v509 = vld [vmem:[#allocation5 + $0xc78] sm:$0xff]
    %v510 = vld [vmem:[#allocation5 + $0xc80] sm:$0xff]
    %v511 = vld [vmem:[#allocation5 + $0xc88] sm:$0xff]
    %v512 = vld [vmem:[#allocation5 + $0xc90] sm:$0xff]
    %v513 = vld [vmem:[#allocation5 + $0xc98] sm:$0xff]
    %v514 = vld [vmem:[#allocation5 + $0xca0] sm:$0xff]
    %v515 = vld [vmem:[#allocation5 + $0xca8] sm:$0xff]
    %v516 = vld [vmem:[#allocation5 + $0xcb0] sm:$0xff]
    %v517 = vld [vmem:[#allocation5 + $0xcb8] sm:$0xff]
    %v518 = vld [vmem:[#allocation5 + $0xcc0] sm:$0xff]
    %v519 = vld [vmem:[#allocation5 + $0xcc8] sm:$0xff]
    %v520 = vld [vmem:[#allocation5 + $0xcd0] sm:$0xff]
    %v521 = vld [vmem:[#allocation5 + $0xcd8] sm:$0xff]
    %v522 = vld [vmem:[#allocation5 + $0xce0] sm:$0xff]
    %v523 = vld [vmem:[#allocation5 + $0xce8] sm:$0xff]
    %v524 = vld [vmem:[#allocation5 + $0xcf0] sm:$0xff]
    %v525 = vld [vmem:[#allocation5 + $0xcf8] sm:$0xff]
    %v526 = vld [vmem:[#allocation5 + $0xd00] sm:$0xff]
    %v527 = vld [vmem:[#allocation5 + $0xd08] sm:$0xff]
    %v528 = vld [vmem:[#allocation5 + $0xd10] sm:$0xff]
    %v529 = vld [vmem:[#allocation5 + $0xd18] sm:$0xff]
    %v530 = vld [vmem:[#allocation5 + $0xd20] sm:$0xff]
    %v531 = vld [vmem:[#allocation5 + $0xd28] sm:$0xff]
    %v532 = vld [vmem:[#allocation5 + $0xd30] sm:$0xff]
    %v533 = vld [vmem:[#allocation5 + $0xd38] sm:$0xff]
    %v534 = vld [vmem:[#allocation5 + $0xd40] sm:$0xff]
    %v535 = vld [vmem:[#allocation5 + $0xd48] sm:$0xff]
    %v536 = vld [vmem:[#allocation5 + $0xd50] sm:$0xff]
    %v537 = vld [vmem:[#allocation5 + $0xd58] sm:$0xff]
    %v538 = vld [vmem:[#allocation5 + $0xd60] sm:$0xff]
    %v539 = vld [vmem:[#allocation5 + $0xd68] sm:$0xff]
    %v540 = vld [vmem:[#allocation5 + $0xd70] sm:$0xff]
    %v541 = vld [vmem:[#allocation5 + $0xd78] sm:$0xff]
    %v542 = vld [vmem:[#allocation5 + $0xd80] sm:$0xff]
    %v543 = vld [vmem:[#allocation5 + $0xd88] sm:$0xff]
    %v544 = vld [vmem:[#allocation5 + $0xd90] sm:$0xff]
    %v545 = vld [vmem:[#allocation5 + $0xd98] sm:$0xff]
    %v546 = vld [vmem:[#allocation5 + $0xda0] sm:$0xff]
    %v547 = vld [vmem:[#allocation5 + $0xda8] sm:$0xff]
    %v548 = vld [vmem:[#allocation5 + $0xdb0] sm:$0xff]
    %v549 = vld [vmem:[#allocation5 + $0xdb8] sm:$0xff]
    %v550 = vld [vmem:[#allocation5 + $0xdc0] sm:$0xff]
    %v551 = vld [vmem:[#allocation5 + $0xdc8] sm:$0xff]
    %v552 = vld [vmem:[#allocation5 + $0xdd0] sm:$0xff]
    %v553 = vld [vmem:[#allocation5 + $0xdd8] sm:$0xff]
    %v554 = vld [vmem:[#allocation5 + $0xde0] sm:$0xff]
    %v555 = vld [vmem:[#allocation5 + $0xde8] sm:$0xff]
    %v556 = vld [vmem:[#allocation5 + $0xdf0] sm:$0xff]
    %v557 = vld [vmem:[#allocation5 + $0xdf8] sm:$0xff]
    %v558 = vld [vmem:[#allocation5 + $0xe00] sm:$0xff]
    %v559 = vld [vmem:[#allocation5 + $0xe08] sm:$0xff]
    %v560 = vld [vmem:[#allocation5 + $0xe10] sm:$0xff]
    %v561 = vld [vmem:[#allocation5 + $0xe18] sm:$0xff]
    %v562 = vld [vmem:[#allocation5 + $0xe20] sm:$0xff]
    %v563 = vld [vmem:[#allocation5 + $0xe28] sm:$0xff]
    %v564 = vld [vmem:[#allocation5 + $0xe30] sm:$0xff]
    %v565 = vld [vmem:[#allocation5 + $0xe38] sm:$0xff]
    %v566 = vld [vmem:[#allocation5 + $0xe40] sm:$0xff]
    %v567 = vld [vmem:[#allocation5 + $0xe48] sm:$0xff]
    %v568 = vld [vmem:[#allocation5 + $0xe50] sm:$0xff]
    %v569 = vld [vmem:[#allocation5 + $0xe58] sm:$0xff]
    %v570 = vld [vmem:[#allocation5 + $0xe60] sm:$0xff]
    %v571 = vld [vmem:[#allocation5 + $0xe68] sm:$0xff]
    %v572 = vld [vmem:[#allocation5 + $0xe70] sm:$0xff]
    %v573 = vld [vmem:[#allocation5 + $0xe78] sm:$0xff]
    %v574 = vld [vmem:[#allocation5 + $0xe80] sm:$0xff]
    %v575 = vld [vmem:[#allocation5 + $0xe88] sm:$0xff]
    %v576 = vld [vmem:[#allocation5 + $0xe90] sm:$0xff]
    %v577 = vld [vmem:[#allocation5 + $0xe98] sm:$0xff]
    %v578 = vld [vmem:[#allocation5 + $0xea0] sm:$0xff]
    %v579 = vld [vmem:[#allocation5 + $0xea8] sm:$0xff]
    %v580 = vld [vmem:[#allocation5 + $0xeb0] sm:$0xff]
    %v581 = vld [vmem:[#allocation5 + $0xeb8] sm:$0xff]
    %v582 = vld [vmem:[#allocation5 + $0xec0] sm:$0xff]
    %v583 = vld [vmem:[#allocation5 + $0xec8] sm:$0xff]
    %v584 = vld [vmem:[#allocation5 + $0xed0] sm:$0xff]
    %v585 = vld [vmem:[#allocation5 + $0xed8] sm:$0xff]
    %v586 = vld [vmem:[#allocation5 + $0xee0] sm:$0xff]
    %v587 = vld [vmem:[#allocation5 + $0xee8] sm:$0xff]
    %v588 = vld [vmem:[#allocation5 + $0xef0] sm:$0xff]
    %v589 = vld [vmem:[#allocation5 + $0xef8] sm:$0xff]
    %v590 = vld [vmem:[#allocation5 + $0xf00] sm:$0xff]
    %v591 = vld [vmem:[#allocation5 + $0xf08] sm:$0xff]
    %v592 = vld [vmem:[#allocation5 + $0xf10] sm:$0xff]
    %v593 = vld [vmem:[#allocation5 + $0xf18] sm:$0xff]
    %v594 = vld [vmem:[#allocation5 + $0xf20] sm:$0xff]
    %v595 = vld [vmem:[#allocation5 + $0xf28] sm:$0xff]
    %v596 = vld [vmem:[#allocation5 + $0xf30] sm:$0xff]
    %v597 = vld [vmem:[#allocation5 + $0xf38] sm:$0xff]
    %v598 = vld [vmem:[#allocation5 + $0xf40] sm:$0xff]
    %v599 = vld [vmem:[#allocation5 + $0xf48] sm:$0xff]
    %v600 = vld [vmem:[#allocation5 + $0xf50] sm:$0xff]
    %v601 = vld [vmem:[#allocation5 + $0xf58] sm:$0xff]
    %v602 = vld [vmem:[#allocation5 + $0xf60] sm:$0xff]
    %v603 = vld [vmem:[#allocation5 + $0xf68] sm:$0xff]
    %v604 = vld [vmem:[#allocation5 + $0xf70] sm:$0xff]
    %v605 = vld [vmem:[#allocation5 + $0xf78] sm:$0xff]
    %v606 = vld [vmem:[#allocation5 + $0xf80] sm:$0xff]
    %v607 = vld [vmem:[#allocation5 + $0xf88] sm:$0xff]
    %v608 = vld [vmem:[#allocation5 + $0xf90] sm:$0xff]
    %v609 = vld [vmem:[#allocation5 + $0xf98] sm:$0xff]
    %v610 = vld [vmem:[#allocation5 + $0xfa0] sm:$0xff]
    %v611 = vld [vmem:[#allocation5 + $0xfa8] sm:$0xff]
    %v612 = vld [vmem:[#allocation5 + $0xfb0] sm:$0xff]
    %v613 = vld [vmem:[#allocation5 + $0xfb8] sm:$0xff]
    %v614 = vld [vmem:[#allocation5 + $0xfc0] sm:$0xff]
    %v615 = vld [vmem:[#allocation5 + $0xfc8] sm:$0xff]
    %v616 = vld [vmem:[#allocation5 + $0xfd0] sm:$0xff]
    %v617 = vld [vmem:[#allocation5 + $0xfd8] sm:$0xff]
    %v618 = vld [vmem:[#allocation5 + $0xfe0] sm:$0xff]
    %v619 = vld [vmem:[#allocation5 + $0xfe8] sm:$0xff]
    %v620 = vld [vmem:[#allocation5 + $0xff0] sm:$0xff]
    %v621 = vld [vmem:[#allocation5 + $0xff8] sm:$0xff]
    %v622 = vld [vmem:[#allocation5 + $0x1000] sm:$0xff]
    %v623 = vld [vmem:[#allocation5 + $0x1008] sm:$0xff]
    %v624 = vld [vmem:[#allocation5 + $0x1010] sm:$0xff]
    %v625 = vld [vmem:[#allocation5 + $0x1018] sm:$0xff]
    %v626 = vld [vmem:[#allocation5 + $0x1020] sm:$0xff]
    %v627 = vld [vmem:[#allocation5 + $0x1028] sm:$0xff]
    %v628 = vld [vmem:[#allocation5 + $0x1030] sm:$0xff]
    %v629 = vld [vmem:[#allocation5 + $0x1038] sm:$0xff]
    %v630 = vld [vmem:[#allocation5 + $0x1040] sm:$0xff]
    %v631 = vld [vmem:[#allocation5 + $0x1048] sm:$0xff]
    %v632 = vld [vmem:[#allocation5 + $0x1050] sm:$0xff]
    %v633 = vld [vmem:[#allocation5 + $0x1058] sm:$0xff]
    %v634 = vld [vmem:[#allocation5 + $0x1060] sm:$0xff]
    %v635 = vld [vmem:[#allocation5 + $0x1068] sm:$0xff]
    %v636 = vld [vmem:[#allocation5 + $0x1070] sm:$0xff]
    %v637 = vld [vmem:[#allocation5 + $0x1078] sm:$0xff]
    %v638 = vld [vmem:[#allocation5 + $0x1080] sm:$0xff]
    %v639 = vld [vmem:[#allocation5 + $0x1088] sm:$0xff]
    %v640 = vld [vmem:[#allocation5 + $0x1090] sm:$0xff]
    %v641 = vld [vmem:[#allocation5 + $0x1098] sm:$0xff]
    %v642 = vld [vmem:[#allocation5 + $0x10a0] sm:$0xff]
    %v643 = vld [vmem:[#allocation5 + $0x10a8] sm:$0xff]
    %v644 = vld [vmem:[#allocation5 + $0x10b0] sm:$0xff]
    %v645 = vld [vmem:[#allocation5 + $0x10b8] sm:$0xff]
    %v646 = vld [vmem:[#allocation5 + $0x10c0] sm:$0xff]
    %v647 = vld [vmem:[#allocation5 + $0x10c8] sm:$0xff]
    %v648 = vld [vmem:[#allocation5 + $0x10d0] sm:$0xff]
    %v649 = vld [vmem:[#allocation5 + $0x10d8] sm:$0xff]
    %v650 = vld [vmem:[#allocation5 + $0x10e0] sm:$0xff]
    %v651 = vld [vmem:[#allocation5 + $0x10e8] sm:$0xff]
    %v652 = vld [vmem:[#allocation5 + $0x10f0] sm:$0xff]
    %v653 = vld [vmem:[#allocation5 + $0x10f8] sm:$0xff]
    %v654 = vld [vmem:[#allocation5 + $0x1100] sm:$0xff]
    %v655 = vld [vmem:[#allocation5 + $0x1108] sm:$0xff]
    %v656 = vld [vmem:[#allocation5 + $0x1110] sm:$0xff]
    %v657 = vld [vmem:[#allocation5 + $0x1118] sm:$0xff]
    %v658 = vld [vmem:[#allocation5 + $0x1120] sm:$0xff]
    %v659 = vld [vmem:[#allocation5 + $0x1128] sm:$0xff]
    %v660 = vld [vmem:[#allocation5 + $0x1130] sm:$0xff]
    %v661 = vld [vmem:[#allocation5 + $0x1138] sm:$0xff]
    %v662 = vld [vmem:[#allocation5 + $0x1140] sm:$0xff]
    %v663 = vld [vmem:[#allocation5 + $0x1148] sm:$0xff]
    %v664 = vld [vmem:[#allocation5 + $0x1150] sm:$0xff]
    %v665 = vld [vmem:[#allocation5 + $0x1158] sm:$0xff]
    %v666 = vld [vmem:[#allocation5 + $0x1160] sm:$0xff]
    %v667 = vld [vmem:[#allocation5 + $0x1168] sm:$0xff]
    %v668 = vld [vmem:[#allocation5 + $0x1170] sm:$0xff]
    %v669 = vld [vmem:[#allocation5 + $0x1178] sm:$0xff]
    %v670 = vld [vmem:[#allocation5 + $0x1180] sm:$0xff]
    %v671 = vld [vmem:[#allocation5 + $0x1188] sm:$0xff]
    %v672 = vld [vmem:[#allocation5 + $0x1190] sm:$0xff]
    %v673 = vld [vmem:[#allocation5 + $0x1198] sm:$0xff]
    %v674 = vld [vmem:[#allocation5 + $0x11a0] sm:$0xff]
    %v675 = vld [vmem:[#allocation5 + $0x11a8] sm:$0xff]
    %v676 = vld [vmem:[#allocation5 + $0x11b0] sm:$0xff]
    %v677 = vld [vmem:[#allocation5 + $0x11b8] sm:$0xff]
    %v678 = vld [vmem:[#allocation5 + $0x11c0] sm:$0xff]
    %v679 = vld [vmem:[#allocation5 + $0x11c8] sm:$0xff]
    %v680 = vld [vmem:[#allocation5 + $0x11d0] sm:$0xff]
    %v681 = vld [vmem:[#allocation5 + $0x11d8] sm:$0xff]
    %v682 = vld [vmem:[#allocation5 + $0x11e0] sm:$0xff]
    %v683 = vld [vmem:[#allocation5 + $0x11e8] sm:$0xff]
    %v684 = vld [vmem:[#allocation5 + $0x11f0] sm:$0xff]
    %v685 = vld [vmem:[#allocation5 + $0x11f8] sm:$0xff]
    %v686 = vld [vmem:[#allocation5 + $0x1200] sm:$0xff]
    %v687 = vld [vmem:[#allocation5 + $0x1208] sm:$0xff]
    %v688 = vld [vmem:[#allocation5 + $0x1210] sm:$0xff]
    %v689 = vld [vmem:[#allocation5 + $0x1218] sm:$0xff]
    %v690 = vld [vmem:[#allocation5 + $0x1220] sm:$0xff]
    %v691 = vld [vmem:[#allocation5 + $0x1228] sm:$0xff]
    %v692 = vld [vmem:[#allocation5 + $0x1230] sm:$0xff]
    %v693 = vld [vmem:[#allocation5 + $0x1238] sm:$0xff]
    %v694 = vld [vmem:[#allocation5 + $0x1240] sm:$0xff]
    %v695 = vld [vmem:[#allocation5 + $0x1248] sm:$0xff]
    %v696 = vld [vmem:[#allocation5 + $0x1250] sm:$0xff]
    %v697 = vld [vmem:[#allocation5 + $0x1258] sm:$0xff]
    %v698 = vld [vmem:[#allocation5 + $0x1260] sm:$0xff]
    %v699 = vld [vmem:[#allocation5 + $0x1268] sm:$0xff]
    %v700 = vld [vmem:[#allocation5 + $0x1270] sm:$0xff]
    %v701 = vld [vmem:[#allocation5 + $0x1278] sm:$0xff]
    %v702 = vld [vmem:[#allocation5 + $0x1280] sm:$0xff]
    %v703 = vld [vmem:[#allocation5 + $0x1288] sm:$0xff]
    %v704 = vld [vmem:[#allocation5 + $0x1290] sm:$0xff]
    %v705 = vld [vmem:[#allocation5 + $0x1298] sm:$0xff]
    %v706 = vld [vmem:[#allocation5 + $0x12a0] sm:$0xff]
    %v707 = vld [vmem:[#allocation5 + $0x12a8] sm:$0xff]
    %v708 = vld [vmem:[#allocation5 + $0x12b0] sm:$0xff]
    %v709 = vld [vmem:[#allocation5 + $0x12b8] sm:$0xff]
    %v710 = vld [vmem:[#allocation5 + $0x12c0] sm:$0xff]
    %v711 = vld [vmem:[#allocation5 + $0x12c8] sm:$0xff]
    %v712 = vld [vmem:[#allocation5 + $0x12d0] sm:$0xff]
    %v713 = vld [vmem:[#allocation5 + $0x12d8] sm:$0xff]
    %v714 = vld [vmem:[#allocation5 + $0x12e0] sm:$0xff]
    %v715 = vld [vmem:[#allocation5 + $0x12e8] sm:$0xff]
    %v716 = vld [vmem:[#allocation5 + $0x12f0] sm:$0xff]
    %v717 = vld [vmem:[#allocation5 + $0x12f8] sm:$0xff]
    %v718 = vld [vmem:[#allocation5 + $0x1300] sm:$0xff]
    %v719 = vld [vmem:[#allocation5 + $0x1308] sm:$0xff]
    %v720 = vld [vmem:[#allocation5 + $0x1310] sm:$0xff]
    %v721 = vld [vmem:[#allocation5 + $0x1318] sm:$0xff]
    %v722 = vld [vmem:[#allocation5 + $0x1320] sm:$0xff]
    %v723 = vld [vmem:[#allocation5 + $0x1328] sm:$0xff]
    %v724 = vld [vmem:[#allocation5 + $0x1330] sm:$0xff]
    %v725 = vld [vmem:[#allocation5 + $0x1338] sm:$0xff]
    %v726 = vld [vmem:[#allocation5 + $0x1340] sm:$0xff]
    %v727 = vld [vmem:[#allocation5 + $0x1348] sm:$0xff]
    %v728 = vld [vmem:[#allocation5 + $0x1350] sm:$0xff]
    %v729 = vld [vmem:[#allocation5 + $0x1358] sm:$0xff]
    %v730 = vld [vmem:[#allocation5 + $0x1360] sm:$0xff]
    %v731 = vld [vmem:[#allocation5 + $0x1368] sm:$0xff]
    %v732 = vld [vmem:[#allocation5 + $0x1370] sm:$0xff]
    %v733 = vld [vmem:[#allocation5 + $0x1378] sm:$0xff]
    %v734 = vld [vmem:[#allocation5 + $0x1380] sm:$0xff]
    %v735 = vld [vmem:[#allocation5 + $0x1388] sm:$0xff]
    %v736 = vld [vmem:[#allocation5 + $0x1390] sm:$0xff]
    %v737 = vld [vmem:[#allocation5 + $0x1398] sm:$0xff]
    %v738 = vld [vmem:[#allocation5 + $0x13a0] sm:$0xff]
    %v739 = vld [vmem:[#allocation5 + $0x13a8] sm:$0xff]
    %v740 = vld [vmem:[#allocation5 + $0x13b0] sm:$0xff]
    %v741 = vld [vmem:[#allocation5 + $0x13b8] sm:$0xff]
    %v742 = vld [vmem:[#allocation5 + $0x13c0] sm:$0xff]
    %v743 = vld [vmem:[#allocation5 + $0x13c8] sm:$0xff]
    %v744 = vld [vmem:[#allocation5 + $0x13d0] sm:$0xff]
    %v745 = vld [vmem:[#allocation5 + $0x13d8] sm:$0xff]
    %v746 = vld [vmem:[#allocation5 + $0x13e0] sm:$0xff]
    %v747 = vld [vmem:[#allocation5 + $0x13e8] sm:$0xff]
    %v748 = vld [vmem:[#allocation5 + $0x13f0] sm:$0xff]
    %v749 = vld [vmem:[#allocation5 + $0x13f8] sm:$0xff]
    %v750 = vld [vmem:[#allocation5 + $0x1400] sm:$0xff]
    %v751 = vld [vmem:[#allocation5 + $0x1408] sm:$0xff]
    %v752 = vld [vmem:[#allocation5 + $0x1410] sm:$0xff]
    %v753 = vld [vmem:[#allocation5 + $0x1418] sm:$0xff]
    %v754 = vld [vmem:[#allocation5 + $0x1420] sm:$0xff]
    %v755 = vld [vmem:[#allocation5 + $0x1428] sm:$0xff]
    %v756 = vld [vmem:[#allocation5 + $0x1430] sm:$0xff]
    %v757 = vld [vmem:[#allocation5 + $0x1438] sm:$0xff]
    %v758 = vld [vmem:[#allocation5 + $0x1440] sm:$0xff]
    %v759 = vld [vmem:[#allocation5 + $0x1448] sm:$0xff]
    %v760 = vld [vmem:[#allocation5 + $0x1450] sm:$0xff]
    %v761 = vld [vmem:[#allocation5 + $0x1458] sm:$0xff]
    %v762 = vld [vmem:[#allocation5 + $0x1460] sm:$0xff]
    %v763 = vld [vmem:[#allocation5 + $0x1468] sm:$0xff]
    %v764 = vld [vmem:[#allocation5 + $0x1470] sm:$0xff]
    %v765 = vld [vmem:[#allocation5 + $0x1478] sm:$0xff]
    %v766 = vld [vmem:[#allocation5 + $0x1480] sm:$0xff]
    %v767 = vld [vmem:[#allocation5 + $0x1488] sm:$0xff]
    %v768 = vld [vmem:[#allocation5 + $0x1490] sm:$0xff]
    %v769 = vld [vmem:[#allocation5 + $0x1498] sm:$0xff]
    %v770 = vld [vmem:[#allocation5 + $0x14a0] sm:$0xff]
    %v771 = vld [vmem:[#allocation5 + $0x14a8] sm:$0xff]
    %v772 = vld [vmem:[#allocation5 + $0x14b0] sm:$0xff]
    %v773 = vld [vmem:[#allocation5 + $0x14b8] sm:$0xff]
    %v774 = vld [vmem:[#allocation5 + $0x14c0] sm:$0xff]
    %v775 = vld [vmem:[#allocation5 + $0x14c8] sm:$0xff]
    %v776 = vld [vmem:[#allocation5 + $0x14d0] sm:$0xff]
    %v777 = vld [vmem:[#allocation5 + $0x14d8] sm:$0xff]
    %v778 = vld [vmem:[#allocation5 + $0x14e0] sm:$0xff]
    %v779 = vld [vmem:[#allocation5 + $0x14e8] sm:$0xff]
    %v780 = vld [vmem:[#allocation5 + $0x14f0] sm:$0xff]
    %v781 = vld [vmem:[#allocation5 + $0x14f8] sm:$0xff]
    %v782 = vld [vmem:[#allocation5 + $0x1500] sm:$0xff]
    %v783 = vld [vmem:[#allocation5 + $0x1508] sm:$0xff]
    %v784 = vld [vmem:[#allocation5 + $0x1510] sm:$0xff]
    %v785 = vld [vmem:[#allocation5 + $0x1518] sm:$0xff]
    %v786 = vld [vmem:[#allocation5 + $0x1520] sm:$0xff]
    %v787 = vld [vmem:[#allocation5 + $0x1528] sm:$0xff]
    %v788 = vld [vmem:[#allocation5 + $0x1530] sm:$0xff]
    %v789 = vld [vmem:[#allocation5 + $0x1538] sm:$0xff]
    %v790 = vld [vmem:[#allocation5 + $0x1540] sm:$0xff]
    %v791 = vld [vmem:[#allocation5 + $0x1548] sm:$0xff]
    %v792 = vld [vmem:[#allocation5 + $0x1550] sm:$0xff]
    %v793 = vld [vmem:[#allocation5 + $0x1558] sm:$0xff]
    %v794 = vld [vmem:[#allocation5 + $0x1560] sm:$0xff]
    %v795 = vld [vmem:[#allocation5 + $0x1568] sm:$0xff]
    %v796 = vld [vmem:[#allocation5 + $0x1570] sm:$0xff]
    %v797 = vld [vmem:[#allocation5 + $0x1578] sm:$0xff]
    %v798 = vld [vmem:[#allocation5 + $0x1580] sm:$0xff]
    %v799 = vld [vmem:[#allocation5 + $0x1588] sm:$0xff]
    %v800 = vld [vmem:[#allocation5 + $0x1590] sm:$0xff]
    %v801 = vld [vmem:[#allocation5 + $0x1598] sm:$0xff]
    %v802 = vld [vmem:[#allocation5 + $0x15a0] sm:$0xff]
    %v803 = vld [vmem:[#allocation5 + $0x15a8] sm:$0xff]
    %v804 = vld [vmem:[#allocation5 + $0x15b0] sm:$0xff]
    %v805 = vld [vmem:[#allocation5 + $0x15b8] sm:$0xff]
    %v806 = vld [vmem:[#allocation5 + $0x15c0] sm:$0xff]
    %v807 = vld [vmem:[#allocation5 + $0x15c8] sm:$0xff]
    %v808 = vld [vmem:[#allocation5 + $0x15d0] sm:$0xff]
    %v809 = vld [vmem:[#allocation5 + $0x15d8] sm:$0xff]
    %v810 = vld [vmem:[#allocation5 + $0x15e0] sm:$0xff]
    %v811 = vld [vmem:[#allocation5 + $0x15e8] sm:$0xff]
    %v812 = vld [vmem:[#allocation5 + $0x15f0] sm:$0xff]
    %v813 = vld [vmem:[#allocation5 + $0x15f8] sm:$0xff]
    %v814 = vld [vmem:[#allocation5 + $0x1600] sm:$0xff]
    %v815 = vld [vmem:[#allocation5 + $0x1608] sm:$0xff]
    %v816 = vld [vmem:[#allocation5 + $0x1610] sm:$0xff]
    %v817 = vld [vmem:[#allocation5 + $0x1618] sm:$0xff]
    %v818 = vld [vmem:[#allocation5 + $0x1620] sm:$0xff]
    %v819 = vld [vmem:[#allocation5 + $0x1628] sm:$0xff]
    %v820 = vld [vmem:[#allocation5 + $0x1630] sm:$0xff]
    %v821 = vld [vmem:[#allocation5 + $0x1638] sm:$0xff]
    %v822 = vld [vmem:[#allocation5 + $0x1640] sm:$0xff]
    %v823 = vld [vmem:[#allocation5 + $0x1648] sm:$0xff]
    %v824 = vld [vmem:[#allocation5 + $0x1650] sm:$0xff]
    %v825 = vld [vmem:[#allocation5 + $0x1658] sm:$0xff]
    %v826 = vld [vmem:[#allocation5 + $0x1660] sm:$0xff]
    %v827 = vld [vmem:[#allocation5 + $0x1668] sm:$0xff]
    %v828 = vld [vmem:[#allocation5 + $0x1670] sm:$0xff]
    %v829 = vld [vmem:[#allocation5 + $0x1678] sm:$0xff]
    %v830 = vld [vmem:[#allocation5 + $0x1680] sm:$0xff]
    %v831 = vld [vmem:[#allocation5 + $0x1688] sm:$0xff]
    %v832 = vld [vmem:[#allocation5 + $0x1690] sm:$0xff]
    %v833 = vld [vmem:[#allocation5 + $0x1698] sm:$0xff]
    %v834 = vld [vmem:[#allocation5 + $0x16a0] sm:$0xff]
    %v835 = vld [vmem:[#allocation5 + $0x16a8] sm:$0xff]
    %v836 = vld [vmem:[#allocation5 + $0x16b0] sm:$0xff]
    %v837 = vld [vmem:[#allocation5 + $0x16b8] sm:$0xff]
    %v838 = vld [vmem:[#allocation5 + $0x16c0] sm:$0xff]
    %v839 = vld [vmem:[#allocation5 + $0x16c8] sm:$0xff]
    %v840 = vld [vmem:[#allocation5 + $0x16d0] sm:$0xff]
    %v841 = vld [vmem:[#allocation5 + $0x16d8] sm:$0xff]
    %v842 = vld [vmem:[#allocation5 + $0x16e0] sm:$0xff]
    %v843 = vld [vmem:[#allocation5 + $0x16e8] sm:$0xff]
    %v844 = vld [vmem:[#allocation5 + $0x16f0] sm:$0xff]
    %v845 = vld [vmem:[#allocation5 + $0x16f8] sm:$0xff]
    %v846 = vld [vmem:[#allocation5 + $0x1700] sm:$0xff]
    %v847 = vld [vmem:[#allocation5 + $0x1708] sm:$0xff]
    %v848 = vld [vmem:[#allocation5 + $0x1710] sm:$0xff]
    %v849 = vld [vmem:[#allocation5 + $0x1718] sm:$0xff]
    %v850 = vld [vmem:[#allocation5 + $0x1720] sm:$0xff]
    %v851 = vld [vmem:[#allocation5 + $0x1728] sm:$0xff]
    %v852 = vld [vmem:[#allocation5 + $0x1730] sm:$0xff]
    %v853 = vld [vmem:[#allocation5 + $0x1738] sm:$0xff]
    %v854 = vld [vmem:[#allocation5 + $0x1740] sm:$0xff]
    %v855 = vld [vmem:[#allocation5 + $0x1748] sm:$0xff]
    %v856 = vld [vmem:[#allocation5 + $0x1750] sm:$0xff]
    %v857 = vld [vmem:[#allocation5 + $0x1758] sm:$0xff]
    %v858 = vld [vmem:[#allocation5 + $0x1760] sm:$0xff]
    %v859 = vld [vmem:[#allocation5 + $0x1768] sm:$0xff]
    %v860 = vld [vmem:[#allocation5 + $0x1770] sm:$0xff]
    %v861 = vld [vmem:[#allocation5 + $0x1778] sm:$0xff]
    %v862 = vld [vmem:[#allocation5 + $0x1780] sm:$0xff]
    %v863 = vld [vmem:[#allocation5 + $0x1788] sm:$0xff]
    %v864 = vld [vmem:[#allocation5 + $0x1790] sm:$0xff]
    %v865 = vld [vmem:[#allocation5 + $0x1798] sm:$0xff]
    %v866 = vld [vmem:[#allocation5 + $0x17a0] sm:$0xff]
    %v867 = vld [vmem:[#allocation5 + $0x17a8] sm:$0xff]
    %v868 = vld [vmem:[#allocation5 + $0x17b0] sm:$0xff]
    %v869 = vld [vmem:[#allocation5 + $0x17b8] sm:$0xff]
    %v870 = vld [vmem:[#allocation5 + $0x17c0] sm:$0xff]
    %v871 = vld [vmem:[#allocation5 + $0x17c8] sm:$0xff]
    %v872 = vld [vmem:[#allocation5 + $0x17d0] sm:$0xff]
    %v873 = vld [vmem:[#allocation5 + $0x17d8] sm:$0xff]
    %v874 = vld [vmem:[#allocation5 + $0x17e0] sm:$0xff]
    %v875 = vld [vmem:[#allocation5 + $0x17e8] sm:$0xff]
    %v876 = vld [vmem:[#allocation5 + $0x17f0] sm:$0xff]
    %v877 = vld [vmem:[#allocation5 + $0x17f8] sm:$0xff]
    %v878 = vld [vmem:[#allocation7] sm:$0xf]
    %v880 = vlaneseq
    %v881 = vshrl.u32 %v880, 7
    %v882 = vsub.s32 0, %v881
    %v883 = vrot.slane %v878, %v882
    %v884 = vlaneseq
    %v885 = vshrl.u32 %v884, 7
    %v886 = vsub.s32 1, %v885
    %v887 = vrot.slane %v878, %v886
    %v888 = vlaneseq
    %v889 = vshrl.u32 %v888, 7
    %v890 = vsub.s32 2, %v889
    %v891 = vrot.slane %v878, %v890
    %v892 = vlaneseq
    %v893 = vshrl.u32 %v892, 7
    %v894 = vsub.s32 3, %v893
    %v895 = vrot.slane %v878, %v894
    %v903 = vcombine.high %v107, %v107
    %v905 = vunpack.c.l.s4 1983009808
    %v906 = vunpack.c.0.s8 %v905
    %v907 = vlaneseq
    %v908 = vshrl.u32 %v907, 7
    %v909 = vsub.s32 %v906, %v908
    %v910 = vrot.slane %v107, %v909
    %v912 = vunpack.c.l.s4 1983009808
    %v913 = vunpack.c.0.s8 %v912
    %v914 = vlaneseq
    %v915 = vshrl.u32 %v914, 7
    %v916 = vsub.s32 %v913, %v915
    %v917 = vrot.slane %v903, %v916
    %v918 = vcombine.high %v910, %v910
    %v919 = vcombine.high %v917, %v917
    %v920 = vcombine.high %v108, %v108
    %v922 = vunpack.c.l.s4 1983009808
    %v923 = vunpack.c.0.s8 %v922
    %v924 = vlaneseq
    %v925 = vshrl.u32 %v924, 7
    %v926 = vsub.s32 %v923, %v925
    %v927 = vrot.slane %v108, %v926
    %v929 = vunpack.c.l.s4 1983009808
    %v930 = vunpack.c.0.s8 %v929
    %v931 = vlaneseq
    %v932 = vshrl.u32 %v931, 7
    %v933 = vsub.s32 %v930, %v932
    %v934 = vrot.slane %v920, %v933
    %v935 = vcombine.high %v927, %v927
    %v936 = vcombine.high %v934, %v934
    %v937 = vcombine.high %v109, %v109
    %v939 = vunpack.c.l.s4 1983009808
    %v940 = vunpack.c.0.s8 %v939
    %v941 = vlaneseq
    %v942 = vshrl.u32 %v941, 7
    %v943 = vsub.s32 %v940, %v942
    %v944 = vrot.slane %v109, %v943
    %v946 = vunpack.c.l.s4 1983009808
    %v947 = vunpack.c.0.s8 %v946
    %v948 = vlaneseq
    %v949 = vshrl.u32 %v948, 7
    %v950 = vsub.s32 %v947, %v949
    %v951 = vrot.slane %v937, %v950
    %v952 = vcombine.high %v944, %v944
    %v953 = vcombine.high %v951, %v951
    %966 = vmatprep.subr.mxu0 %v111
    %967 = vmatpush1.msra.mxu0 %v110
    %968 = vmatprep.subr.mxu0 %v115
    %969 = vmatpush1.msra.mxu0 %v114
    %970 = vmatprep.subr.mxu0 %v119
    %971 = vmatpush1.msra.mxu0 %v118
    %972 = vmatprep.subr.mxu0 %v123
    %973 = vmatpush1.msra.mxu0 %v122
    %974 = vmatprep.subr.mxu0 %v127
    %975 = vmatpush1.msra.mxu0 %v126
    %976 = vmatprep.subr.mxu0 %v131
    %977 = vmatpush1.msra.mxu0 %v130
    %978 = vmatprep.subr.mxu0 %v135
    %979 = vmatpush1.msra.mxu0 %v134
    %980 = vmatprep.subr.mxu0 %v139
    %981 = vmatpush1.msra.mxu0 %v138
    %982 = vmatprep.subr.mxu0 %v143
    %983 = vmatpush1.msra.mxu0 %v142
    %984 = vmatprep.subr.mxu0 %v147
    %985 = vmatpush1.msra.mxu0 %v146
    %986 = vmatprep.subr.mxu0 %v151
    %987 = vmatpush1.msra.mxu0 %v150
    %988 = vmatprep.subr.mxu0 %v155
    %989 = vmatpush1.msra.mxu0 %v154
    %990 = vmatprep.subr.mxu0 %v159
    %991 = vmatpush1.msra.mxu0 %v158
    %992 = vmatprep.subr.mxu0 %v163
    %993 = vmatpush1.msra.mxu0 %v162
    %994 = vmatprep.subr.mxu0 %v167
    %995 = vmatpush1.msra.mxu0 %v166
    %996 = vmatprep.subr.mxu0 %v171
    %997 = vmatpush1.msra.mxu0 %v170
    %998 = vmatprep.subr.mxu0 %v175
    %999 = vmatpush1.msra.mxu0 %v174
    %1000 = vmatprep.subr.mxu0 %v179
    %1001 = vmatpush1.msra.mxu0 %v178
    %1002 = vmatprep.subr.mxu0 %v183
    %1003 = vmatpush1.msra.mxu0 %v182
    %1004 = vmatprep.subr.mxu0 %v187
    %1005 = vmatpush1.msra.mxu0 %v186
    %1006 = vmatprep.subr.mxu0 %v191
    %1007 = vmatpush1.msra.mxu0 %v190
    %1008 = vmatprep.subr.mxu0 %v195
    %1009 = vmatpush1.msra.mxu0 %v194
    %1010 = vmatprep.subr.mxu0 %v199
    %1011 = vmatpush1.msra.mxu0 %v198
    %1012 = vmatprep.subr.mxu0 %v203
    %1013 = vmatpush1.msra.mxu0 %v202
    %1014 = vmatprep.subr.mxu0 %v207
    %1015 = vmatpush1.msra.mxu0 %v206
    %1016 = vmatprep.subr.mxu0 %v211
    %1017 = vmatpush1.msra.mxu0 %v210
    %1018 = vmatprep.subr.mxu0 %v215
    %1019 = vmatpush1.msra.mxu0 %v214
    %1020 = vmatprep.subr.mxu0 %v219
    %1021 = vmatpush1.msra.mxu0 %v218
    %1022 = vmatprep.subr.mxu0 %v223
    %1023 = vmatpush1.msra.mxu0 %v222
    %1024 = vmatprep.subr.mxu0 %v227
    %1025 = vmatpush1.msra.mxu0 %v226
    %1026 = vmatprep.subr.mxu0 %v231
    %1027 = vmatpush1.msra.mxu0 %v230
    %1028 = vmatprep.subr.mxu0 %v235
    %1029 = vmatpush1.msra.mxu0 %v234
    %1030 = vmatprep.mubr.f32.mxu0 %v918
    %1031 = vmatmul.mubr.f32.gmra.mrb[0].mxu0 %v910
    %v1032 = vpop.f32.mrb[0].mxu0
    %v1033 = vadd.f32 %v883, %v1032
    %v1034 = vpop.f32.mrb[0].mxu0
    %v1035 = vadd.f32 %v887, %v1034
    %1036 = vdwg.mxu0
    %1037 = vmatprep.subr.mxu0 %v239
    %1038 = vmatpush1.msra.mxu0 %v238
    %1039 = vmatprep.subr.mxu0 %v243
    %1040 = vmatpush1.msra.mxu0 %v242
    %1041 = vmatprep.subr.mxu0 %v247
    %1042 = vmatpush1.msra.mxu0 %v246
    %1043 = vmatprep.subr.mxu0 %v251
    %1044 = vmatpush1.msra.mxu0 %v250
    %1045 = vmatprep.subr.mxu0 %v255
    %1046 = vmatpush1.msra.mxu0 %v254
    %1047 = vmatprep.subr.mxu0 %v259
    %1048 = vmatpush1.msra.mxu0 %v258
    %1049 = vmatprep.subr.mxu0 %v263
    %1050 = vmatpush1.msra.mxu0 %v262
    %1051 = vmatprep.subr.mxu0 %v267
    %1052 = vmatpush1.msra.mxu0 %v266
    %1053 = vmatprep.subr.mxu0 %v271
    %1054 = vmatpush1.msra.mxu0 %v270
    %1055 = vmatprep.subr.mxu0 %v275
    %1056 = vmatpush1.msra.mxu0 %v274
    %1057 = vmatprep.subr.mxu0 %v279
    %1058 = vmatpush1.msra.mxu0 %v278
    %1059 = vmatprep.subr.mxu0 %v283
    %1060 = vmatpush1.msra.mxu0 %v282
    %1061 = vmatprep.subr.mxu0 %v287
    %1062 = vmatpush1.msra.mxu0 %v286
    %1063 = vmatprep.subr.mxu0 %v291
    %1064 = vmatpush1.msra.mxu0 %v290
    %1065 = vmatprep.subr.mxu0 %v295
    %1066 = vmatpush1.msra.mxu0 %v294
    %1067 = vmatprep.subr.mxu0 %v299
    %1068 = vmatpush1.msra.mxu0 %v298
    %1069 = vmatprep.subr.mxu0 %v303
    %1070 = vmatpush1.msra.mxu0 %v302
    %1071 = vmatprep.subr.mxu0 %v307
    %1072 = vmatpush1.msra.mxu0 %v306
    %1073 = vmatprep.subr.mxu0 %v311
    %1074 = vmatpush1.msra.mxu0 %v310
    %1075 = vmatprep.subr.mxu0 %v315
    %1076 = vmatpush1.msra.mxu0 %v314
    %1077 = vmatprep.subr.mxu0 %v319
    %1078 = vmatpush1.msra.mxu0 %v318
    %1079 = vmatprep.subr.mxu0 %v323
    %1080 = vmatpush1.msra.mxu0 %v322
    %1081 = vmatprep.subr.mxu0 %v327
    %1082 = vmatpush1.msra.mxu0 %v326
    %1083 = vmatprep.subr.mxu0 %v331
    %1084 = vmatpush1.msra.mxu0 %v330
    %1085 = vmatprep.subr.mxu0 %v335
    %1086 = vmatpush1.msra.mxu0 %v334
    %1087 = vmatprep.subr.mxu0 %v339
    %1088 = vmatpush1.msra.mxu0 %v338
    %1089 = vmatprep.subr.mxu0 %v343
    %1090 = vmatpush1.msra.mxu0 %v342
    %1091 = vmatprep.subr.mxu0 %v347
    %1092 = vmatpush1.msra.mxu0 %v346
    %1093 = vmatprep.subr.mxu0 %v351
    %1094 = vmatpush1.msra.mxu0 %v350
    %1095 = vmatprep.subr.mxu0 %v355
    %1096 = vmatpush1.msra.mxu0 %v354
    %1097 = vmatprep.subr.mxu0 %v359
    %1098 = vmatpush1.msra.mxu0 %v358
    %1099 = vmatprep.subr.mxu0 %v363
    %1100 = vmatpush1.msra.mxu0 %v362
    %1101 = vmatprep.mubr.f32.mxu0 %v919
    %1102 = vmatmul.mubr.f32.gmra.mrb[0].mxu0 %v917
    %v1103 = vpop.f32.mrb[0].mxu0
    %v1104 = vadd.f32 %v1033, %v1103
    %v1105 = vpop.f32.mrb[0].mxu0
    %v1106 = vadd.f32 %v1035, %v1105
    %1107 = vdwg.mxu0
    %1108 = vmatprep.subr.mxu0 %v367
    %1109 = vmatpush1.msra.mxu0 %v366
    %1110 = vmatprep.subr.mxu0 %v371
    %1111 = vmatpush1.msra.mxu0 %v370
    %1112 = vmatprep.subr.mxu0 %v375
    %1113 = vmatpush1.msra.mxu0 %v374
    %1114 = vmatprep.subr.mxu0 %v379
    %1115 = vmatpush1.msra.mxu0 %v378
    %1116 = vmatprep.subr.mxu0 %v383
    %1117 = vmatpush1.msra.mxu0 %v382
    %1118 = vmatprep.subr.mxu0 %v387
    %1119 = vmatpush1.msra.mxu0 %v386
    %1120 = vmatprep.subr.mxu0 %v391
    %1121 = vmatpush1.msra.mxu0 %v390
    %1122 = vmatprep.subr.mxu0 %v395
    %1123 = vmatpush1.msra.mxu0 %v394
    %1124 = vmatprep.subr.mxu0 %v399
    %1125 = vmatpush1.msra.mxu0 %v398
    %1126 = vmatprep.subr.mxu0 %v403
    %1127 = vmatpush1.msra.mxu0 %v402
    %1128 = vmatprep.subr.mxu0 %v407
    %1129 = vmatpush1.msra.mxu0 %v406
    %1130 = vmatprep.subr.mxu0 %v411
    %1131 = vmatpush1.msra.mxu0 %v410
    %1132 = vmatprep.subr.mxu0 %v415
    %1133 = vmatpush1.msra.mxu0 %v414
    %1134 = vmatprep.subr.mxu0 %v419
    %1135 = vmatpush1.msra.mxu0 %v418
    %1136 = vmatprep.subr.mxu0 %v423
    %1137 = vmatpush1.msra.mxu0 %v422
    %1138 = vmatprep.subr.mxu0 %v427
    %1139 = vmatpush1.msra.mxu0 %v426
    %1140 = vmatprep.subr.mxu0 %v431
    %1141 = vmatpush1.msra.mxu0 %v430
    %1142 = vmatprep.subr.mxu0 %v435
    %1143 = vmatpush1.msra.mxu0 %v434
    %1144 = vmatprep.subr.mxu0 %v439
    %1145 = vmatpush1.msra.mxu0 %v438
    %1146 = vmatprep.subr.mxu0 %v443
    %1147 = vmatpush1.msra.mxu0 %v442
    %1148 = vmatprep.subr.mxu0 %v447
    %1149 = vmatpush1.msra.mxu0 %v446
    %1150 = vmatprep.subr.mxu0 %v451
    %1151 = vmatpush1.msra.mxu0 %v450
    %1152 = vmatprep.subr.mxu0 %v455
    %1153 = vmatpush1.msra.mxu0 %v454
    %1154 = vmatprep.subr.mxu0 %v459
    %1155 = vmatpush1.msra.mxu0 %v458
    %1156 = vmatprep.subr.mxu0 %v463
    %1157 = vmatpush1.msra.mxu0 %v462
    %1158 = vmatprep.subr.mxu0 %v467
    %1159 = vmatpush1.msra.mxu0 %v466
    %1160 = vmatprep.subr.mxu0 %v471
    %1161 = vmatpush1.msra.mxu0 %v470
    %1162 = vmatprep.subr.mxu0 %v475
    %1163 = vmatpush1.msra.mxu0 %v474
    %1164 = vmatprep.subr.mxu0 %v479
    %1165 = vmatpush1.msra.mxu0 %v478
    %1166 = vmatprep.subr.mxu0 %v483
    %1167 = vmatpush1.msra.mxu0 %v482
    %1168 = vmatprep.subr.mxu0 %v487
    %1169 = vmatpush1.msra.mxu0 %v486
    %1170 = vmatprep.subr.mxu0 %v491
    %1171 = vmatpush1.msra.mxu0 %v490
    %1172 = vmatprep.mubr.f32.mxu0 %v935
    %1173 = vmatmul.mubr.f32.gmra.mrb[0].mxu0 %v927
    %v1174 = vpop.f32.mrb[0].mxu0
    %v1175 = vadd.f32 %v1104, %v1174
    %v1176 = vpop.f32.mrb[0].mxu0
    %v1177 = vadd.f32 %v1106, %v1176
    %1178 = vdwg.mxu0
    %1179 = vmatprep.subr.mxu0 %v495
    %1180 = vmatpush1.msra.mxu0 %v494
    %1181 = vmatprep.subr.mxu0 %v499
    %1182 = vmatpush1.msra.mxu0 %v498
    %1183 = vmatprep.subr.mxu0 %v503
    %1184 = vmatpush1.msra.mxu0 %v502
    %1185 = vmatprep.subr.mxu0 %v507
    %1186 = vmatpush1.msra.mxu0 %v506
    %1187 = vmatprep.subr.mxu0 %v511
    %1188 = vmatpush1.msra.mxu0 %v510
    %1189 = vmatprep.subr.mxu0 %v515
    %1190 = vmatpush1.msra.mxu0 %v514
    %1191 = vmatprep.subr.mxu0 %v519
    %1192 = vmatpush1.msra.mxu0 %v518
    %1193 = vmatprep.subr.mxu0 %v523
    %1194 = vmatpush1.msra.mxu0 %v522
    %1195 = vmatprep.subr.mxu0 %v527
    %1196 = vmatpush1.msra.mxu0 %v526
    %1197 = vmatprep.subr.mxu0 %v531
    %1198 = vmatpush1.msra.mxu0 %v530
    %1199 = vmatprep.subr.mxu0 %v535
    %1200 = vmatpush1.msra.mxu0 %v534
    %1201 = vmatprep.subr.mxu0 %v539
    %1202 = vmatpush1.msra.mxu0 %v538
    %1203 = vmatprep.subr.mxu0 %v543
    %1204 = vmatpush1.msra.mxu0 %v542
    %1205 = vmatprep.subr.mxu0 %v547
    %1206 = vmatpush1.msra.mxu0 %v546
    %1207 = vmatprep.subr.mxu0 %v551
    %1208 = vmatpush1.msra.mxu0 %v550
    %1209 = vmatprep.subr.mxu0 %v555
    %1210 = vmatpush1.msra.mxu0 %v554
    %1211 = vmatprep.subr.mxu0 %v559
    %1212 = vmatpush1.msra.mxu0 %v558
    %1213 = vmatprep.subr.mxu0 %v563
    %1214 = vmatpush1.msra.mxu0 %v562
    %1215 = vmatprep.subr.mxu0 %v567
    %1216 = vmatpush1.msra.mxu0 %v566
    %1217 = vmatprep.subr.mxu0 %v571
    %1218 = vmatpush1.msra.mxu0 %v570
    %1219 = vmatprep.subr.mxu0 %v575
    %1220 = vmatpush1.msra.mxu0 %v574
    %1221 = vmatprep.subr.mxu0 %v579
    %1222 = vmatpush1.msra.mxu0 %v578
    %1223 = vmatprep.subr.mxu0 %v583
    %1224 = vmatpush1.msra.mxu0 %v582
    %1225 = vmatprep.subr.mxu0 %v587
    %1226 = vmatpush1.msra.mxu0 %v586
    %1227 = vmatprep.subr.mxu0 %v591
    %1228 = vmatpush1.msra.mxu0 %v590
    %1229 = vmatprep.subr.mxu0 %v595
    %1230 = vmatpush1.msra.mxu0 %v594
    %1231 = vmatprep.subr.mxu0 %v599
    %1232 = vmatpush1.msra.mxu0 %v598
    %1233 = vmatprep.subr.mxu0 %v603
    %1234 = vmatpush1.msra.mxu0 %v602
    %1235 = vmatprep.subr.mxu0 %v607
    %1236 = vmatpush1.msra.mxu0 %v606
    %1237 = vmatprep.subr.mxu0 %v611
    %1238 = vmatpush1.msra.mxu0 %v610
    %1239 = vmatprep.subr.mxu0 %v615
    %1240 = vmatpush1.msra.mxu0 %v614
    %1241 = vmatprep.subr.mxu0 %v619
    %1242 = vmatpush1.msra.mxu0 %v618
    %1243 = vmatprep.mubr.f32.mxu0 %v936
    %1244 = vmatmul.mubr.f32.gmra.mrb[0].mxu0 %v934
    %v1245 = vpop.f32.mrb[0].mxu0
    %v1246 = vadd.f32 %v1175, %v1245
    %v1247 = vpop.f32.mrb[0].mxu0
    %v1248 = vadd.f32 %v1177, %v1247
    %1249 = vdwg.mxu0
    %1250 = vmatprep.subr.mxu0 %v623
    %1251 = vmatpush1.msra.mxu0 %v622
    %1252 = vmatprep.subr.mxu0 %v627
    %1253 = vmatpush1.msra.mxu0 %v626
    %1254 = vmatprep.subr.mxu0 %v631
    %1255 = vmatpush1.msra.mxu0 %v630
    %1256 = vmatprep.subr.mxu0 %v635
    %1257 = vmatpush1.msra.mxu0 %v634
    %1258 = vmatprep.subr.mxu0 %v639
    %1259 = vmatpush1.msra.mxu0 %v638
    %1260 = vmatprep.subr.mxu0 %v643
    %1261 = vmatpush1.msra.mxu0 %v642
    %1262 = vmatprep.subr.mxu0 %v647
    %1263 = vmatpush1.msra.mxu0 %v646
    %1264 = vmatprep.subr.mxu0 %v651
    %1265 = vmatpush1.msra.mxu0 %v650
    %1266 = vmatprep.subr.mxu0 %v655
    %1267 = vmatpush1.msra.mxu0 %v654
    %1268 = vmatprep.subr.mxu0 %v659
    %1269 = vmatpush1.msra.mxu0 %v658
    %1270 = vmatprep.subr.mxu0 %v663
    %1271 = vmatpush1.msra.mxu0 %v662
    %1272 = vmatprep.subr.mxu0 %v667
    %1273 = vmatpush1.msra.mxu0 %v666
    %1274 = vmatprep.subr.mxu0 %v671
    %1275 = vmatpush1.msra.mxu0 %v670
    %1276 = vmatprep.subr.mxu0 %v675
    %1277 = vmatpush1.msra.mxu0 %v674
    %1278 = vmatprep.subr.mxu0 %v679
    %1279 = vmatpush1.msra.mxu0 %v678
    %1280 = vmatprep.subr.mxu0 %v683
    %1281 = vmatpush1.msra.mxu0 %v682
    %1282 = vmatprep.subr.mxu0 %v687
    %1283 = vmatpush1.msra.mxu0 %v686
    %1284 = vmatprep.subr.mxu0 %v691
    %1285 = vmatpush1.msra.mxu0 %v690
    %1286 = vmatprep.subr.mxu0 %v695
    %1287 = vmatpush1.msra.mxu0 %v694
    %1288 = vmatprep.subr.mxu0 %v699
    %1289 = vmatpush1.msra.mxu0 %v698
    %1290 = vmatprep.subr.mxu0 %v703
    %1291 = vmatpush1.msra.mxu0 %v702
    %1292 = vmatprep.subr.mxu0 %v707
    %1293 = vmatpush1.msra.mxu0 %v706
    %1294 = vmatprep.subr.mxu0 %v711
    %1295 = vmatpush1.msra.mxu0 %v710
    %1296 = vmatprep.subr.mxu0 %v715
    %1297 = vmatpush1.msra.mxu0 %v714
    %1298 = vmatprep.subr.mxu0 %v719
    %1299 = vmatpush1.msra.mxu0 %v718
    %1300 = vmatprep.subr.mxu0 %v723
    %1301 = vmatpush1.msra.mxu0 %v722
    %1302 = vmatprep.subr.mxu0 %v727
    %1303 = vmatpush1.msra.mxu0 %v726
    %1304 = vmatprep.subr.mxu0 %v731
    %1305 = vmatpush1.msra.mxu0 %v730
    %1306 = vmatprep.subr.mxu0 %v735
    %1307 = vmatpush1.msra.mxu0 %v734
    %1308 = vmatprep.subr.mxu0 %v739
    %1309 = vmatpush1.msra.mxu0 %v738
    %1310 = vmatprep.subr.mxu0 %v743
    %1311 = vmatpush1.msra.mxu0 %v742
    %1312 = vmatprep.subr.mxu0 %v747
    %1313 = vmatpush1.msra.mxu0 %v746
    %1314 = vmatprep.mubr.f32.mxu0 %v952
    %1315 = vmatmul.mubr.f32.gmra.mrb[0].mxu0 %v944
    %v1316 = vpop.f32.mrb[0].mxu0
    %v1317 = vadd.f32 %v1246, %v1316
    %v1318 = vpop.f32.mrb[0].mxu0
    %v1319 = vadd.f32 %v1248, %v1318
    %1320 = vdwg.mxu0
    %1321 = vmatprep.subr.mxu0 %v751
    %1322 = vmatpush1.msra.mxu0 %v750
    %1323 = vmatprep.subr.mxu0 %v755
    %1324 = vmatpush1.msra.mxu0 %v754
    %1325 = vmatprep.subr.mxu0 %v759
    %1326 = vmatpush1.msra.mxu0 %v758
    %1327 = vmatprep.subr.mxu0 %v763
    %1328 = vmatpush1.msra.mxu0 %v762
    %1329 = vmatprep.subr.mxu0 %v767
    %1330 = vmatpush1.msra.mxu0 %v766
    %1331 = vmatprep.subr.mxu0 %v771
    %1332 = vmatpush1.msra.mxu0 %v770
    %1333 = vmatprep.subr.mxu0 %v775
    %1334 = vmatpush1.msra.mxu0 %v774
    %1335 = vmatprep.subr.mxu0 %v779
    %1336 = vmatpush1.msra.mxu0 %v778
    %1337 = vmatprep.subr.mxu0 %v783
    %1338 = vmatpush1.msra.mxu0 %v782
    %1339 = vmatprep.subr.mxu0 %v787
    %1340 = vmatpush1.msra.mxu0 %v786
    %1341 = vmatprep.subr.mxu0 %v791
    %1342 = vmatpush1.msra.mxu0 %v790
    %1343 = vmatprep.subr.mxu0 %v795
    %1344 = vmatpush1.msra.mxu0 %v794
    %1345 = vmatprep.subr.mxu0 %v799
    %1346 = vmatpush1.msra.mxu0 %v798
    %1347 = vmatprep.subr.mxu0 %v803
    %1348 = vmatpush1.msra.mxu0 %v802
    %1349 = vmatprep.subr.mxu0 %v807
    %1350 = vmatpush1.msra.mxu0 %v806
    %1351 = vmatprep.subr.mxu0 %v811
    %1352 = vmatpush1.msra.mxu0 %v810
    %1353 = vmatprep.subr.mxu0 %v815
    %1354 = vmatpush1.msra.mxu0 %v814
    %1355 = vmatprep.subr.mxu0 %v819
    %1356 = vmatpush1.msra.mxu0 %v818
    %1357 = vmatprep.subr.mxu0 %v823
    %1358 = vmatpush1.msra.mxu0 %v822
    %1359 = vmatprep.subr.mxu0 %v827
    %1360 = vmatpush1.msra.mxu0 %v826
    %1361 = vmatprep.subr.mxu0 %v831
    %1362 = vmatpush1.msra.mxu0 %v830
    %1363 = vmatprep.subr.mxu0 %v835
    %1364 = vmatpush1.msra.mxu0 %v834
    %1365 = vmatprep.subr.mxu0 %v839
    %1366 = vmatpush1.msra.mxu0 %v838
    %1367 = vmatprep.subr.mxu0 %v843
    %1368 = vmatpush1.msra.mxu0 %v842
    %1369 = vmatprep.subr.mxu0 %v847
    %1370 = vmatpush1.msra.mxu0 %v846
    %1371 = vmatprep.subr.mxu0 %v851
    %1372 = vmatpush1.msra.mxu0 %v850
    %1373 = vmatprep.subr.mxu0 %v855
    %1374 = vmatpush1.msra.mxu0 %v854
    %1375 = vmatprep.subr.mxu0 %v859
    %1376 = vmatpush1.msra.mxu0 %v858
    %1377 = vmatprep.subr.mxu0 %v863
    %1378 = vmatpush1.msra.mxu0 %v862
    %1379 = vmatprep.subr.mxu0 %v867
    %1380 = vmatpush1.msra.mxu0 %v866
    %1381 = vmatprep.subr.mxu0 %v871
    %1382 = vmatpush1.msra.mxu0 %v870
    %1383 = vmatprep.subr.mxu0 %v875
    %1384 = vmatpush1.msra.mxu0 %v874
    %1385 = vmatprep.mubr.f32.mxu0 %v953
    %1386 = vmatmul.mubr.f32.gmra.mrb[0].mxu0 %v951
    %v1387 = vpop.f32.mrb[0].mxu0
    %v1388 = vadd.f32 %v1317, %v1387
    %v1389 = vpop.f32.mrb[0].mxu0
    %v1390 = vadd.f32 %v1319, %v1389
    %1391 = vdwg.mxu0
    %1392 = vmatprep.subr.mxu0 %v113
    %1393 = vmatpush1.msra.mxu0 %v112
    %1394 = vmatprep.subr.mxu0 %v117
    %1395 = vmatpush1.msra.mxu0 %v116
    %1396 = vmatprep.subr.mxu0 %v121
    %1397 = vmatpush1.msra.mxu0 %v120
    %1398 = vmatprep.subr.mxu0 %v125
    %1399 = vmatpush1.msra.mxu0 %v124
    %1400 = vmatprep.subr.mxu0 %v129
    %1401 = vmatpush1.msra.mxu0 %v128
    %1402 = vmatprep.subr.mxu0 %v133
    %1403 = vmatpush1.msra.mxu0 %v132
    %1404 = vmatprep.subr.mxu0 %v137
    %1405 = vmatpush1.msra.mxu0 %v136
    %1406 = vmatprep.subr.mxu0 %v141
    %1407 = vmatpush1.msra.mxu0 %v140
    %1408 = vmatprep.subr.mxu0 %v145
    %1409 = vmatpush1.msra.mxu0 %v144
    %1410 = vmatprep.subr.mxu0 %v149
    %1411 = vmatpush1.msra.mxu0 %v148
    %1412 = vmatprep.subr.mxu0 %v153
    %1413 = vmatpush1.msra.mxu0 %v152
    %1414 = vmatprep.subr.mxu0 %v157
    %1415 = vmatpush1.msra.mxu0 %v156
    %1416 = vmatprep.subr.mxu0 %v161
    %1417 = vmatpush1.msra.mxu0 %v160
    %1418 = vmatprep.subr.mxu0 %v165
    %1419 = vmatpush1.msra.mxu0 %v164
    %1420 = vmatprep.subr.mxu0 %v169
    %1421 = vmatpush1.msra.mxu0 %v168
    %1422 = vmatprep.subr.mxu0 %v173
    %1423 = vmatpush1.msra.mxu0 %v172
    %1424 = vmatprep.subr.mxu0 %v177
    %1425 = vmatpush1.msra.mxu0 %v176
    %1426 = vmatprep.subr.mxu0 %v181
    %1427 = vmatpush1.msra.mxu0 %v180
    %1428 = vmatprep.subr.mxu0 %v185
    %1429 = vmatpush1.msra.mxu0 %v184
    %1430 = vmatprep.subr.mxu0 %v189
    %1431 = vmatpush1.msra.mxu0 %v188
    %1432 = vmatprep.subr.mxu0 %v193
    %1433 = vmatpush1.msra.mxu0 %v192
    %1434 = vmatprep.subr.mxu0 %v197
    %1435 = vmatpush1.msra.mxu0 %v196
    %1436 = vmatprep.subr.mxu0 %v201
    %1437 = vmatpush1.msra.mxu0 %v200
    %1438 = vmatprep.subr.mxu0 %v205
    %1439 = vmatpush1.msra.mxu0 %v204
    %1440 = vmatprep.subr.mxu0 %v209
    %1441 = vmatpush1.msra.mxu0 %v208
    %1442 = vmatprep.subr.mxu0 %v213
    %1443 = vmatpush1.msra.mxu0 %v212
    %1444 = vmatprep.subr.mxu0 %v217
    %1445 = vmatpush1.msra.mxu0 %v216
    %1446 = vmatprep.subr.mxu0 %v221
    %1447 = vmatpush1.msra.mxu0 %v220
    %1448 = vmatprep.subr.mxu0 %v225
    %1449 = vmatpush1.msra.mxu0 %v224
    %1450 = vmatprep.subr.mxu0 %v229
    %1451 = vmatpush1.msra.mxu0 %v228
    %1452 = vmatprep.subr.mxu0 %v233
    %1453 = vmatpush1.msra.mxu0 %v232
    %1454 = vmatprep.subr.mxu0 %v237
    %1455 = vmatpush1.msra.mxu0 %v236
    %1456 = vmatprep.mubr.f32.mxu0 %v918
    %1457 = vmatmul.mubr.f32.gmra.mrb[0].mxu0 %v910
    %v1458 = vpop.f32.mrb[0].mxu0
    %v1459 = vadd.f32 %v891, %v1458
    %v1460 = vpop.f32.mrb[0].mxu0
    %v1461 = vadd.f32 %v895, %v1460
    %1462 = vdwg.mxu0
    %1463 = vmatprep.subr.mxu0 %v241
    %1464 = vmatpush1.msra.mxu0 %v240
    %1465 = vmatprep.subr.mxu0 %v245
    %1466 = vmatpush1.msra.mxu0 %v244
    %1467 = vmatprep.subr.mxu0 %v249
    %1468 = vmatpush1.msra.mxu0 %v248
    %1469 = vmatprep.subr.mxu0 %v253
    %1470 = vmatpush1.msra.mxu0 %v252
    %1471 = vmatprep.subr.mxu0 %v257
    %1472 = vmatpush1.msra.mxu0 %v256
    %1473 = vmatprep.subr.mxu0 %v261
    %1474 = vmatpush1.msra.mxu0 %v260
    %1475 = vmatprep.subr.mxu0 %v265
    %1476 = vmatpush1.msra.mxu0 %v264
    %1477 = vmatprep.subr.mxu0 %v269
    %1478 = vmatpush1.msra.mxu0 %v268
    %1479 = vmatprep.subr.mxu0 %v273
    %1480 = vmatpush1.msra.mxu0 %v272
    %1481 = vmatprep.subr.mxu0 %v277
    %1482 = vmatpush1.msra.mxu0 %v276
    %1483 = vmatprep.subr.mxu0 %v281
    %1484 = vmatpush1.msra.mxu0 %v280
    %1485 = vmatprep.subr.mxu0 %v285
    %1486 = vmatpush1.msra.mxu0 %v284
    %1487 = vmatprep.subr.mxu0 %v289
    %1488 = vmatpush1.msra.mxu0 %v288
    %1489 = vmatprep.subr.mxu0 %v293
    %1490 = vmatpush1.msra.mxu0 %v292
    %1491 = vmatprep.subr.mxu0 %v297
    %1492 = vmatpush1.msra.mxu0 %v296
    %1493 = vmatprep.subr.mxu0 %v301
    %1494 = vmatpush1.msra.mxu0 %v300
    %1495 = vmatprep.subr.mxu0 %v305
    %1496 = vmatpush1.msra.mxu0 %v304
    %1497 = vmatprep.subr.mxu0 %v309
    %1498 = vmatpush1.msra.mxu0 %v308
    %1499 = vmatprep.subr.mxu0 %v313
    %1500 = vmatpush1.msra.mxu0 %v312
    %1501 = vmatprep.subr.mxu0 %v317
    %1502 = vmatpush1.msra.mxu0 %v316
    %1503 = vmatprep.subr.mxu0 %v321
    %1504 = vmatpush1.msra.mxu0 %v320
    %1505 = vmatprep.subr.mxu0 %v325
    %1506 = vmatpush1.msra.mxu0 %v324
    %1507 = vmatprep.subr.mxu0 %v329
    %1508 = vmatpush1.msra.mxu0 %v328
    %1509 = vmatprep.subr.mxu0 %v333
    %1510 = vmatpush1.msra.mxu0 %v332
    %1511 = vmatprep.subr.mxu0 %v337
    %1512 = vmatpush1.msra.mxu0 %v336
    %1513 = vmatprep.subr.mxu0 %v341
    %1514 = vmatpush1.msra.mxu0 %v340
    %1515 = vmatprep.subr.mxu0 %v345
    %1516 = vmatpush1.msra.mxu0 %v344
    %1517 = vmatprep.subr.mxu0 %v349
    %1518 = vmatpush1.msra.mxu0 %v348
    %1519 = vmatprep.subr.mxu0 %v353
    %1520 = vmatpush1.msra.mxu0 %v352
    %1521 = vmatprep.subr.mxu0 %v357
    %1522 = vmatpush1.msra.mxu0 %v356
    %1523 = vmatprep.subr.mxu0 %v361
    %1524 = vmatpush1.msra.mxu0 %v360
    %1525 = vmatprep.subr.mxu0 %v365
    %1526 = vmatpush1.msra.mxu0 %v364
    %1527 = vmatprep.mubr.f32.mxu0 %v919
    %1528 = vmatmul.mubr.f32.gmra.mrb[0].mxu0 %v917
    %v1529 = vpop.f32.mrb[0].mxu0
    %v1530 = vadd.f32 %v1459, %v1529
    %v1531 = vpop.f32.mrb[0].mxu0
    %v1532 = vadd.f32 %v1461, %v1531
    %1533 = vdwg.mxu0
    %1534 = vmatprep.subr.mxu0 %v369
    %1535 = vmatpush1.msra.mxu0 %v368
    %1536 = vmatprep.subr.mxu0 %v373
    %1537 = vmatpush1.msra.mxu0 %v372
    %1538 = vmatprep.subr.mxu0 %v377
    %1539 = vmatpush1.msra.mxu0 %v376
    %1540 = vmatprep.subr.mxu0 %v381
    %1541 = vmatpush1.msra.mxu0 %v380
    %1542 = vmatprep.subr.mxu0 %v385
    %1543 = vmatpush1.msra.mxu0 %v384
    %1544 = vmatprep.subr.mxu0 %v389
    %1545 = vmatpush1.msra.mxu0 %v388
    %1546 = vmatprep.subr.mxu0 %v393
    %1547 = vmatpush1.msra.mxu0 %v392
    %1548 = vmatprep.subr.mxu0 %v397
    %1549 = vmatpush1.msra.mxu0 %v396
    %1550 = vmatprep.subr.mxu0 %v401
    %1551 = vmatpush1.msra.mxu0 %v400
    %1552 = vmatprep.subr.mxu0 %v405
    %1553 = vmatpush1.msra.mxu0 %v404
    %1554 = vmatprep.subr.mxu0 %v409
    %1555 = vmatpush1.msra.mxu0 %v408
    %1556 = vmatprep.subr.mxu0 %v413
    %1557 = vmatpush1.msra.mxu0 %v412
    %1558 = vmatprep.subr.mxu0 %v417
    %1559 = vmatpush1.msra.mxu0 %v416
    %1560 = vmatprep.subr.mxu0 %v421
    %1561 = vmatpush1.msra.mxu0 %v420
    %1562 = vmatprep.subr.mxu0 %v425
    %1563 = vmatpush1.msra.mxu0 %v424
    %1564 = vmatprep.subr.mxu0 %v429
    %1565 = vmatpush1.msra.mxu0 %v428
    %1566 = vmatprep.subr.mxu0 %v433
    %1567 = vmatpush1.msra.mxu0 %v432
    %1568 = vmatprep.subr.mxu0 %v437
    %1569 = vmatpush1.msra.mxu0 %v436
    %1570 = vmatprep.subr.mxu0 %v441
    %1571 = vmatpush1.msra.mxu0 %v440
    %1572 = vmatprep.subr.mxu0 %v445
    %1573 = vmatpush1.msra.mxu0 %v444
    %1574 = vmatprep.subr.mxu0 %v449
    %1575 = vmatpush1.msra.mxu0 %v448
    %1576 = vmatprep.subr.mxu0 %v453
    %1577 = vmatpush1.msra.mxu0 %v452
    %1578 = vmatprep.subr.mxu0 %v457
    %1579 = vmatpush1.msra.mxu0 %v456
    %1580 = vmatprep.subr.mxu0 %v461
    %1581 = vmatpush1.msra.mxu0 %v460
    %1582 = vmatprep.subr.mxu0 %v465
    %1583 = vmatpush1.msra.mxu0 %v464
    %1584 = vmatprep.subr.mxu0 %v469
    %1585 = vmatpush1.msra.mxu0 %v468
    %1586 = vmatprep.subr.mxu0 %v473
    %1587 = vmatpush1.msra.mxu0 %v472
    %1588 = vmatprep.subr.mxu0 %v477
    %1589 = vmatpush1.msra.mxu0 %v476
    %1590 = vmatprep.subr.mxu0 %v481
    %1591 = vmatpush1.msra.mxu0 %v480
    %1592 = vmatprep.subr.mxu0 %v485
    %1593 = vmatpush1.msra.mxu0 %v484
    %1594 = vmatprep.subr.mxu0 %v489
    %1595 = vmatpush1.msra.mxu0 %v488
    %1596 = vmatprep.subr.mxu0 %v493
    %1597 = vmatpush1.msra.mxu0 %v492
    %1598 = vmatprep.mubr.f32.mxu0 %v935
    %1599 = vmatmul.mubr.f32.gmra.mrb[0].mxu0 %v927
    %v1600 = vpop.f32.mrb[0].mxu0
    %v1601 = vadd.f32 %v1530, %v1600
    %v1602 = vpop.f32.mrb[0].mxu0
    %v1603 = vadd.f32 %v1532, %v1602
    %1604 = vdwg.mxu0
    %1605 = vmatprep.subr.mxu0 %v497
    %1606 = vmatpush1.msra.mxu0 %v496
    %1607 = vmatprep.subr.mxu0 %v501
    %1608 = vmatpush1.msra.mxu0 %v500
    %1609 = vmatprep.subr.mxu0 %v505
    %1610 = vmatpush1.msra.mxu0 %v504
    %1611 = vmatprep.subr.mxu0 %v509
    %1612 = vmatpush1.msra.mxu0 %v508
    %1613 = vmatprep.subr.mxu0 %v513
    %1614 = vmatpush1.msra.mxu0 %v512
    %1615 = vmatprep.subr.mxu0 %v517
    %1616 = vmatpush1.msra.mxu0 %v516
    %1617 = vmatprep.subr.mxu0 %v521
    %1618 = vmatpush1.msra.mxu0 %v520
    %1619 = vmatprep.subr.mxu0 %v525
    %1620 = vmatpush1.msra.mxu0 %v524
    %1621 = vmatprep.subr.mxu0 %v529
    %1622 = vmatpush1.msra.mxu0 %v528
    %1623 = vmatprep.subr.mxu0 %v533
    %1624 = vmatpush1.msra.mxu0 %v532
    %1625 = vmatprep.subr.mxu0 %v537
    %1626 = vmatpush1.msra.mxu0 %v536
    %1627 = vmatprep.subr.mxu0 %v541
    %1628 = vmatpush1.msra.mxu0 %v540
    %1629 = vmatprep.subr.mxu0 %v545
    %1630 = vmatpush1.msra.mxu0 %v544
    %1631 = vmatprep.subr.mxu0 %v549
    %1632 = vmatpush1.msra.mxu0 %v548
    %1633 = vmatprep.subr.mxu0 %v553
    %1634 = vmatpush1.msra.mxu0 %v552
    %1635 = vmatprep.subr.mxu0 %v557
    %1636 = vmatpush1.msra.mxu0 %v556
    %1637 = vmatprep.subr.mxu0 %v561
    %1638 = vmatpush1.msra.mxu0 %v560
    %1639 = vmatprep.subr.mxu0 %v565
    %1640 = vmatpush1.msra.mxu0 %v564
    %1641 = vmatprep.subr.mxu0 %v569
    %1642 = vmatpush1.msra.mxu0 %v568
    %1643 = vmatprep.subr.mxu0 %v573
    %1644 = vmatpush1.msra.mxu0 %v572
    %1645 = vmatprep.subr.mxu0 %v577
    %1646 = vmatpush1.msra.mxu0 %v576
    %1647 = vmatprep.subr.mxu0 %v581
    %1648 = vmatpush1.msra.mxu0 %v580
    %1649 = vmatprep.subr.mxu0 %v585
    %1650 = vmatpush1.msra.mxu0 %v584
    %1651 = vmatprep.subr.mxu0 %v589
    %1652 = vmatpush1.msra.mxu0 %v588
    %1653 = vmatprep.subr.mxu0 %v593
    %1654 = vmatpush1.msra.mxu0 %v592
    %1655 = vmatprep.subr.mxu0 %v597
    %1656 = vmatpush1.msra.mxu0 %v596
    %1657 = vmatprep.subr.mxu0 %v601
    %1658 = vmatpush1.msra.mxu0 %v600
    %1659 = vmatprep.subr.mxu0 %v605
    %1660 = vmatpush1.msra.mxu0 %v604
    %1661 = vmatprep.subr.mxu0 %v609
    %1662 = vmatpush1.msra.mxu0 %v608
    %1663 = vmatprep.subr.mxu0 %v613
    %1664 = vmatpush1.msra.mxu0 %v612
    %1665 = vmatprep.subr.mxu0 %v617
    %1666 = vmatpush1.msra.mxu0 %v616
    %1667 = vmatprep.subr.mxu0 %v621
    %1668 = vmatpush1.msra.mxu0 %v620
    %1669 = vmatprep.mubr.f32.mxu0 %v936
    %1670 = vmatmul.mubr.f32.gmra.mrb[0].mxu0 %v934
    %v1671 = vpop.f32.mrb[0].mxu0
    %v1672 = vadd.f32 %v1601, %v1671
    %v1673 = vpop.f32.mrb[0].mxu0
    %v1674 = vadd.f32 %v1603, %v1673
    %1675 = vdwg.mxu0
    %1676 = vmatprep.subr.mxu0 %v625
    %1677 = vmatpush1.msra.mxu0 %v624
    %1678 = vmatprep.subr.mxu0 %v629
    %1679 = vmatpush1.msra.mxu0 %v628
    %1680 = vmatprep.subr.mxu0 %v633
    %1681 = vmatpush1.msra.mxu0 %v632
    %1682 = vmatprep.subr.mxu0 %v637
    %1683 = vmatpush1.msra.mxu0 %v636
    %1684 = vmatprep.subr.mxu0 %v641
    %1685 = vmatpush1.msra.mxu0 %v640
    %1686 = vmatprep.subr.mxu0 %v645
    %1687 = vmatpush1.msra.mxu0 %v644
    %1688 = vmatprep.subr.mxu0 %v649
    %1689 = vmatpush1.msra.mxu0 %v648
    %1690 = vmatprep.subr.mxu0 %v653
    %1691 = vmatpush1.msra.mxu0 %v652
    %1692 = vmatprep.subr.mxu0 %v657
    %1693 = vmatpush1.msra.mxu0 %v656
    %1694 = vmatprep.subr.mxu0 %v661
    %1695 = vmatpush1.msra.mxu0 %v660
    %1696 = vmatprep.subr.mxu0 %v665
    %1697 = vmatpush1.msra.mxu0 %v664
    %1698 = vmatprep.subr.mxu0 %v669
    %1699 = vmatpush1.msra.mxu0 %v668
    %1700 = vmatprep.subr.mxu0 %v673
    %1701 = vmatpush1.msra.mxu0 %v672
    %1702 = vmatprep.subr.mxu0 %v677
    %1703 = vmatpush1.msra.mxu0 %v676
    %1704 = vmatprep.subr.mxu0 %v681
    %1705 = vmatpush1.msra.mxu0 %v680
    %1706 = vmatprep.subr.mxu0 %v685
    %1707 = vmatpush1.msra.mxu0 %v684
    %1708 = vmatprep.subr.mxu0 %v689
    %1709 = vmatpush1.msra.mxu0 %v688
    %1710 = vmatprep.subr.mxu0 %v693
    %1711 = vmatpush1.msra.mxu0 %v692
    %1712 = vmatprep.subr.mxu0 %v697
    %1713 = vmatpush1.msra.mxu0 %v696
    %1714 = vmatprep.subr.mxu0 %v701
    %1715 = vmatpush1.msra.mxu0 %v700
    %1716 = vmatprep.subr.mxu0 %v705
    %1717 = vmatpush1.msra.mxu0 %v704
    %1718 = vmatprep.subr.mxu0 %v709
    %1719 = vmatpush1.msra.mxu0 %v708
    %1720 = vmatprep.subr.mxu0 %v713
    %1721 = vmatpush1.msra.mxu0 %v712
    %1722 = vmatprep.subr.mxu0 %v717
    %1723 = vmatpush1.msra.mxu0 %v716
    %1724 = vmatprep.subr.mxu0 %v721
    %1725 = vmatpush1.msra.mxu0 %v720
    %1726 = vmatprep.subr.mxu0 %v725
    %1727 = vmatpush1.msra.mxu0 %v724
    %1728 = vmatprep.subr.mxu0 %v729
    %1729 = vmatpush1.msra.mxu0 %v728
    %1730 = vmatprep.subr.mxu0 %v733
    %1731 = vmatpush1.msra.mxu0 %v732
    %1732 = vmatprep.subr.mxu0 %v737
    %1733 = vmatpush1.msra.mxu0 %v736
    %1734 = vmatprep.subr.mxu0 %v741
    %1735 = vmatpush1.msra.mxu0 %v740
    %1736 = vmatprep.subr.mxu0 %v745
    %1737 = vmatpush1.msra.mxu0 %v744
    %1738 = vmatprep.subr.mxu0 %v749
    %1739 = vmatpush1.msra.mxu0 %v748
    %1740 = vmatprep.mubr.f32.mxu0 %v952
    %1741 = vmatmul.mubr.f32.gmra.mrb[0].mxu0 %v944
    %v1742 = vpop.f32.mrb[0].mxu0
    %v1743 = vadd.f32 %v1672, %v1742
    %v1744 = vpop.f32.mrb[0].mxu0
    %v1745 = vadd.f32 %v1674, %v1744
    %1746 = vdwg.mxu0
    %1747 = vmatprep.subr.mxu0 %v753
    %1748 = vmatpush1.msra.mxu0 %v752
    %1749 = vmatprep.subr.mxu0 %v757
    %1750 = vmatpush1.msra.mxu0 %v756
    %1751 = vmatprep.subr.mxu0 %v761
    %1752 = vmatpush1.msra.mxu0 %v760
    %1753 = vmatprep.subr.mxu0 %v765
    %1754 = vmatpush1.msra.mxu0 %v764
    %1755 = vmatprep.subr.mxu0 %v769
    %1756 = vmatpush1.msra.mxu0 %v768
    %1757 = vmatprep.subr.mxu0 %v773
    %1758 = vmatpush1.msra.mxu0 %v772
    %1759 = vmatprep.subr.mxu0 %v777
    %1760 = vmatpush1.msra.mxu0 %v776
    %1761 = vmatprep.subr.mxu0 %v781
    %1762 = vmatpush1.msra.mxu0 %v780
    %1763 = vmatprep.subr.mxu0 %v785
    %1764 = vmatpush1.msra.mxu0 %v784
    %1765 = vmatprep.subr.mxu0 %v789
    %1766 = vmatpush1.msra.mxu0 %v788
    %1767 = vmatprep.subr.mxu0 %v793
    %1768 = vmatpush1.msra.mxu0 %v792
    %1769 = vmatprep.subr.mxu0 %v797
    %1770 = vmatpush1.msra.mxu0 %v796
    %1771 = vmatprep.subr.mxu0 %v801
    %1772 = vmatpush1.msra.mxu0 %v800
    %1773 = vmatprep.subr.mxu0 %v805
    %1774 = vmatpush1.msra.mxu0 %v804
    %1775 = vmatprep.subr.mxu0 %v809
    %1776 = vmatpush1.msra.mxu0 %v808
    %1777 = vmatprep.subr.mxu0 %v813
    %1778 = vmatpush1.msra.mxu0 %v812
    %1779 = vmatprep.subr.mxu0 %v817
    %1780 = vmatpush1.msra.mxu0 %v816
    %1781 = vmatprep.subr.mxu0 %v821
    %1782 = vmatpush1.msra.mxu0 %v820
    %1783 = vmatprep.subr.mxu0 %v825
    %1784 = vmatpush1.msra.mxu0 %v824
    %1785 = vmatprep.subr.mxu0 %v829
    %1786 = vmatpush1.msra.mxu0 %v828
    %1787 = vmatprep.subr.mxu0 %v833
    %1788 = vmatpush1.msra.mxu0 %v832
    %1789 = vmatprep.subr.mxu0 %v837
    %1790 = vmatpush1.msra.mxu0 %v836
    %1791 = vmatprep.subr.mxu0 %v841
    %1792 = vmatpush1.msra.mxu0 %v840
    %1793 = vmatprep.subr.mxu0 %v845
    %1794 = vmatpush1.msra.mxu0 %v844
    %1795 = vmatprep.subr.mxu0 %v849
    %1796 = vmatpush1.msra.mxu0 %v848
    %1797 = vmatprep.subr.mxu0 %v853
    %1798 = vmatpush1.msra.mxu0 %v852
    %1799 = vmatprep.subr.mxu0 %v857
    %1800 = vmatpush1.msra.mxu0 %v856
    %1801 = vmatprep.subr.mxu0 %v861
    %1802 = vmatpush1.msra.mxu0 %v860
    %1803 = vmatprep.subr.mxu0 %v865
    %1804 = vmatpush1.msra.mxu0 %v864
    %1805 = vmatprep.subr.mxu0 %v869
    %1806 = vmatpush1.msra.mxu0 %v868
    %1807 = vmatprep.subr.mxu0 %v873
    %1808 = vmatpush1.msra.mxu0 %v872
    %1809 = vmatprep.subr.mxu0 %v877
    %1810 = vmatpush1.msra.mxu0 %v876
    %1811 = vmatprep.mubr.f32.mxu0 %v953
    %1812 = vmatmul.mubr.f32.gmra.mrb[0].mxu0 %v951
    %v1813 = vpop.f32.mrb[0].mxu0
    %v1814 = vadd.f32 %v1743, %v1813
    %v1815 = vpop.f32.mrb[0].mxu0
    %v1816 = vadd.f32 %v1745, %v1815
    %1817 = vdwg.mxu0
    %v1818 = vmax.f32 %v1388, 0.0
    %v1819 = vmax.f32 %v1390, 0.0
    %v1820 = vmax.f32 %v1814, 0.0
    %v1821 = vmax.f32 %v1816, 0.0
    %s1822 = scalar_lea.vmem [#allocation5], 6144
    %v1823 = vld [vmem:[%s1822] sm:$0xff]
    %v1824 = vld [vmem:[%s1822 + $0x8] sm:$0xff]
    %v1825 = vld [vmem:[%s1822 + $0x10] sm:$0xff]
    %v1826 = vld [vmem:[%s1822 + $0x18] sm:$0xff]
    %v1827 = vld [vmem:[%s1822 + $0x20] sm:$0xff]
    %v1828 = vld [vmem:[%s1822 + $0x28] sm:$0xff]
    %v1829 = vld [vmem:[%s1822 + $0x30] sm:$0xff]
    %v1830 = vld [vmem:[%s1822 + $0x38] sm:$0xff]
    %v1831 = vld [vmem:[%s1822 + $0x40] sm:$0xff]
    %v1832 = vld [vmem:[%s1822 + $0x48] sm:$0xff]
    %v1833 = vld [vmem:[%s1822 + $0x50] sm:$0xff]
    %v1834 = vld [vmem:[%s1822 + $0x58] sm:$0xff]
    %v1835 = vld [vmem:[%s1822 + $0x60] sm:$0xff]
    %v1836 = vld [vmem:[%s1822 + $0x68] sm:$0xff]
    %v1837 = vld [vmem:[%s1822 + $0x70] sm:$0xff]
    %v1838 = vld [vmem:[%s1822 + $0x78] sm:$0xff]
    %v1839 = vld [vmem:[%s1822 + $0x80] sm:$0xff]
    %v1840 = vld [vmem:[%s1822 + $0x88] sm:$0xff]
    %v1841 = vld [vmem:[%s1822 + $0x90] sm:$0xff]
    %v1842 = vld [vmem:[%s1822 + $0x98] sm:$0xff]
    %v1843 = vld [vmem:[%s1822 + $0xa0] sm:$0xff]
    %v1844 = vld [vmem:[%s1822 + $0xa8] sm:$0xff]
    %v1845 = vld [vmem:[%s1822 + $0xb0] sm:$0xff]
    %v1846 = vld [vmem:[%s1822 + $0xb8] sm:$0xff]
    %v1847 = vld [vmem:[%s1822 + $0xc0] sm:$0xff]
    %v1848 = vld [vmem:[%s1822 + $0xc8] sm:$0xff]
    %v1849 = vld [vmem:[%s1822 + $0xd0] sm:$0xff]
    %v1850 = vld [vmem:[%s1822 + $0xd8] sm:$0xff]
    %v1851 = vld [vmem:[%s1822 + $0xe0] sm:$0xff]
    %v1852 = vld [vmem:[%s1822 + $0xe8] sm:$0xff]
    %v1853 = vld [vmem:[%s1822 + $0xf0] sm:$0xff]
    %v1854 = vld [vmem:[%s1822 + $0xf8] sm:$0xff]
    %v1855 = vld [vmem:[%s1822 + $0x100] sm:$0xff]
    %v1856 = vld [vmem:[%s1822 + $0x108] sm:$0xff]
    %v1857 = vld [vmem:[%s1822 + $0x110] sm:$0xff]
    %v1858 = vld [vmem:[%s1822 + $0x118] sm:$0xff]
    %v1859 = vld [vmem:[%s1822 + $0x120] sm:$0xff]
    %v1860 = vld [vmem:[%s1822 + $0x128] sm:$0xff]
    %v1861 = vld [vmem:[%s1822 + $0x130] sm:$0xff]
    %v1862 = vld [vmem:[%s1822 + $0x138] sm:$0xff]
    %v1863 = vld [vmem:[%s1822 + $0x140] sm:$0xff]
    %v1864 = vld [vmem:[%s1822 + $0x148] sm:$0xff]
    %v1865 = vld [vmem:[%s1822 + $0x150] sm:$0xff]
    %v1866 = vld [vmem:[%s1822 + $0x158] sm:$0xff]
    %v1867 = vld [vmem:[%s1822 + $0x160] sm:$0xff]
    %v1868 = vld [vmem:[%s1822 + $0x168] sm:$0xff]
    %v1869 = vld [vmem:[%s1822 + $0x170] sm:$0xff]
    %v1870 = vld [vmem:[%s1822 + $0x178] sm:$0xff]
    %v1871 = vld [vmem:[%s1822 + $0x180] sm:$0xff]
    %v1872 = vld [vmem:[%s1822 + $0x188] sm:$0xff]
    %v1873 = vld [vmem:[%s1822 + $0x190] sm:$0xff]
    %v1874 = vld [vmem:[%s1822 + $0x198] sm:$0xff]
    %v1875 = vld [vmem:[%s1822 + $0x1a0] sm:$0xff]
    %v1876 = vld [vmem:[%s1822 + $0x1a8] sm:$0xff]
    %v1877 = vld [vmem:[%s1822 + $0x1b0] sm:$0xff]
    %v1878 = vld [vmem:[%s1822 + $0x1b8] sm:$0xff]
    %v1879 = vld [vmem:[%s1822 + $0x1c0] sm:$0xff]
    %v1880 = vld [vmem:[%s1822 + $0x1c8] sm:$0xff]
    %v1881 = vld [vmem:[%s1822 + $0x1d0] sm:$0xff]
    %v1882 = vld [vmem:[%s1822 + $0x1d8] sm:$0xff]
    %v1883 = vld [vmem:[%s1822 + $0x1e0] sm:$0xff]
    %v1884 = vld [vmem:[%s1822 + $0x1e8] sm:$0xff]
    %v1885 = vld [vmem:[%s1822 + $0x1f0] sm:$0xff]
    %v1886 = vld [vmem:[%s1822 + $0x1f8] sm:$0xff]
    %v1887 = vld [vmem:[%s1822 + $0x200] sm:$0xff]
    %v1888 = vld [vmem:[%s1822 + $0x208] sm:$0xff]
    %v1889 = vld [vmem:[%s1822 + $0x210] sm:$0xff]
    %v1890 = vld [vmem:[%s1822 + $0x218] sm:$0xff]
    %v1891 = vld [vmem:[%s1822 + $0x220] sm:$0xff]
    %v1892 = vld [vmem:[%s1822 + $0x228] sm:$0xff]
    %v1893 = vld [vmem:[%s1822 + $0x230] sm:$0xff]
    %v1894 = vld [vmem:[%s1822 + $0x238] sm:$0xff]
    %v1895 = vld [vmem:[%s1822 + $0x240] sm:$0xff]
    %v1896 = vld [vmem:[%s1822 + $0x248] sm:$0xff]
    %v1897 = vld [vmem:[%s1822 + $0x250] sm:$0xff]
    %v1898 = vld [vmem:[%s1822 + $0x258] sm:$0xff]
    %v1899 = vld [vmem:[%s1822 + $0x260] sm:$0xff]
    %v1900 = vld [vmem:[%s1822 + $0x268] sm:$0xff]
    %v1901 = vld [vmem:[%s1822 + $0x270] sm:$0xff]
    %v1902 = vld [vmem:[%s1822 + $0x278] sm:$0xff]
    %v1903 = vld [vmem:[%s1822 + $0x280] sm:$0xff]
    %v1904 = vld [vmem:[%s1822 + $0x288] sm:$0xff]
    %v1905 = vld [vmem:[%s1822 + $0x290] sm:$0xff]
    %v1906 = vld [vmem:[%s1822 + $0x298] sm:$0xff]
    %v1907 = vld [vmem:[%s1822 + $0x2a0] sm:$0xff]
    %v1908 = vld [vmem:[%s1822 + $0x2a8] sm:$0xff]
    %v1909 = vld [vmem:[%s1822 + $0x2b0] sm:$0xff]
    %v1910 = vld [vmem:[%s1822 + $0x2b8] sm:$0xff]
    %v1911 = vld [vmem:[%s1822 + $0x2c0] sm:$0xff]
    %v1912 = vld [vmem:[%s1822 + $0x2c8] sm:$0xff]
    %v1913 = vld [vmem:[%s1822 + $0x2d0] sm:$0xff]
    %v1914 = vld [vmem:[%s1822 + $0x2d8] sm:$0xff]
    %v1915 = vld [vmem:[%s1822 + $0x2e0] sm:$0xff]
    %v1916 = vld [vmem:[%s1822 + $0x2e8] sm:$0xff]
    %v1917 = vld [vmem:[%s1822 + $0x2f0] sm:$0xff]
    %v1918 = vld [vmem:[%s1822 + $0x2f8] sm:$0xff]
    %v1919 = vld [vmem:[%s1822 + $0x300] sm:$0xff]
    %v1920 = vld [vmem:[%s1822 + $0x308] sm:$0xff]
    %v1921 = vld [vmem:[%s1822 + $0x310] sm:$0xff]
    %v1922 = vld [vmem:[%s1822 + $0x318] sm:$0xff]
    %v1923 = vld [vmem:[%s1822 + $0x320] sm:$0xff]
    %v1924 = vld [vmem:[%s1822 + $0x328] sm:$0xff]
    %v1925 = vld [vmem:[%s1822 + $0x330] sm:$0xff]
    %v1926 = vld [vmem:[%s1822 + $0x338] sm:$0xff]
    %v1927 = vld [vmem:[%s1822 + $0x340] sm:$0xff]
    %v1928 = vld [vmem:[%s1822 + $0x348] sm:$0xff]
    %v1929 = vld [vmem:[%s1822 + $0x350] sm:$0xff]
    %v1930 = vld [vmem:[%s1822 + $0x358] sm:$0xff]
    %v1931 = vld [vmem:[%s1822 + $0x360] sm:$0xff]
    %v1932 = vld [vmem:[%s1822 + $0x368] sm:$0xff]
    %v1933 = vld [vmem:[%s1822 + $0x370] sm:$0xff]
    %v1934 = vld [vmem:[%s1822 + $0x378] sm:$0xff]
    %v1935 = vld [vmem:[%s1822 + $0x380] sm:$0xff]
    %v1936 = vld [vmem:[%s1822 + $0x388] sm:$0xff]
    %v1937 = vld [vmem:[%s1822 + $0x390] sm:$0xff]
    %v1938 = vld [vmem:[%s1822 + $0x398] sm:$0xff]
    %v1939 = vld [vmem:[%s1822 + $0x3a0] sm:$0xff]
    %v1940 = vld [vmem:[%s1822 + $0x3a8] sm:$0xff]
    %v1941 = vld [vmem:[%s1822 + $0x3b0] sm:$0xff]
    %v1942 = vld [vmem:[%s1822 + $0x3b8] sm:$0xff]
    %v1943 = vld [vmem:[%s1822 + $0x3c0] sm:$0xff]
    %v1944 = vld [vmem:[%s1822 + $0x3c8] sm:$0xff]
    %v1945 = vld [vmem:[%s1822 + $0x3d0] sm:$0xff]
    %v1946 = vld [vmem:[%s1822 + $0x3d8] sm:$0xff]
    %v1947 = vld [vmem:[%s1822 + $0x3e0] sm:$0xff]
    %v1948 = vld [vmem:[%s1822 + $0x3e8] sm:$0xff]
    %v1949 = vld [vmem:[%s1822 + $0x3f0] sm:$0xff]
    %v1950 = vld [vmem:[%s1822 + $0x3f8] sm:$0xff]
    %v1951 = vld [vmem:[%s1822 + $0x400] sm:$0xff]
    %v1952 = vld [vmem:[%s1822 + $0x408] sm:$0xff]
    %v1953 = vld [vmem:[%s1822 + $0x410] sm:$0xff]
    %v1954 = vld [vmem:[%s1822 + $0x418] sm:$0xff]
    %v1955 = vld [vmem:[%s1822 + $0x420] sm:$0xff]
    %v1956 = vld [vmem:[%s1822 + $0x428] sm:$0xff]
    %v1957 = vld [vmem:[%s1822 + $0x430] sm:$0xff]
    %v1958 = vld [vmem:[%s1822 + $0x438] sm:$0xff]
    %v1959 = vld [vmem:[%s1822 + $0x440] sm:$0xff]
    %v1960 = vld [vmem:[%s1822 + $0x448] sm:$0xff]
    %v1961 = vld [vmem:[%s1822 + $0x450] sm:$0xff]
    %v1962 = vld [vmem:[%s1822 + $0x458] sm:$0xff]
    %v1963 = vld [vmem:[%s1822 + $0x460] sm:$0xff]
    %v1964 = vld [vmem:[%s1822 + $0x468] sm:$0xff]
    %v1965 = vld [vmem:[%s1822 + $0x470] sm:$0xff]
    %v1966 = vld [vmem:[%s1822 + $0x478] sm:$0xff]
    %v1967 = vld [vmem:[%s1822 + $0x480] sm:$0xff]
    %v1968 = vld [vmem:[%s1822 + $0x488] sm:$0xff]
    %v1969 = vld [vmem:[%s1822 + $0x490] sm:$0xff]
    %v1970 = vld [vmem:[%s1822 + $0x498] sm:$0xff]
    %v1971 = vld [vmem:[%s1822 + $0x4a0] sm:$0xff]
    %v1972 = vld [vmem:[%s1822 + $0x4a8] sm:$0xff]
    %v1973 = vld [vmem:[%s1822 + $0x4b0] sm:$0xff]
    %v1974 = vld [vmem:[%s1822 + $0x4b8] sm:$0xff]
    %v1975 = vld [vmem:[%s1822 + $0x4c0] sm:$0xff]
    %v1976 = vld [vmem:[%s1822 + $0x4c8] sm:$0xff]
    %v1977 = vld [vmem:[%s1822 + $0x4d0] sm:$0xff]
    %v1978 = vld [vmem:[%s1822 + $0x4d8] sm:$0xff]
    %v1979 = vld [vmem:[%s1822 + $0x4e0] sm:$0xff]
    %v1980 = vld [vmem:[%s1822 + $0x4e8] sm:$0xff]
    %v1981 = vld [vmem:[%s1822 + $0x4f0] sm:$0xff]
    %v1982 = vld [vmem:[%s1822 + $0x4f8] sm:$0xff]
    %v1983 = vld [vmem:[%s1822 + $0x500] sm:$0xff]
    %v1984 = vld [vmem:[%s1822 + $0x508] sm:$0xff]
    %v1985 = vld [vmem:[%s1822 + $0x510] sm:$0xff]
    %v1986 = vld [vmem:[%s1822 + $0x518] sm:$0xff]
    %v1987 = vld [vmem:[%s1822 + $0x520] sm:$0xff]
    %v1988 = vld [vmem:[%s1822 + $0x528] sm:$0xff]
    %v1989 = vld [vmem:[%s1822 + $0x530] sm:$0xff]
    %v1990 = vld [vmem:[%s1822 + $0x538] sm:$0xff]
    %v1991 = vld [vmem:[%s1822 + $0x540] sm:$0xff]
    %v1992 = vld [vmem:[%s1822 + $0x548] sm:$0xff]
    %v1993 = vld [vmem:[%s1822 + $0x550] sm:$0xff]
    %v1994 = vld [vmem:[%s1822 + $0x558] sm:$0xff]
    %v1995 = vld [vmem:[%s1822 + $0x560] sm:$0xff]
    %v1996 = vld [vmem:[%s1822 + $0x568] sm:$0xff]
    %v1997 = vld [vmem:[%s1822 + $0x570] sm:$0xff]
    %v1998 = vld [vmem:[%s1822 + $0x578] sm:$0xff]
    %v1999 = vld [vmem:[%s1822 + $0x580] sm:$0xff]
    %v2000 = vld [vmem:[%s1822 + $0x588] sm:$0xff]
    %v2001 = vld [vmem:[%s1822 + $0x590] sm:$0xff]
    %v2002 = vld [vmem:[%s1822 + $0x598] sm:$0xff]
    %v2003 = vld [vmem:[%s1822 + $0x5a0] sm:$0xff]
    %v2004 = vld [vmem:[%s1822 + $0x5a8] sm:$0xff]
    %v2005 = vld [vmem:[%s1822 + $0x5b0] sm:$0xff]
    %v2006 = vld [vmem:[%s1822 + $0x5b8] sm:$0xff]
    %v2007 = vld [vmem:[%s1822 + $0x5c0] sm:$0xff]
    %v2008 = vld [vmem:[%s1822 + $0x5c8] sm:$0xff]
    %v2009 = vld [vmem:[%s1822 + $0x5d0] sm:$0xff]
    %v2010 = vld [vmem:[%s1822 + $0x5d8] sm:$0xff]
    %v2011 = vld [vmem:[%s1822 + $0x5e0] sm:$0xff]
    %v2012 = vld [vmem:[%s1822 + $0x5e8] sm:$0xff]
    %v2013 = vld [vmem:[%s1822 + $0x5f0] sm:$0xff]
    %v2014 = vld [vmem:[%s1822 + $0x5f8] sm:$0xff]
    %v2015 = vld [vmem:[%s1822 + $0x600] sm:$0xff]
    %v2016 = vld [vmem:[%s1822 + $0x608] sm:$0xff]
    %v2017 = vld [vmem:[%s1822 + $0x610] sm:$0xff]
    %v2018 = vld [vmem:[%s1822 + $0x618] sm:$0xff]
    %v2019 = vld [vmem:[%s1822 + $0x620] sm:$0xff]
    %v2020 = vld [vmem:[%s1822 + $0x628] sm:$0xff]
    %v2021 = vld [vmem:[%s1822 + $0x630] sm:$0xff]
    %v2022 = vld [vmem:[%s1822 + $0x638] sm:$0xff]
    %v2023 = vld [vmem:[%s1822 + $0x640] sm:$0xff]
    %v2024 = vld [vmem:[%s1822 + $0x648] sm:$0xff]
    %v2025 = vld [vmem:[%s1822 + $0x650] sm:$0xff]
    %v2026 = vld [vmem:[%s1822 + $0x658] sm:$0xff]
    %v2027 = vld [vmem:[%s1822 + $0x660] sm:$0xff]
    %v2028 = vld [vmem:[%s1822 + $0x668] sm:$0xff]
    %v2029 = vld [vmem:[%s1822 + $0x670] sm:$0xff]
    %v2030 = vld [vmem:[%s1822 + $0x678] sm:$0xff]
    %v2031 = vld [vmem:[%s1822 + $0x680] sm:$0xff]
    %v2032 = vld [vmem:[%s1822 + $0x688] sm:$0xff]
    %v2033 = vld [vmem:[%s1822 + $0x690] sm:$0xff]
    %v2034 = vld [vmem:[%s1822 + $0x698] sm:$0xff]
    %v2035 = vld [vmem:[%s1822 + $0x6a0] sm:$0xff]
    %v2036 = vld [vmem:[%s1822 + $0x6a8] sm:$0xff]
    %v2037 = vld [vmem:[%s1822 + $0x6b0] sm:$0xff]
    %v2038 = vld [vmem:[%s1822 + $0x6b8] sm:$0xff]
    %v2039 = vld [vmem:[%s1822 + $0x6c0] sm:$0xff]
    %v2040 = vld [vmem:[%s1822 + $0x6c8] sm:$0xff]
    %v2041 = vld [vmem:[%s1822 + $0x6d0] sm:$0xff]
    %v2042 = vld [vmem:[%s1822 + $0x6d8] sm:$0xff]
    %v2043 = vld [vmem:[%s1822 + $0x6e0] sm:$0xff]
    %v2044 = vld [vmem:[%s1822 + $0x6e8] sm:$0xff]
    %v2045 = vld [vmem:[%s1822 + $0x6f0] sm:$0xff]
    %v2046 = vld [vmem:[%s1822 + $0x6f8] sm:$0xff]
    %v2047 = vld [vmem:[%s1822 + $0x700] sm:$0xff]
    %v2048 = vld [vmem:[%s1822 + $0x708] sm:$0xff]
    %v2049 = vld [vmem:[%s1822 + $0x710] sm:$0xff]
    %v2050 = vld [vmem:[%s1822 + $0x718] sm:$0xff]
    %v2051 = vld [vmem:[%s1822 + $0x720] sm:$0xff]
    %v2052 = vld [vmem:[%s1822 + $0x728] sm:$0xff]
    %v2053 = vld [vmem:[%s1822 + $0x730] sm:$0xff]
    %v2054 = vld [vmem:[%s1822 + $0x738] sm:$0xff]
    %v2055 = vld [vmem:[%s1822 + $0x740] sm:$0xff]
    %v2056 = vld [vmem:[%s1822 + $0x748] sm:$0xff]
    %v2057 = vld [vmem:[%s1822 + $0x750] sm:$0xff]
    %v2058 = vld [vmem:[%s1822 + $0x758] sm:$0xff]
    %v2059 = vld [vmem:[%s1822 + $0x760] sm:$0xff]
    %v2060 = vld [vmem:[%s1822 + $0x768] sm:$0xff]
    %v2061 = vld [vmem:[%s1822 + $0x770] sm:$0xff]
    %v2062 = vld [vmem:[%s1822 + $0x778] sm:$0xff]
    %v2063 = vld [vmem:[%s1822 + $0x780] sm:$0xff]
    %v2064 = vld [vmem:[%s1822 + $0x788] sm:$0xff]
    %v2065 = vld [vmem:[%s1822 + $0x790] sm:$0xff]
    %v2066 = vld [vmem:[%s1822 + $0x798] sm:$0xff]
    %v2067 = vld [vmem:[%s1822 + $0x7a0] sm:$0xff]
    %v2068 = vld [vmem:[%s1822 + $0x7a8] sm:$0xff]
    %v2069 = vld [vmem:[%s1822 + $0x7b0] sm:$0xff]
    %v2070 = vld [vmem:[%s1822 + $0x7b8] sm:$0xff]
    %v2071 = vld [vmem:[%s1822 + $0x7c0] sm:$0xff]
    %v2072 = vld [vmem:[%s1822 + $0x7c8] sm:$0xff]
    %v2073 = vld [vmem:[%s1822 + $0x7d0] sm:$0xff]
    %v2074 = vld [vmem:[%s1822 + $0x7d8] sm:$0xff]
    %v2075 = vld [vmem:[%s1822 + $0x7e0] sm:$0xff]
    %v2076 = vld [vmem:[%s1822 + $0x7e8] sm:$0xff]
    %v2077 = vld [vmem:[%s1822 + $0x7f0] sm:$0xff]
    %v2078 = vld [vmem:[%s1822 + $0x7f8] sm:$0xff]
    %v2079 = vld [vmem:[%s1822 + $0x800] sm:$0xff]
    %v2080 = vld [vmem:[%s1822 + $0x808] sm:$0xff]
    %v2081 = vld [vmem:[%s1822 + $0x810] sm:$0xff]
    %v2082 = vld [vmem:[%s1822 + $0x818] sm:$0xff]
    %v2083 = vld [vmem:[%s1822 + $0x820] sm:$0xff]
    %v2084 = vld [vmem:[%s1822 + $0x828] sm:$0xff]
    %v2085 = vld [vmem:[%s1822 + $0x830] sm:$0xff]
    %v2086 = vld [vmem:[%s1822 + $0x838] sm:$0xff]
    %v2087 = vld [vmem:[%s1822 + $0x840] sm:$0xff]
    %v2088 = vld [vmem:[%s1822 + $0x848] sm:$0xff]
    %v2089 = vld [vmem:[%s1822 + $0x850] sm:$0xff]
    %v2090 = vld [vmem:[%s1822 + $0x858] sm:$0xff]
    %v2091 = vld [vmem:[%s1822 + $0x860] sm:$0xff]
    %v2092 = vld [vmem:[%s1822 + $0x868] sm:$0xff]
    %v2093 = vld [vmem:[%s1822 + $0x870] sm:$0xff]
    %v2094 = vld [vmem:[%s1822 + $0x878] sm:$0xff]
    %v2095 = vld [vmem:[%s1822 + $0x880] sm:$0xff]
    %v2096 = vld [vmem:[%s1822 + $0x888] sm:$0xff]
    %v2097 = vld [vmem:[%s1822 + $0x890] sm:$0xff]
    %v2098 = vld [vmem:[%s1822 + $0x898] sm:$0xff]
    %v2099 = vld [vmem:[%s1822 + $0x8a0] sm:$0xff]
    %v2100 = vld [vmem:[%s1822 + $0x8a8] sm:$0xff]
    %v2101 = vld [vmem:[%s1822 + $0x8b0] sm:$0xff]
    %v2102 = vld [vmem:[%s1822 + $0x8b8] sm:$0xff]
    %v2103 = vld [vmem:[%s1822 + $0x8c0] sm:$0xff]
    %v2104 = vld [vmem:[%s1822 + $0x8c8] sm:$0xff]
    %v2105 = vld [vmem:[%s1822 + $0x8d0] sm:$0xff]
    %v2106 = vld [vmem:[%s1822 + $0x8d8] sm:$0xff]
    %v2107 = vld [vmem:[%s1822 + $0x8e0] sm:$0xff]
    %v2108 = vld [vmem:[%s1822 + $0x8e8] sm:$0xff]
    %v2109 = vld [vmem:[%s1822 + $0x8f0] sm:$0xff]
    %v2110 = vld [vmem:[%s1822 + $0x8f8] sm:$0xff]
    %v2111 = vld [vmem:[%s1822 + $0x900] sm:$0xff]
    %v2112 = vld [vmem:[%s1822 + $0x908] sm:$0xff]
    %v2113 = vld [vmem:[%s1822 + $0x910] sm:$0xff]
    %v2114 = vld [vmem:[%s1822 + $0x918] sm:$0xff]
    %v2115 = vld [vmem:[%s1822 + $0x920] sm:$0xff]
    %v2116 = vld [vmem:[%s1822 + $0x928] sm:$0xff]
    %v2117 = vld [vmem:[%s1822 + $0x930] sm:$0xff]
    %v2118 = vld [vmem:[%s1822 + $0x938] sm:$0xff]
    %v2119 = vld [vmem:[%s1822 + $0x940] sm:$0xff]
    %v2120 = vld [vmem:[%s1822 + $0x948] sm:$0xff]
    %v2121 = vld [vmem:[%s1822 + $0x950] sm:$0xff]
    %v2122 = vld [vmem:[%s1822 + $0x958] sm:$0xff]
    %v2123 = vld [vmem:[%s1822 + $0x960] sm:$0xff]
    %v2124 = vld [vmem:[%s1822 + $0x968] sm:$0xff]
    %v2125 = vld [vmem:[%s1822 + $0x970] sm:$0xff]
    %v2126 = vld [vmem:[%s1822 + $0x978] sm:$0xff]
    %v2127 = vld [vmem:[%s1822 + $0x980] sm:$0xff]
    %v2128 = vld [vmem:[%s1822 + $0x988] sm:$0xff]
    %v2129 = vld [vmem:[%s1822 + $0x990] sm:$0xff]
    %v2130 = vld [vmem:[%s1822 + $0x998] sm:$0xff]
    %v2131 = vld [vmem:[%s1822 + $0x9a0] sm:$0xff]
    %v2132 = vld [vmem:[%s1822 + $0x9a8] sm:$0xff]
    %v2133 = vld [vmem:[%s1822 + $0x9b0] sm:$0xff]
    %v2134 = vld [vmem:[%s1822 + $0x9b8] sm:$0xff]
    %v2135 = vld [vmem:[%s1822 + $0x9c0] sm:$0xff]
    %v2136 = vld [vmem:[%s1822 + $0x9c8] sm:$0xff]
    %v2137 = vld [vmem:[%s1822 + $0x9d0] sm:$0xff]
    %v2138 = vld [vmem:[%s1822 + $0x9d8] sm:$0xff]
    %v2139 = vld [vmem:[%s1822 + $0x9e0] sm:$0xff]
    %v2140 = vld [vmem:[%s1822 + $0x9e8] sm:$0xff]
    %v2141 = vld [vmem:[%s1822 + $0x9f0] sm:$0xff]
    %v2142 = vld [vmem:[%s1822 + $0x9f8] sm:$0xff]
    %v2143 = vld [vmem:[%s1822 + $0xa00] sm:$0xff]
    %v2144 = vld [vmem:[%s1822 + $0xa08] sm:$0xff]
    %v2145 = vld [vmem:[%s1822 + $0xa10] sm:$0xff]
    %v2146 = vld [vmem:[%s1822 + $0xa18] sm:$0xff]
    %v2147 = vld [vmem:[%s1822 + $0xa20] sm:$0xff]
    %v2148 = vld [vmem:[%s1822 + $0xa28] sm:$0xff]
    %v2149 = vld [vmem:[%s1822 + $0xa30] sm:$0xff]
    %v2150 = vld [vmem:[%s1822 + $0xa38] sm:$0xff]
    %v2151 = vld [vmem:[%s1822 + $0xa40] sm:$0xff]
    %v2152 = vld [vmem:[%s1822 + $0xa48] sm:$0xff]
    %v2153 = vld [vmem:[%s1822 + $0xa50] sm:$0xff]
    %v2154 = vld [vmem:[%s1822 + $0xa58] sm:$0xff]
    %v2155 = vld [vmem:[%s1822 + $0xa60] sm:$0xff]
    %v2156 = vld [vmem:[%s1822 + $0xa68] sm:$0xff]
    %v2157 = vld [vmem:[%s1822 + $0xa70] sm:$0xff]
    %v2158 = vld [vmem:[%s1822 + $0xa78] sm:$0xff]
    %v2159 = vld [vmem:[%s1822 + $0xa80] sm:$0xff]
    %v2160 = vld [vmem:[%s1822 + $0xa88] sm:$0xff]
    %v2161 = vld [vmem:[%s1822 + $0xa90] sm:$0xff]
    %v2162 = vld [vmem:[%s1822 + $0xa98] sm:$0xff]
    %v2163 = vld [vmem:[%s1822 + $0xaa0] sm:$0xff]
    %v2164 = vld [vmem:[%s1822 + $0xaa8] sm:$0xff]
    %v2165 = vld [vmem:[%s1822 + $0xab0] sm:$0xff]
    %v2166 = vld [vmem:[%s1822 + $0xab8] sm:$0xff]
    %v2167 = vld [vmem:[%s1822 + $0xac0] sm:$0xff]
    %v2168 = vld [vmem:[%s1822 + $0xac8] sm:$0xff]
    %v2169 = vld [vmem:[%s1822 + $0xad0] sm:$0xff]
    %v2170 = vld [vmem:[%s1822 + $0xad8] sm:$0xff]
    %v2171 = vld [vmem:[%s1822 + $0xae0] sm:$0xff]
    %v2172 = vld [vmem:[%s1822 + $0xae8] sm:$0xff]
    %v2173 = vld [vmem:[%s1822 + $0xaf0] sm:$0xff]
    %v2174 = vld [vmem:[%s1822 + $0xaf8] sm:$0xff]
    %v2175 = vld [vmem:[%s1822 + $0xb00] sm:$0xff]
    %v2176 = vld [vmem:[%s1822 + $0xb08] sm:$0xff]
    %v2177 = vld [vmem:[%s1822 + $0xb10] sm:$0xff]
    %v2178 = vld [vmem:[%s1822 + $0xb18] sm:$0xff]
    %v2179 = vld [vmem:[%s1822 + $0xb20] sm:$0xff]
    %v2180 = vld [vmem:[%s1822 + $0xb28] sm:$0xff]
    %v2181 = vld [vmem:[%s1822 + $0xb30] sm:$0xff]
    %v2182 = vld [vmem:[%s1822 + $0xb38] sm:$0xff]
    %v2183 = vld [vmem:[%s1822 + $0xb40] sm:$0xff]
    %v2184 = vld [vmem:[%s1822 + $0xb48] sm:$0xff]
    %v2185 = vld [vmem:[%s1822 + $0xb50] sm:$0xff]
    %v2186 = vld [vmem:[%s1822 + $0xb58] sm:$0xff]
    %v2187 = vld [vmem:[%s1822 + $0xb60] sm:$0xff]
    %v2188 = vld [vmem:[%s1822 + $0xb68] sm:$0xff]
    %v2189 = vld [vmem:[%s1822 + $0xb70] sm:$0xff]
    %v2190 = vld [vmem:[%s1822 + $0xb78] sm:$0xff]
    %v2191 = vld [vmem:[%s1822 + $0xb80] sm:$0xff]
    %v2192 = vld [vmem:[%s1822 + $0xb88] sm:$0xff]
    %v2193 = vld [vmem:[%s1822 + $0xb90] sm:$0xff]
    %v2194 = vld [vmem:[%s1822 + $0xb98] sm:$0xff]
    %v2195 = vld [vmem:[%s1822 + $0xba0] sm:$0xff]
    %v2196 = vld [vmem:[%s1822 + $0xba8] sm:$0xff]
    %v2197 = vld [vmem:[%s1822 + $0xbb0] sm:$0xff]
    %v2198 = vld [vmem:[%s1822 + $0xbb8] sm:$0xff]
    %v2199 = vld [vmem:[%s1822 + $0xbc0] sm:$0xff]
    %v2200 = vld [vmem:[%s1822 + $0xbc8] sm:$0xff]
    %v2201 = vld [vmem:[%s1822 + $0xbd0] sm:$0xff]
    %v2202 = vld [vmem:[%s1822 + $0xbd8] sm:$0xff]
    %v2203 = vld [vmem:[%s1822 + $0xbe0] sm:$0xff]
    %v2204 = vld [vmem:[%s1822 + $0xbe8] sm:$0xff]
    %v2205 = vld [vmem:[%s1822 + $0xbf0] sm:$0xff]
    %v2206 = vld [vmem:[%s1822 + $0xbf8] sm:$0xff]
    %v2207 = vld [vmem:[%s1822 + $0xc00] sm:$0xff]
    %v2208 = vld [vmem:[%s1822 + $0xc08] sm:$0xff]
    %v2209 = vld [vmem:[%s1822 + $0xc10] sm:$0xff]
    %v2210 = vld [vmem:[%s1822 + $0xc18] sm:$0xff]
    %v2211 = vld [vmem:[%s1822 + $0xc20] sm:$0xff]
    %v2212 = vld [vmem:[%s1822 + $0xc28] sm:$0xff]
    %v2213 = vld [vmem:[%s1822 + $0xc30] sm:$0xff]
    %v2214 = vld [vmem:[%s1822 + $0xc38] sm:$0xff]
    %v2215 = vld [vmem:[%s1822 + $0xc40] sm:$0xff]
    %v2216 = vld [vmem:[%s1822 + $0xc48] sm:$0xff]
    %v2217 = vld [vmem:[%s1822 + $0xc50] sm:$0xff]
    %v2218 = vld [vmem:[%s1822 + $0xc58] sm:$0xff]
    %v2219 = vld [vmem:[%s1822 + $0xc60] sm:$0xff]
    %v2220 = vld [vmem:[%s1822 + $0xc68] sm:$0xff]
    %v2221 = vld [vmem:[%s1822 + $0xc70] sm:$0xff]
    %v2222 = vld [vmem:[%s1822 + $0xc78] sm:$0xff]
    %v2223 = vld [vmem:[%s1822 + $0xc80] sm:$0xff]
    %v2224 = vld [vmem:[%s1822 + $0xc88] sm:$0xff]
    %v2225 = vld [vmem:[%s1822 + $0xc90] sm:$0xff]
    %v2226 = vld [vmem:[%s1822 + $0xc98] sm:$0xff]
    %v2227 = vld [vmem:[%s1822 + $0xca0] sm:$0xff]
    %v2228 = vld [vmem:[%s1822 + $0xca8] sm:$0xff]
    %v2229 = vld [vmem:[%s1822 + $0xcb0] sm:$0xff]
    %v2230 = vld [vmem:[%s1822 + $0xcb8] sm:$0xff]
    %v2231 = vld [vmem:[%s1822 + $0xcc0] sm:$0xff]
    %v2232 = vld [vmem:[%s1822 + $0xcc8] sm:$0xff]
    %v2233 = vld [vmem:[%s1822 + $0xcd0] sm:$0xff]
    %v2234 = vld [vmem:[%s1822 + $0xcd8] sm:$0xff]
    %v2235 = vld [vmem:[%s1822 + $0xce0] sm:$0xff]
    %v2236 = vld [vmem:[%s1822 + $0xce8] sm:$0xff]
    %v2237 = vld [vmem:[%s1822 + $0xcf0] sm:$0xff]
    %v2238 = vld [vmem:[%s1822 + $0xcf8] sm:$0xff]
    %v2239 = vld [vmem:[%s1822 + $0xd00] sm:$0xff]
    %v2240 = vld [vmem:[%s1822 + $0xd08] sm:$0xff]
    %v2241 = vld [vmem:[%s1822 + $0xd10] sm:$0xff]
    %v2242 = vld [vmem:[%s1822 + $0xd18] sm:$0xff]
    %v2243 = vld [vmem:[%s1822 + $0xd20] sm:$0xff]
    %v2244 = vld [vmem:[%s1822 + $0xd28] sm:$0xff]
    %v2245 = vld [vmem:[%s1822 + $0xd30] sm:$0xff]
    %v2246 = vld [vmem:[%s1822 + $0xd38] sm:$0xff]
    %v2247 = vld [vmem:[%s1822 + $0xd40] sm:$0xff]
    %v2248 = vld [vmem:[%s1822 + $0xd48] sm:$0xff]
    %v2249 = vld [vmem:[%s1822 + $0xd50] sm:$0xff]
    %v2250 = vld [vmem:[%s1822 + $0xd58] sm:$0xff]
    %v2251 = vld [vmem:[%s1822 + $0xd60] sm:$0xff]
    %v2252 = vld [vmem:[%s1822 + $0xd68] sm:$0xff]
    %v2253 = vld [vmem:[%s1822 + $0xd70] sm:$0xff]
    %v2254 = vld [vmem:[%s1822 + $0xd78] sm:$0xff]
    %v2255 = vld [vmem:[%s1822 + $0xd80] sm:$0xff]
    %v2256 = vld [vmem:[%s1822 + $0xd88] sm:$0xff]
    %v2257 = vld [vmem:[%s1822 + $0xd90] sm:$0xff]
    %v2258 = vld [vmem:[%s1822 + $0xd98] sm:$0xff]
    %v2259 = vld [vmem:[%s1822 + $0xda0] sm:$0xff]
    %v2260 = vld [vmem:[%s1822 + $0xda8] sm:$0xff]
    %v2261 = vld [vmem:[%s1822 + $0xdb0] sm:$0xff]
    %v2262 = vld [vmem:[%s1822 + $0xdb8] sm:$0xff]
    %v2263 = vld [vmem:[%s1822 + $0xdc0] sm:$0xff]
    %v2264 = vld [vmem:[%s1822 + $0xdc8] sm:$0xff]
    %v2265 = vld [vmem:[%s1822 + $0xdd0] sm:$0xff]
    %v2266 = vld [vmem:[%s1822 + $0xdd8] sm:$0xff]
    %v2267 = vld [vmem:[%s1822 + $0xde0] sm:$0xff]
    %v2268 = vld [vmem:[%s1822 + $0xde8] sm:$0xff]
    %v2269 = vld [vmem:[%s1822 + $0xdf0] sm:$0xff]
    %v2270 = vld [vmem:[%s1822 + $0xdf8] sm:$0xff]
    %v2271 = vld [vmem:[%s1822 + $0xe00] sm:$0xff]
    %v2272 = vld [vmem:[%s1822 + $0xe08] sm:$0xff]
    %v2273 = vld [vmem:[%s1822 + $0xe10] sm:$0xff]
    %v2274 = vld [vmem:[%s1822 + $0xe18] sm:$0xff]
    %v2275 = vld [vmem:[%s1822 + $0xe20] sm:$0xff]
    %v2276 = vld [vmem:[%s1822 + $0xe28] sm:$0xff]
    %v2277 = vld [vmem:[%s1822 + $0xe30] sm:$0xff]
    %v2278 = vld [vmem:[%s1822 + $0xe38] sm:$0xff]
    %v2279 = vld [vmem:[%s1822 + $0xe40] sm:$0xff]
    %v2280 = vld [vmem:[%s1822 + $0xe48] sm:$0xff]
    %v2281 = vld [vmem:[%s1822 + $0xe50] sm:$0xff]
    %v2282 = vld [vmem:[%s1822 + $0xe58] sm:$0xff]
    %v2283 = vld [vmem:[%s1822 + $0xe60] sm:$0xff]
    %v2284 = vld [vmem:[%s1822 + $0xe68] sm:$0xff]
    %v2285 = vld [vmem:[%s1822 + $0xe70] sm:$0xff]
    %v2286 = vld [vmem:[%s1822 + $0xe78] sm:$0xff]
    %v2287 = vld [vmem:[%s1822 + $0xe80] sm:$0xff]
    %v2288 = vld [vmem:[%s1822 + $0xe88] sm:$0xff]
    %v2289 = vld [vmem:[%s1822 + $0xe90] sm:$0xff]
    %v2290 = vld [vmem:[%s1822 + $0xe98] sm:$0xff]
    %v2291 = vld [vmem:[%s1822 + $0xea0] sm:$0xff]
    %v2292 = vld [vmem:[%s1822 + $0xea8] sm:$0xff]
    %v2293 = vld [vmem:[%s1822 + $0xeb0] sm:$0xff]
    %v2294 = vld [vmem:[%s1822 + $0xeb8] sm:$0xff]
    %v2295 = vld [vmem:[%s1822 + $0xec0] sm:$0xff]
    %v2296 = vld [vmem:[%s1822 + $0xec8] sm:$0xff]
    %v2297 = vld [vmem:[%s1822 + $0xed0] sm:$0xff]
    %v2298 = vld [vmem:[%s1822 + $0xed8] sm:$0xff]
    %v2299 = vld [vmem:[%s1822 + $0xee0] sm:$0xff]
    %v2300 = vld [vmem:[%s1822 + $0xee8] sm:$0xff]
    %v2301 = vld [vmem:[%s1822 + $0xef0] sm:$0xff]
    %v2302 = vld [vmem:[%s1822 + $0xef8] sm:$0xff]
    %v2303 = vld [vmem:[%s1822 + $0xf00] sm:$0xff]
    %v2304 = vld [vmem:[%s1822 + $0xf08] sm:$0xff]
    %v2305 = vld [vmem:[%s1822 + $0xf10] sm:$0xff]
    %v2306 = vld [vmem:[%s1822 + $0xf18] sm:$0xff]
    %v2307 = vld [vmem:[%s1822 + $0xf20] sm:$0xff]
    %v2308 = vld [vmem:[%s1822 + $0xf28] sm:$0xff]
    %v2309 = vld [vmem:[%s1822 + $0xf30] sm:$0xff]
    %v2310 = vld [vmem:[%s1822 + $0xf38] sm:$0xff]
    %v2311 = vld [vmem:[%s1822 + $0xf40] sm:$0xff]
    %v2312 = vld [vmem:[%s1822 + $0xf48] sm:$0xff]
    %v2313 = vld [vmem:[%s1822 + $0xf50] sm:$0xff]
    %v2314 = vld [vmem:[%s1822 + $0xf58] sm:$0xff]
    %v2315 = vld [vmem:[%s1822 + $0xf60] sm:$0xff]
    %v2316 = vld [vmem:[%s1822 + $0xf68] sm:$0xff]
    %v2317 = vld [vmem:[%s1822 + $0xf70] sm:$0xff]
    %v2318 = vld [vmem:[%s1822 + $0xf78] sm:$0xff]
    %v2319 = vld [vmem:[%s1822 + $0xf80] sm:$0xff]
    %v2320 = vld [vmem:[%s1822 + $0xf88] sm:$0xff]
    %v2321 = vld [vmem:[%s1822 + $0xf90] sm:$0xff]
    %v2322 = vld [vmem:[%s1822 + $0xf98] sm:$0xff]
    %v2323 = vld [vmem:[%s1822 + $0xfa0] sm:$0xff]
    %v2324 = vld [vmem:[%s1822 + $0xfa8] sm:$0xff]
    %v2325 = vld [vmem:[%s1822 + $0xfb0] sm:$0xff]
    %v2326 = vld [vmem:[%s1822 + $0xfb8] sm:$0xff]
    %v2327 = vld [vmem:[%s1822 + $0xfc0] sm:$0xff]
    %v2328 = vld [vmem:[%s1822 + $0xfc8] sm:$0xff]
    %v2329 = vld [vmem:[%s1822 + $0xfd0] sm:$0xff]
    %v2330 = vld [vmem:[%s1822 + $0xfd8] sm:$0xff]
    %v2331 = vld [vmem:[%s1822 + $0xfe0] sm:$0xff]
    %v2332 = vld [vmem:[%s1822 + $0xfe8] sm:$0xff]
    %v2333 = vld [vmem:[%s1822 + $0xff0] sm:$0xff]
    %v2334 = vld [vmem:[%s1822 + $0xff8] sm:$0xff]
    %v2335 = vld [vmem:[%s1822 + $0x1000] sm:$0xff]
    %v2336 = vld [vmem:[%s1822 + $0x1008] sm:$0xff]
    %v2337 = vld [vmem:[%s1822 + $0x1010] sm:$0xff]
    %v2338 = vld [vmem:[%s1822 + $0x1018] sm:$0xff]
    %v2339 = vld [vmem:[%s1822 + $0x1020] sm:$0xff]
    %v2340 = vld [vmem:[%s1822 + $0x1028] sm:$0xff]
    %v2341 = vld [vmem:[%s1822 + $0x1030] sm:$0xff]
    %v2342 = vld [vmem:[%s1822 + $0x1038] sm:$0xff]
    %v2343 = vld [vmem:[%s1822 + $0x1040] sm:$0xff]
    %v2344 = vld [vmem:[%s1822 + $0x1048] sm:$0xff]
    %v2345 = vld [vmem:[%s1822 + $0x1050] sm:$0xff]
    %v2346 = vld [vmem:[%s1822 + $0x1058] sm:$0xff]
    %v2347 = vld [vmem:[%s1822 + $0x1060] sm:$0xff]
    %v2348 = vld [vmem:[%s1822 + $0x1068] sm:$0xff]
    %v2349 = vld [vmem:[%s1822 + $0x1070] sm:$0xff]
    %v2350 = vld [vmem:[%s1822 + $0x1078] sm:$0xff]
    %v2351 = vld [vmem:[%s1822 + $0x1080] sm:$0xff]
    %v2352 = vld [vmem:[%s1822 + $0x1088] sm:$0xff]
    %v2353 = vld [vmem:[%s1822 + $0x1090] sm:$0xff]
    %v2354 = vld [vmem:[%s1822 + $0x1098] sm:$0xff]
    %v2355 = vld [vmem:[%s1822 + $0x10a0] sm:$0xff]
    %v2356 = vld [vmem:[%s1822 + $0x10a8] sm:$0xff]
    %v2357 = vld [vmem:[%s1822 + $0x10b0] sm:$0xff]
    %v2358 = vld [vmem:[%s1822 + $0x10b8] sm:$0xff]
    %v2359 = vld [vmem:[%s1822 + $0x10c0] sm:$0xff]
    %v2360 = vld [vmem:[%s1822 + $0x10c8] sm:$0xff]
    %v2361 = vld [vmem:[%s1822 + $0x10d0] sm:$0xff]
    %v2362 = vld [vmem:[%s1822 + $0x10d8] sm:$0xff]
    %v2363 = vld [vmem:[%s1822 + $0x10e0] sm:$0xff]
    %v2364 = vld [vmem:[%s1822 + $0x10e8] sm:$0xff]
    %v2365 = vld [vmem:[%s1822 + $0x10f0] sm:$0xff]
    %v2366 = vld [vmem:[%s1822 + $0x10f8] sm:$0xff]
    %v2367 = vld [vmem:[%s1822 + $0x1100] sm:$0xff]
    %v2368 = vld [vmem:[%s1822 + $0x1108] sm:$0xff]
    %v2369 = vld [vmem:[%s1822 + $0x1110] sm:$0xff]
    %v2370 = vld [vmem:[%s1822 + $0x1118] sm:$0xff]
    %v2371 = vld [vmem:[%s1822 + $0x1120] sm:$0xff]
    %v2372 = vld [vmem:[%s1822 + $0x1128] sm:$0xff]
    %v2373 = vld [vmem:[%s1822 + $0x1130] sm:$0xff]
    %v2374 = vld [vmem:[%s1822 + $0x1138] sm:$0xff]
    %v2375 = vld [vmem:[%s1822 + $0x1140] sm:$0xff]
    %v2376 = vld [vmem:[%s1822 + $0x1148] sm:$0xff]
    %v2377 = vld [vmem:[%s1822 + $0x1150] sm:$0xff]
    %v2378 = vld [vmem:[%s1822 + $0x1158] sm:$0xff]
    %v2379 = vld [vmem:[%s1822 + $0x1160] sm:$0xff]
    %v2380 = vld [vmem:[%s1822 + $0x1168] sm:$0xff]
    %v2381 = vld [vmem:[%s1822 + $0x1170] sm:$0xff]
    %v2382 = vld [vmem:[%s1822 + $0x1178] sm:$0xff]
    %v2383 = vld [vmem:[%s1822 + $0x1180] sm:$0xff]
    %v2384 = vld [vmem:[%s1822 + $0x1188] sm:$0xff]
    %v2385 = vld [vmem:[%s1822 + $0x1190] sm:$0xff]
    %v2386 = vld [vmem:[%s1822 + $0x1198] sm:$0xff]
    %v2387 = vld [vmem:[%s1822 + $0x11a0] sm:$0xff]
    %v2388 = vld [vmem:[%s1822 + $0x11a8] sm:$0xff]
    %v2389 = vld [vmem:[%s1822 + $0x11b0] sm:$0xff]
    %v2390 = vld [vmem:[%s1822 + $0x11b8] sm:$0xff]
    %v2391 = vld [vmem:[%s1822 + $0x11c0] sm:$0xff]
    %v2392 = vld [vmem:[%s1822 + $0x11c8] sm:$0xff]
    %v2393 = vld [vmem:[%s1822 + $0x11d0] sm:$0xff]
    %v2394 = vld [vmem:[%s1822 + $0x11d8] sm:$0xff]
    %v2395 = vld [vmem:[%s1822 + $0x11e0] sm:$0xff]
    %v2396 = vld [vmem:[%s1822 + $0x11e8] sm:$0xff]
    %v2397 = vld [vmem:[%s1822 + $0x11f0] sm:$0xff]
    %v2398 = vld [vmem:[%s1822 + $0x11f8] sm:$0xff]
    %v2399 = vld [vmem:[%s1822 + $0x1200] sm:$0xff]
    %v2400 = vld [vmem:[%s1822 + $0x1208] sm:$0xff]
    %v2401 = vld [vmem:[%s1822 + $0x1210] sm:$0xff]
    %v2402 = vld [vmem:[%s1822 + $0x1218] sm:$0xff]
    %v2403 = vld [vmem:[%s1822 + $0x1220] sm:$0xff]
    %v2404 = vld [vmem:[%s1822 + $0x1228] sm:$0xff]
    %v2405 = vld [vmem:[%s1822 + $0x1230] sm:$0xff]
    %v2406 = vld [vmem:[%s1822 + $0x1238] sm:$0xff]
    %v2407 = vld [vmem:[%s1822 + $0x1240] sm:$0xff]
    %v2408 = vld [vmem:[%s1822 + $0x1248] sm:$0xff]
    %v2409 = vld [vmem:[%s1822 + $0x1250] sm:$0xff]
    %v2410 = vld [vmem:[%s1822 + $0x1258] sm:$0xff]
    %v2411 = vld [vmem:[%s1822 + $0x1260] sm:$0xff]
    %v2412 = vld [vmem:[%s1822 + $0x1268] sm:$0xff]
    %v2413 = vld [vmem:[%s1822 + $0x1270] sm:$0xff]
    %v2414 = vld [vmem:[%s1822 + $0x1278] sm:$0xff]
    %v2415 = vld [vmem:[%s1822 + $0x1280] sm:$0xff]
    %v2416 = vld [vmem:[%s1822 + $0x1288] sm:$0xff]
    %v2417 = vld [vmem:[%s1822 + $0x1290] sm:$0xff]
    %v2418 = vld [vmem:[%s1822 + $0x1298] sm:$0xff]
    %v2419 = vld [vmem:[%s1822 + $0x12a0] sm:$0xff]
    %v2420 = vld [vmem:[%s1822 + $0x12a8] sm:$0xff]
    %v2421 = vld [vmem:[%s1822 + $0x12b0] sm:$0xff]
    %v2422 = vld [vmem:[%s1822 + $0x12b8] sm:$0xff]
    %v2423 = vld [vmem:[%s1822 + $0x12c0] sm:$0xff]
    %v2424 = vld [vmem:[%s1822 + $0x12c8] sm:$0xff]
    %v2425 = vld [vmem:[%s1822 + $0x12d0] sm:$0xff]
    %v2426 = vld [vmem:[%s1822 + $0x12d8] sm:$0xff]
    %v2427 = vld [vmem:[%s1822 + $0x12e0] sm:$0xff]
    %v2428 = vld [vmem:[%s1822 + $0x12e8] sm:$0xff]
    %v2429 = vld [vmem:[%s1822 + $0x12f0] sm:$0xff]
    %v2430 = vld [vmem:[%s1822 + $0x12f8] sm:$0xff]
    %v2431 = vld [vmem:[%s1822 + $0x1300] sm:$0xff]
    %v2432 = vld [vmem:[%s1822 + $0x1308] sm:$0xff]
    %v2433 = vld [vmem:[%s1822 + $0x1310] sm:$0xff]
    %v2434 = vld [vmem:[%s1822 + $0x1318] sm:$0xff]
    %v2435 = vld [vmem:[%s1822 + $0x1320] sm:$0xff]
    %v2436 = vld [vmem:[%s1822 + $0x1328] sm:$0xff]
    %v2437 = vld [vmem:[%s1822 + $0x1330] sm:$0xff]
    %v2438 = vld [vmem:[%s1822 + $0x1338] sm:$0xff]
    %v2439 = vld [vmem:[%s1822 + $0x1340] sm:$0xff]
    %v2440 = vld [vmem:[%s1822 + $0x1348] sm:$0xff]
    %v2441 = vld [vmem:[%s1822 + $0x1350] sm:$0xff]
    %v2442 = vld [vmem:[%s1822 + $0x1358] sm:$0xff]
    %v2443 = vld [vmem:[%s1822 + $0x1360] sm:$0xff]
    %v2444 = vld [vmem:[%s1822 + $0x1368] sm:$0xff]
    %v2445 = vld [vmem:[%s1822 + $0x1370] sm:$0xff]
    %v2446 = vld [vmem:[%s1822 + $0x1378] sm:$0xff]
    %v2447 = vld [vmem:[%s1822 + $0x1380] sm:$0xff]
    %v2448 = vld [vmem:[%s1822 + $0x1388] sm:$0xff]
    %v2449 = vld [vmem:[%s1822 + $0x1390] sm:$0xff]
    %v2450 = vld [vmem:[%s1822 + $0x1398] sm:$0xff]
    %v2451 = vld [vmem:[%s1822 + $0x13a0] sm:$0xff]
    %v2452 = vld [vmem:[%s1822 + $0x13a8] sm:$0xff]
    %v2453 = vld [vmem:[%s1822 + $0x13b0] sm:$0xff]
    %v2454 = vld [vmem:[%s1822 + $0x13b8] sm:$0xff]
    %v2455 = vld [vmem:[%s1822 + $0x13c0] sm:$0xff]
    %v2456 = vld [vmem:[%s1822 + $0x13c8] sm:$0xff]
    %v2457 = vld [vmem:[%s1822 + $0x13d0] sm:$0xff]
    %v2458 = vld [vmem:[%s1822 + $0x13d8] sm:$0xff]
    %v2459 = vld [vmem:[%s1822 + $0x13e0] sm:$0xff]
    %v2460 = vld [vmem:[%s1822 + $0x13e8] sm:$0xff]
    %v2461 = vld [vmem:[%s1822 + $0x13f0] sm:$0xff]
    %v2462 = vld [vmem:[%s1822 + $0x13f8] sm:$0xff]
    %v2463 = vld [vmem:[%s1822 + $0x1400] sm:$0xff]
    %v2464 = vld [vmem:[%s1822 + $0x1408] sm:$0xff]
    %v2465 = vld [vmem:[%s1822 + $0x1410] sm:$0xff]
    %v2466 = vld [vmem:[%s1822 + $0x1418] sm:$0xff]
    %v2467 = vld [vmem:[%s1822 + $0x1420] sm:$0xff]
    %v2468 = vld [vmem:[%s1822 + $0x1428] sm:$0xff]
    %v2469 = vld [vmem:[%s1822 + $0x1430] sm:$0xff]
    %v2470 = vld [vmem:[%s1822 + $0x1438] sm:$0xff]
    %v2471 = vld [vmem:[%s1822 + $0x1440] sm:$0xff]
    %v2472 = vld [vmem:[%s1822 + $0x1448] sm:$0xff]
    %v2473 = vld [vmem:[%s1822 + $0x1450] sm:$0xff]
    %v2474 = vld [vmem:[%s1822 + $0x1458] sm:$0xff]
    %v2475 = vld [vmem:[%s1822 + $0x1460] sm:$0xff]
    %v2476 = vld [vmem:[%s1822 + $0x1468] sm:$0xff]
    %v2477 = vld [vmem:[%s1822 + $0x1470] sm:$0xff]
    %v2478 = vld [vmem:[%s1822 + $0x1478] sm:$0xff]
    %v2479 = vld [vmem:[%s1822 + $0x1480] sm:$0xff]
    %v2480 = vld [vmem:[%s1822 + $0x1488] sm:$0xff]
    %v2481 = vld [vmem:[%s1822 + $0x1490] sm:$0xff]
    %v2482 = vld [vmem:[%s1822 + $0x1498] sm:$0xff]
    %v2483 = vld [vmem:[%s1822 + $0x14a0] sm:$0xff]
    %v2484 = vld [vmem:[%s1822 + $0x14a8] sm:$0xff]
    %v2485 = vld [vmem:[%s1822 + $0x14b0] sm:$0xff]
    %v2486 = vld [vmem:[%s1822 + $0x14b8] sm:$0xff]
    %v2487 = vld [vmem:[%s1822 + $0x14c0] sm:$0xff]
    %v2488 = vld [vmem:[%s1822 + $0x14c8] sm:$0xff]
    %v2489 = vld [vmem:[%s1822 + $0x14d0] sm:$0xff]
    %v2490 = vld [vmem:[%s1822 + $0x14d8] sm:$0xff]
    %v2491 = vld [vmem:[%s1822 + $0x14e0] sm:$0xff]
    %v2492 = vld [vmem:[%s1822 + $0x14e8] sm:$0xff]
    %v2493 = vld [vmem:[%s1822 + $0x14f0] sm:$0xff]
    %v2494 = vld [vmem:[%s1822 + $0x14f8] sm:$0xff]
    %v2495 = vld [vmem:[%s1822 + $0x1500] sm:$0xff]
    %v2496 = vld [vmem:[%s1822 + $0x1508] sm:$0xff]
    %v2497 = vld [vmem:[%s1822 + $0x1510] sm:$0xff]
    %v2498 = vld [vmem:[%s1822 + $0x1518] sm:$0xff]
    %v2499 = vld [vmem:[%s1822 + $0x1520] sm:$0xff]
    %v2500 = vld [vmem:[%s1822 + $0x1528] sm:$0xff]
    %v2501 = vld [vmem:[%s1822 + $0x1530] sm:$0xff]
    %v2502 = vld [vmem:[%s1822 + $0x1538] sm:$0xff]
    %v2503 = vld [vmem:[%s1822 + $0x1540] sm:$0xff]
    %v2504 = vld [vmem:[%s1822 + $0x1548] sm:$0xff]
    %v2505 = vld [vmem:[%s1822 + $0x1550] sm:$0xff]
    %v2506 = vld [vmem:[%s1822 + $0x1558] sm:$0xff]
    %v2507 = vld [vmem:[%s1822 + $0x1560] sm:$0xff]
    %v2508 = vld [vmem:[%s1822 + $0x1568] sm:$0xff]
    %v2509 = vld [vmem:[%s1822 + $0x1570] sm:$0xff]
    %v2510 = vld [vmem:[%s1822 + $0x1578] sm:$0xff]
    %v2511 = vld [vmem:[%s1822 + $0x1580] sm:$0xff]
    %v2512 = vld [vmem:[%s1822 + $0x1588] sm:$0xff]
    %v2513 = vld [vmem:[%s1822 + $0x1590] sm:$0xff]
    %v2514 = vld [vmem:[%s1822 + $0x1598] sm:$0xff]
    %v2515 = vld [vmem:[%s1822 + $0x15a0] sm:$0xff]
    %v2516 = vld [vmem:[%s1822 + $0x15a8] sm:$0xff]
    %v2517 = vld [vmem:[%s1822 + $0x15b0] sm:$0xff]
    %v2518 = vld [vmem:[%s1822 + $0x15b8] sm:$0xff]
    %v2519 = vld [vmem:[%s1822 + $0x15c0] sm:$0xff]
    %v2520 = vld [vmem:[%s1822 + $0x15c8] sm:$0xff]
    %v2521 = vld [vmem:[%s1822 + $0x15d0] sm:$0xff]
    %v2522 = vld [vmem:[%s1822 + $0x15d8] sm:$0xff]
    %v2523 = vld [vmem:[%s1822 + $0x15e0] sm:$0xff]
    %v2524 = vld [vmem:[%s1822 + $0x15e8] sm:$0xff]
    %v2525 = vld [vmem:[%s1822 + $0x15f0] sm:$0xff]
    %v2526 = vld [vmem:[%s1822 + $0x15f8] sm:$0xff]
    %v2527 = vld [vmem:[%s1822 + $0x1600] sm:$0xff]
    %v2528 = vld [vmem:[%s1822 + $0x1608] sm:$0xff]
    %v2529 = vld [vmem:[%s1822 + $0x1610] sm:$0xff]
    %v2530 = vld [vmem:[%s1822 + $0x1618] sm:$0xff]
    %v2531 = vld [vmem:[%s1822 + $0x1620] sm:$0xff]
    %v2532 = vld [vmem:[%s1822 + $0x1628] sm:$0xff]
    %v2533 = vld [vmem:[%s1822 + $0x1630] sm:$0xff]
    %v2534 = vld [vmem:[%s1822 + $0x1638] sm:$0xff]
    %v2535 = vld [vmem:[%s1822 + $0x1640] sm:$0xff]
    %v2536 = vld [vmem:[%s1822 + $0x1648] sm:$0xff]
    %v2537 = vld [vmem:[%s1822 + $0x1650] sm:$0xff]
    %v2538 = vld [vmem:[%s1822 + $0x1658] sm:$0xff]
    %v2539 = vld [vmem:[%s1822 + $0x1660] sm:$0xff]
    %v2540 = vld [vmem:[%s1822 + $0x1668] sm:$0xff]
    %v2541 = vld [vmem:[%s1822 + $0x1670] sm:$0xff]
    %v2542 = vld [vmem:[%s1822 + $0x1678] sm:$0xff]
    %v2543 = vld [vmem:[%s1822 + $0x1680] sm:$0xff]
    %v2544 = vld [vmem:[%s1822 + $0x1688] sm:$0xff]
    %v2545 = vld [vmem:[%s1822 + $0x1690] sm:$0xff]
    %v2546 = vld [vmem:[%s1822 + $0x1698] sm:$0xff]
    %v2547 = vld [vmem:[%s1822 + $0x16a0] sm:$0xff]
    %v2548 = vld [vmem:[%s1822 + $0x16a8] sm:$0xff]
    %v2549 = vld [vmem:[%s1822 + $0x16b0] sm:$0xff]
    %v2550 = vld [vmem:[%s1822 + $0x16b8] sm:$0xff]
    %v2551 = vld [vmem:[%s1822 + $0x16c0] sm:$0xff]
    %v2552 = vld [vmem:[%s1822 + $0x16c8] sm:$0xff]
    %v2553 = vld [vmem:[%s1822 + $0x16d0] sm:$0xff]
    %v2554 = vld [vmem:[%s1822 + $0x16d8] sm:$0xff]
    %v2555 = vld [vmem:[%s1822 + $0x16e0] sm:$0xff]
    %v2556 = vld [vmem:[%s1822 + $0x16e8] sm:$0xff]
    %v2557 = vld [vmem:[%s1822 + $0x16f0] sm:$0xff]
    %v2558 = vld [vmem:[%s1822 + $0x16f8] sm:$0xff]
    %v2559 = vld [vmem:[%s1822 + $0x1700] sm:$0xff]
    %v2560 = vld [vmem:[%s1822 + $0x1708] sm:$0xff]
    %v2561 = vld [vmem:[%s1822 + $0x1710] sm:$0xff]
    %v2562 = vld [vmem:[%s1822 + $0x1718] sm:$0xff]
    %v2563 = vld [vmem:[%s1822 + $0x1720] sm:$0xff]
    %v2564 = vld [vmem:[%s1822 + $0x1728] sm:$0xff]
    %v2565 = vld [vmem:[%s1822 + $0x1730] sm:$0xff]
    %v2566 = vld [vmem:[%s1822 + $0x1738] sm:$0xff]
    %v2567 = vld [vmem:[%s1822 + $0x1740] sm:$0xff]
    %v2568 = vld [vmem:[%s1822 + $0x1748] sm:$0xff]
    %v2569 = vld [vmem:[%s1822 + $0x1750] sm:$0xff]
    %v2570 = vld [vmem:[%s1822 + $0x1758] sm:$0xff]
    %v2571 = vld [vmem:[%s1822 + $0x1760] sm:$0xff]
    %v2572 = vld [vmem:[%s1822 + $0x1768] sm:$0xff]
    %v2573 = vld [vmem:[%s1822 + $0x1770] sm:$0xff]
    %v2574 = vld [vmem:[%s1822 + $0x1778] sm:$0xff]
    %v2575 = vld [vmem:[%s1822 + $0x1780] sm:$0xff]
    %v2576 = vld [vmem:[%s1822 + $0x1788] sm:$0xff]
    %v2577 = vld [vmem:[%s1822 + $0x1790] sm:$0xff]
    %v2578 = vld [vmem:[%s1822 + $0x1798] sm:$0xff]
    %v2579 = vld [vmem:[%s1822 + $0x17a0] sm:$0xff]
    %v2580 = vld [vmem:[%s1822 + $0x17a8] sm:$0xff]
    %v2581 = vld [vmem:[%s1822 + $0x17b0] sm:$0xff]
    %v2582 = vld [vmem:[%s1822 + $0x17b8] sm:$0xff]
    %v2583 = vld [vmem:[%s1822 + $0x17c0] sm:$0xff]
    %v2584 = vld [vmem:[%s1822 + $0x17c8] sm:$0xff]
    %v2585 = vld [vmem:[%s1822 + $0x17d0] sm:$0xff]
    %v2586 = vld [vmem:[%s1822 + $0x17d8] sm:$0xff]
    %v2587 = vld [vmem:[%s1822 + $0x17e0] sm:$0xff]
    %v2588 = vld [vmem:[%s1822 + $0x17e8] sm:$0xff]
    %v2589 = vld [vmem:[%s1822 + $0x17f0] sm:$0xff]
    %v2590 = vld [vmem:[%s1822 + $0x17f8] sm:$0xff]
    %s2591 = scalar_lea.vmem [#allocation7], 4
    %v2592 = vld [vmem:[%s2591] sm:$0xf]
    %v2594 = vlaneseq
    %v2595 = vshrl.u32 %v2594, 7
    %v2596 = vsub.s32 0, %v2595
    %v2597 = vrot.slane %v2592, %v2596
    %v2598 = vlaneseq
    %v2599 = vshrl.u32 %v2598, 7
    %v2600 = vsub.s32 1, %v2599
    %v2601 = vrot.slane %v2592, %v2600
    %v2602 = vlaneseq
    %v2603 = vshrl.u32 %v2602, 7
    %v2604 = vsub.s32 2, %v2603
    %v2605 = vrot.slane %v2592, %v2604
    %v2606 = vlaneseq
    %v2607 = vshrl.u32 %v2606, 7
    %v2608 = vsub.s32 3, %v2607
    %v2609 = vrot.slane %v2592, %v2608
    %2614 = vmatprep.subr.mxu0 %v1824
    %2615 = vmatpush1.msra.mxu0 %v1823
    %2616 = vmatprep.subr.mxu0 %v1828
    %2617 = vmatpush1.msra.mxu0 %v1827
    %2618 = vmatprep.subr.mxu0 %v1832
    %2619 = vmatpush1.msra.mxu0 %v1831
    %2620 = vmatprep.subr.mxu0 %v1836
    %2621 = vmatpush1.msra.mxu0 %v1835
    %2622 = vmatprep.subr.mxu0 %v1840
    %2623 = vmatpush1.msra.mxu0 %v1839
    %2624 = vmatprep.subr.mxu0 %v1844
    %2625 = vmatpush1.msra.mxu0 %v1843
    %2626 = vmatprep.subr.mxu0 %v1848
    %2627 = vmatpush1.msra.mxu0 %v1847
    %2628 = vmatprep.subr.mxu0 %v1852
    %2629 = vmatpush1.msra.mxu0 %v1851
    %2630 = vmatprep.subr.mxu0 %v1856
    %2631 = vmatpush1.msra.mxu0 %v1855
    %2632 = vmatprep.subr.mxu0 %v1860
    %2633 = vmatpush1.msra.mxu0 %v1859
    %2634 = vmatprep.subr.mxu0 %v1864
    %2635 = vmatpush1.msra.mxu0 %v1863
    %2636 = vmatprep.subr.mxu0 %v1868
    %2637 = vmatpush1.msra.mxu0 %v1867
    %2638 = vmatprep.subr.mxu0 %v1872
    %2639 = vmatpush1.msra.mxu0 %v1871
    %2640 = vmatprep.subr.mxu0 %v1876
    %2641 = vmatpush1.msra.mxu0 %v1875
    %2642 = vmatprep.subr.mxu0 %v1880
    %2643 = vmatpush1.msra.mxu0 %v1879
    %2644 = vmatprep.subr.mxu0 %v1884
    %2645 = vmatpush1.msra.mxu0 %v1883
    %2646 = vmatprep.subr.mxu0 %v1888
    %2647 = vmatpush1.msra.mxu0 %v1887
    %2648 = vmatprep.subr.mxu0 %v1892
    %2649 = vmatpush1.msra.mxu0 %v1891
    %2650 = vmatprep.subr.mxu0 %v1896
    %2651 = vmatpush1.msra.mxu0 %v1895
    %2652 = vmatprep.subr.mxu0 %v1900
    %2653 = vmatpush1.msra.mxu0 %v1899
    %2654 = vmatprep.subr.mxu0 %v1904
    %2655 = vmatpush1.msra.mxu0 %v1903
    %2656 = vmatprep.subr.mxu0 %v1908
    %2657 = vmatpush1.msra.mxu0 %v1907
    %2658 = vmatprep.subr.mxu0 %v1912
    %2659 = vmatpush1.msra.mxu0 %v1911
    %2660 = vmatprep.subr.mxu0 %v1916
    %2661 = vmatpush1.msra.mxu0 %v1915
    %2662 = vmatprep.subr.mxu0 %v1920
    %2663 = vmatpush1.msra.mxu0 %v1919
    %2664 = vmatprep.subr.mxu0 %v1924
    %2665 = vmatpush1.msra.mxu0 %v1923
    %2666 = vmatprep.subr.mxu0 %v1928
    %2667 = vmatpush1.msra.mxu0 %v1927
    %2668 = vmatprep.subr.mxu0 %v1932
    %2669 = vmatpush1.msra.mxu0 %v1931
    %2670 = vmatprep.subr.mxu0 %v1936
    %2671 = vmatpush1.msra.mxu0 %v1935
    %2672 = vmatprep.subr.mxu0 %v1940
    %2673 = vmatpush1.msra.mxu0 %v1939
    %2674 = vmatprep.subr.mxu0 %v1944
    %2675 = vmatpush1.msra.mxu0 %v1943
    %2676 = vmatprep.subr.mxu0 %v1948
    %2677 = vmatpush1.msra.mxu0 %v1947
    %2678 = vmatprep.mubr.f32.mxu0 %v918
    %2679 = vmatmul.mubr.f32.gmra.mrb[0].mxu0 %v910
    %v2680 = vpop.f32.mrb[0].mxu0
    %v2681 = vadd.f32 %v2597, %v2680
    %v2682 = vpop.f32.mrb[0].mxu0
    %v2683 = vadd.f32 %v2601, %v2682
    %2684 = vdwg.mxu0
    %2685 = vmatprep.subr.mxu0 %v1952
    %2686 = vmatpush1.msra.mxu0 %v1951
    %2687 = vmatprep.subr.mxu0 %v1956
    %2688 = vmatpush1.msra.mxu0 %v1955
    %2689 = vmatprep.subr.mxu0 %v1960
    %2690 = vmatpush1.msra.mxu0 %v1959
    %2691 = vmatprep.subr.mxu0 %v1964
    %2692 = vmatpush1.msra.mxu0 %v1963
    %2693 = vmatprep.subr.mxu0 %v1968
    %2694 = vmatpush1.msra.mxu0 %v1967
    %2695 = vmatprep.subr.mxu0 %v1972
    %2696 = vmatpush1.msra.mxu0 %v1971
    %2697 = vmatprep.subr.mxu0 %v1976
    %2698 = vmatpush1.msra.mxu0 %v1975
    %2699 = vmatprep.subr.mxu0 %v1980
    %2700 = vmatpush1.msra.mxu0 %v1979
    %2701 = vmatprep.subr.mxu0 %v1984
    %2702 = vmatpush1.msra.mxu0 %v1983
    %2703 = vmatprep.subr.mxu0 %v1988
    %2704 = vmatpush1.msra.mxu0 %v1987
    %2705 = vmatprep.subr.mxu0 %v1992
    %2706 = vmatpush1.msra.mxu0 %v1991
    %2707 = vmatprep.subr.mxu0 %v1996
    %2708 = vmatpush1.msra.mxu0 %v1995
    %2709 = vmatprep.subr.mxu0 %v2000
    %2710 = vmatpush1.msra.mxu0 %v1999
    %2711 = vmatprep.subr.mxu0 %v2004
    %2712 = vmatpush1.msra.mxu0 %v2003
    %2713 = vmatprep.subr.mxu0 %v2008
    %2714 = vmatpush1.msra.mxu0 %v2007
    %2715 = vmatprep.subr.mxu0 %v2012
    %2716 = vmatpush1.msra.mxu0 %v2011
    %2717 = vmatprep.subr.mxu0 %v2016
    %2718 = vmatpush1.msra.mxu0 %v2015
    %2719 = vmatprep.subr.mxu0 %v2020
    %2720 = vmatpush1.msra.mxu0 %v2019
    %2721 = vmatprep.subr.mxu0 %v2024
    %2722 = vmatpush1.msra.mxu0 %v2023
    %2723 = vmatprep.subr.mxu0 %v2028
    %2724 = vmatpush1.msra.mxu0 %v2027
    %2725 = vmatprep.subr.mxu0 %v2032
    %2726 = vmatpush1.msra.mxu0 %v2031
    %2727 = vmatprep.subr.mxu0 %v2036
    %2728 = vmatpush1.msra.mxu0 %v2035
    %2729 = vmatprep.subr.mxu0 %v2040
    %2730 = vmatpush1.msra.mxu0 %v2039
    %2731 = vmatprep.subr.mxu0 %v2044
    %2732 = vmatpush1.msra.mxu0 %v2043
    %2733 = vmatprep.subr.mxu0 %v2048
    %2734 = vmatpush1.msra.mxu0 %v2047
    %2735 = vmatprep.subr.mxu0 %v2052
    %2736 = vmatpush1.msra.mxu0 %v2051
    %2737 = vmatprep.subr.mxu0 %v2056
    %2738 = vmatpush1.msra.mxu0 %v2055
    %2739 = vmatprep.subr.mxu0 %v2060
    %2740 = vmatpush1.msra.mxu0 %v2059
    %2741 = vmatprep.subr.mxu0 %v2064
    %2742 = vmatpush1.msra.mxu0 %v2063
    %2743 = vmatprep.subr.mxu0 %v2068
    %2744 = vmatpush1.msra.mxu0 %v2067
    %2745 = vmatprep.subr.mxu0 %v2072
    %2746 = vmatpush1.msra.mxu0 %v2071
    %2747 = vmatprep.subr.mxu0 %v2076
    %2748 = vmatpush1.msra.mxu0 %v2075
    %2749 = vmatprep.mubr.f32.mxu0 %v919
    %2750 = vmatmul.mubr.f32.gmra.mrb[0].mxu0 %v917
    %v2751 = vpop.f32.mrb[0].mxu0
    %v2752 = vadd.f32 %v2681, %v2751
    %v2753 = vpop.f32.mrb[0].mxu0
    %v2754 = vadd.f32 %v2683, %v2753
    %2755 = vdwg.mxu0
    %2756 = vmatprep.subr.mxu0 %v2080
    %2757 = vmatpush1.msra.mxu0 %v2079
    %2758 = vmatprep.subr.mxu0 %v2084
    %2759 = vmatpush1.msra.mxu0 %v2083
    %2760 = vmatprep.subr.mxu0 %v2088
    %2761 = vmatpush1.msra.mxu0 %v2087
    %2762 = vmatprep.subr.mxu0 %v2092
    %2763 = vmatpush1.msra.mxu0 %v2091
    %2764 = vmatprep.subr.mxu0 %v2096
    %2765 = vmatpush1.msra.mxu0 %v2095
    %2766 = vmatprep.subr.mxu0 %v2100
    %2767 = vmatpush1.msra.mxu0 %v2099
    %2768 = vmatprep.subr.mxu0 %v2104
    %2769 = vmatpush1.msra.mxu0 %v2103
    %2770 = vmatprep.subr.mxu0 %v2108
    %2771 = vmatpush1.msra.mxu0 %v2107
    %2772 = vmatprep.subr.mxu0 %v2112
    %2773 = vmatpush1.msra.mxu0 %v2111
    %2774 = vmatprep.subr.mxu0 %v2116
    %2775 = vmatpush1.msra.mxu0 %v2115
    %2776 = vmatprep.subr.mxu0 %v2120
    %2777 = vmatpush1.msra.mxu0 %v2119
    %2778 = vmatprep.subr.mxu0 %v2124
    %2779 = vmatpush1.msra.mxu0 %v2123
    %2780 = vmatprep.subr.mxu0 %v2128
    %2781 = vmatpush1.msra.mxu0 %v2127
    %2782 = vmatprep.subr.mxu0 %v2132
    %2783 = vmatpush1.msra.mxu0 %v2131
    %2784 = vmatprep.subr.mxu0 %v2136
    %2785 = vmatpush1.msra.mxu0 %v2135
    %2786 = vmatprep.subr.mxu0 %v2140
    %2787 = vmatpush1.msra.mxu0 %v2139
    %2788 = vmatprep.subr.mxu0 %v2144
    %2789 = vmatpush1.msra.mxu0 %v2143
    %2790 = vmatprep.subr.mxu0 %v2148
    %2791 = vmatpush1.msra.mxu0 %v2147
    %2792 = vmatprep.subr.mxu0 %v2152
    %2793 = vmatpush1.msra.mxu0 %v2151
    %2794 = vmatprep.subr.mxu0 %v2156
    %2795 = vmatpush1.msra.mxu0 %v2155
    %2796 = vmatprep.subr.mxu0 %v2160
    %2797 = vmatpush1.msra.mxu0 %v2159
    %2798 = vmatprep.subr.mxu0 %v2164
    %2799 = vmatpush1.msra.mxu0 %v2163
    %2800 = vmatprep.subr.mxu0 %v2168
    %2801 = vmatpush1.msra.mxu0 %v2167
    %2802 = vmatprep.subr.mxu0 %v2172
    %2803 = vmatpush1.msra.mxu0 %v2171
    %2804 = vmatprep.subr.mxu0 %v2176
    %2805 = vmatpush1.msra.mxu0 %v2175
    %2806 = vmatprep.subr.mxu0 %v2180
    %2807 = vmatpush1.msra.mxu0 %v2179
    %2808 = vmatprep.subr.mxu0 %v2184
    %2809 = vmatpush1.msra.mxu0 %v2183
    %2810 = vmatprep.subr.mxu0 %v2188
    %2811 = vmatpush1.msra.mxu0 %v2187
    %2812 = vmatprep.subr.mxu0 %v2192
    %2813 = vmatpush1.msra.mxu0 %v2191
    %2814 = vmatprep.subr.mxu0 %v2196
    %2815 = vmatpush1.msra.mxu0 %v2195
    %2816 = vmatprep.subr.mxu0 %v2200
    %2817 = vmatpush1.msra.mxu0 %v2199
    %2818 = vmatprep.subr.mxu0 %v2204
    %2819 = vmatpush1.msra.mxu0 %v2203
    %2820 = vmatprep.mubr.f32.mxu0 %v935
    %2821 = vmatmul.mubr.f32.gmra.mrb[0].mxu0 %v927
    %v2822 = vpop.f32.mrb[0].mxu0
    %v2823 = vadd.f32 %v2752, %v2822
    %v2824 = vpop.f32.mrb[0].mxu0
    %v2825 = vadd.f32 %v2754, %v2824
    %2826 = vdwg.mxu0
    %2827 = vmatprep.subr.mxu0 %v2208
    %2828 = vmatpush1.msra.mxu0 %v2207
    %2829 = vmatprep.subr.mxu0 %v2212
    %2830 = vmatpush1.msra.mxu0 %v2211
    %2831 = vmatprep.subr.mxu0 %v2216
    %2832 = vmatpush1.msra.mxu0 %v2215
    %2833 = vmatprep.subr.mxu0 %v2220
    %2834 = vmatpush1.msra.mxu0 %v2219
    %2835 = vmatprep.subr.mxu0 %v2224
    %2836 = vmatpush1.msra.mxu0 %v2223
    %2837 = vmatprep.subr.mxu0 %v2228
    %2838 = vmatpush1.msra.mxu0 %v2227
    %2839 = vmatprep.subr.mxu0 %v2232
    %2840 = vmatpush1.msra.mxu0 %v2231
    %2841 = vmatprep.subr.mxu0 %v2236
    %2842 = vmatpush1.msra.mxu0 %v2235
    %2843 = vmatprep.subr.mxu0 %v2240
    %2844 = vmatpush1.msra.mxu0 %v2239
    %2845 = vmatprep.subr.mxu0 %v2244
    %2846 = vmatpush1.msra.mxu0 %v2243
    %2847 = vmatprep.subr.mxu0 %v2248
    %2848 = vmatpush1.msra.mxu0 %v2247
    %2849 = vmatprep.subr.mxu0 %v2252
    %2850 = vmatpush1.msra.mxu0 %v2251
    %2851 = vmatprep.subr.mxu0 %v2256
    %2852 = vmatpush1.msra.mxu0 %v2255
    %2853 = vmatprep.subr.mxu0 %v2260
    %2854 = vmatpush1.msra.mxu0 %v2259
    %2855 = vmatprep.subr.mxu0 %v2264
    %2856 = vmatpush1.msra.mxu0 %v2263
    %2857 = vmatprep.subr.mxu0 %v2268
    %2858 = vmatpush1.msra.mxu0 %v2267
    %2859 = vmatprep.subr.mxu0 %v2272
    %2860 = vmatpush1.msra.mxu0 %v2271
    %2861 = vmatprep.subr.mxu0 %v2276
    %2862 = vmatpush1.msra.mxu0 %v2275
    %2863 = vmatprep.subr.mxu0 %v2280
    %2864 = vmatpush1.msra.mxu0 %v2279
    %2865 = vmatprep.subr.mxu0 %v2284
    %2866 = vmatpush1.msra.mxu0 %v2283
    %2867 = vmatprep.subr.mxu0 %v2288
    %2868 = vmatpush1.msra.mxu0 %v2287
    %2869 = vmatprep.subr.mxu0 %v2292
    %2870 = vmatpush1.msra.mxu0 %v2291
    %2871 = vmatprep.subr.mxu0 %v2296
    %2872 = vmatpush1.msra.mxu0 %v2295
    %2873 = vmatprep.subr.mxu0 %v2300
    %2874 = vmatpush1.msra.mxu0 %v2299
    %2875 = vmatprep.subr.mxu0 %v2304
    %2876 = vmatpush1.msra.mxu0 %v2303
    %2877 = vmatprep.subr.mxu0 %v2308
    %2878 = vmatpush1.msra.mxu0 %v2307
    %2879 = vmatprep.subr.mxu0 %v2312
    %2880 = vmatpush1.msra.mxu0 %v2311
    %2881 = vmatprep.subr.mxu0 %v2316
    %2882 = vmatpush1.msra.mxu0 %v2315
    %2883 = vmatprep.subr.mxu0 %v2320
    %2884 = vmatpush1.msra.mxu0 %v2319
    %2885 = vmatprep.subr.mxu0 %v2324
    %2886 = vmatpush1.msra.mxu0 %v2323
    %2887 = vmatprep.subr.mxu0 %v2328
    %2888 = vmatpush1.msra.mxu0 %v2327
    %2889 = vmatprep.subr.mxu0 %v2332
    %2890 = vmatpush1.msra.mxu0 %v2331
    %2891 = vmatprep.mubr.f32.mxu0 %v936
    %2892 = vmatmul.mubr.f32.gmra.mrb[0].mxu0 %v934
    %v2893 = vpop.f32.mrb[0].mxu0
    %v2894 = vadd.f32 %v2823, %v2893
    %v2895 = vpop.f32.mrb[0].mxu0
    %v2896 = vadd.f32 %v2825, %v2895
    %2897 = vdwg.mxu0
    %2898 = vmatprep.subr.mxu0 %v2336
    %2899 = vmatpush1.msra.mxu0 %v2335
    %2900 = vmatprep.subr.mxu0 %v2340
    %2901 = vmatpush1.msra.mxu0 %v2339
    %2902 = vmatprep.subr.mxu0 %v2344
    %2903 = vmatpush1.msra.mxu0 %v2343
    %2904 = vmatprep.subr.mxu0 %v2348
    %2905 = vmatpush1.msra.mxu0 %v2347
    %2906 = vmatprep.subr.mxu0 %v2352
    %2907 = vmatpush1.msra.mxu0 %v2351
    %2908 = vmatprep.subr.mxu0 %v2356
    %2909 = vmatpush1.msra.mxu0 %v2355
    %2910 = vmatprep.subr.mxu0 %v2360
    %2911 = vmatpush1.msra.mxu0 %v2359
    %2912 = vmatprep.subr.mxu0 %v2364
    %2913 = vmatpush1.msra.mxu0 %v2363
    %2914 = vmatprep.subr.mxu0 %v2368
    %2915 = vmatpush1.msra.mxu0 %v2367
    %2916 = vmatprep.subr.mxu0 %v2372
    %2917 = vmatpush1.msra.mxu0 %v2371
    %2918 = vmatprep.subr.mxu0 %v2376
    %2919 = vmatpush1.msra.mxu0 %v2375
    %2920 = vmatprep.subr.mxu0 %v2380
    %2921 = vmatpush1.msra.mxu0 %v2379
    %2922 = vmatprep.subr.mxu0 %v2384
    %2923 = vmatpush1.msra.mxu0 %v2383
    %2924 = vmatprep.subr.mxu0 %v2388
    %2925 = vmatpush1.msra.mxu0 %v2387
    %2926 = vmatprep.subr.mxu0 %v2392
    %2927 = vmatpush1.msra.mxu0 %v2391
    %2928 = vmatprep.subr.mxu0 %v2396
    %2929 = vmatpush1.msra.mxu0 %v2395
    %2930 = vmatprep.subr.mxu0 %v2400
    %2931 = vmatpush1.msra.mxu0 %v2399
    %2932 = vmatprep.subr.mxu0 %v2404
    %2933 = vmatpush1.msra.mxu0 %v2403
    %2934 = vmatprep.subr.mxu0 %v2408
    %2935 = vmatpush1.msra.mxu0 %v2407
    %2936 = vmatprep.subr.mxu0 %v2412
    %2937 = vmatpush1.msra.mxu0 %v2411
    %2938 = vmatprep.subr.mxu0 %v2416
    %2939 = vmatpush1.msra.mxu0 %v2415
    %2940 = vmatprep.subr.mxu0 %v2420
    %2941 = vmatpush1.msra.mxu0 %v2419
    %2942 = vmatprep.subr.mxu0 %v2424
    %2943 = vmatpush1.msra.mxu0 %v2423
    %2944 = vmatprep.subr.mxu0 %v2428
    %2945 = vmatpush1.msra.mxu0 %v2427
    %2946 = vmatprep.subr.mxu0 %v2432
    %2947 = vmatpush1.msra.mxu0 %v2431
    %2948 = vmatprep.subr.mxu0 %v2436
    %2949 = vmatpush1.msra.mxu0 %v2435
    %2950 = vmatprep.subr.mxu0 %v2440
    %2951 = vmatpush1.msra.mxu0 %v2439
    %2952 = vmatprep.subr.mxu0 %v2444
    %2953 = vmatpush1.msra.mxu0 %v2443
    %2954 = vmatprep.subr.mxu0 %v2448
    %2955 = vmatpush1.msra.mxu0 %v2447
    %2956 = vmatprep.subr.mxu0 %v2452
    %2957 = vmatpush1.msra.mxu0 %v2451
    %2958 = vmatprep.subr.mxu0 %v2456
    %2959 = vmatpush1.msra.mxu0 %v2455
    %2960 = vmatprep.subr.mxu0 %v2460
    %2961 = vmatpush1.msra.mxu0 %v2459
    %2962 = vmatprep.mubr.f32.mxu0 %v952
    %2963 = vmatmul.mubr.f32.gmra.mrb[0].mxu0 %v944
    %v2964 = vpop.f32.mrb[0].mxu0
    %v2965 = vadd.f32 %v2894, %v2964
    %v2966 = vpop.f32.mrb[0].mxu0
    %v2967 = vadd.f32 %v2896, %v2966
    %2968 = vdwg.mxu0
    %2969 = vmatprep.subr.mxu0 %v2464
    %2970 = vmatpush1.msra.mxu0 %v2463
    %2971 = vmatprep.subr.mxu0 %v2468
    %2972 = vmatpush1.msra.mxu0 %v2467
    %2973 = vmatprep.subr.mxu0 %v2472
    %2974 = vmatpush1.msra.mxu0 %v2471
    %2975 = vmatprep.subr.mxu0 %v2476
    %2976 = vmatpush1.msra.mxu0 %v2475
    %2977 = vmatprep.subr.mxu0 %v2480
    %2978 = vmatpush1.msra.mxu0 %v2479
    %2979 = vmatprep.subr.mxu0 %v2484
    %2980 = vmatpush1.msra.mxu0 %v2483
    %2981 = vmatprep.subr.mxu0 %v2488
    %2982 = vmatpush1.msra.mxu0 %v2487
    %2983 = vmatprep.subr.mxu0 %v2492
    %2984 = vmatpush1.msra.mxu0 %v2491
    %2985 = vmatprep.subr.mxu0 %v2496
    %2986 = vmatpush1.msra.mxu0 %v2495
    %2987 = vmatprep.subr.mxu0 %v2500
    %2988 = vmatpush1.msra.mxu0 %v2499
    %2989 = vmatprep.subr.mxu0 %v2504
    %2990 = vmatpush1.msra.mxu0 %v2503
    %2991 = vmatprep.subr.mxu0 %v2508
    %2992 = vmatpush1.msra.mxu0 %v2507
    %2993 = vmatprep.subr.mxu0 %v2512
    %2994 = vmatpush1.msra.mxu0 %v2511
    %2995 = vmatprep.subr.mxu0 %v2516
    %2996 = vmatpush1.msra.mxu0 %v2515
    %2997 = vmatprep.subr.mxu0 %v2520
    %2998 = vmatpush1.msra.mxu0 %v2519
    %2999 = vmatprep.subr.mxu0 %v2524
    %3000 = vmatpush1.msra.mxu0 %v2523
    %3001 = vmatprep.subr.mxu0 %v2528
    %3002 = vmatpush1.msra.mxu0 %v2527
    %3003 = vmatprep.subr.mxu0 %v2532
    %3004 = vmatpush1.msra.mxu0 %v2531
    %3005 = vmatprep.subr.mxu0 %v2536
    %3006 = vmatpush1.msra.mxu0 %v2535
    %3007 = vmatprep.subr.mxu0 %v2540
    %3008 = vmatpush1.msra.mxu0 %v2539
    %3009 = vmatprep.subr.mxu0 %v2544
    %3010 = vmatpush1.msra.mxu0 %v2543
    %3011 = vmatprep.subr.mxu0 %v2548
    %3012 = vmatpush1.msra.mxu0 %v2547
    %3013 = vmatprep.subr.mxu0 %v2552
    %3014 = vmatpush1.msra.mxu0 %v2551
    %3015 = vmatprep.subr.mxu0 %v2556
    %3016 = vmatpush1.msra.mxu0 %v2555
    %3017 = vmatprep.subr.mxu0 %v2560
    %3018 = vmatpush1.msra.mxu0 %v2559
    %3019 = vmatprep.subr.mxu0 %v2564
    %3020 = vmatpush1.msra.mxu0 %v2563
    %3021 = vmatprep.subr.mxu0 %v2568
    %3022 = vmatpush1.msra.mxu0 %v2567
    %3023 = vmatprep.subr.mxu0 %v2572
    %3024 = vmatpush1.msra.mxu0 %v2571
    %3025 = vmatprep.subr.mxu0 %v2576
    %3026 = vmatpush1.msra.mxu0 %v2575
    %3027 = vmatprep.subr.mxu0 %v2580
    %3028 = vmatpush1.msra.mxu0 %v2579
    %3029 = vmatprep.subr.mxu0 %v2584
    %3030 = vmatpush1.msra.mxu0 %v2583
    %3031 = vmatprep.subr.mxu0 %v2588
    %3032 = vmatpush1.msra.mxu0 %v2587
    %3033 = vmatprep.mubr.f32.mxu0 %v953
    %3034 = vmatmul.mubr.f32.gmra.mrb[0].mxu0 %v951
    %v3035 = vpop.f32.mrb[0].mxu0
    %v3036 = vadd.f32 %v2965, %v3035
    %v3037 = vpop.f32.mrb[0].mxu0
    %v3038 = vadd.f32 %v2967, %v3037
    %3039 = vdwg.mxu0
    %3040 = vmatprep.subr.mxu0 %v1826
    %3041 = vmatpush1.msra.mxu0 %v1825
    %3042 = vmatprep.subr.mxu0 %v1830
    %3043 = vmatpush1.msra.mxu0 %v1829
    %3044 = vmatprep.subr.mxu0 %v1834
    %3045 = vmatpush1.msra.mxu0 %v1833
    %3046 = vmatprep.subr.mxu0 %v1838
    %3047 = vmatpush1.msra.mxu0 %v1837
    %3048 = vmatprep.subr.mxu0 %v1842
    %3049 = vmatpush1.msra.mxu0 %v1841
    %3050 = vmatprep.subr.mxu0 %v1846
    %3051 = vmatpush1.msra.mxu0 %v1845
    %3052 = vmatprep.subr.mxu0 %v1850
    %3053 = vmatpush1.msra.mxu0 %v1849
    %3054 = vmatprep.subr.mxu0 %v1854
    %3055 = vmatpush1.msra.mxu0 %v1853
    %3056 = vmatprep.subr.mxu0 %v1858
    %3057 = vmatpush1.msra.mxu0 %v1857
    %3058 = vmatprep.subr.mxu0 %v1862
    %3059 = vmatpush1.msra.mxu0 %v1861
    %3060 = vmatprep.subr.mxu0 %v1866
    %3061 = vmatpush1.msra.mxu0 %v1865
    %3062 = vmatprep.subr.mxu0 %v1870
    %3063 = vmatpush1.msra.mxu0 %v1869
    %3064 = vmatprep.subr.mxu0 %v1874
    %3065 = vmatpush1.msra.mxu0 %v1873
    %3066 = vmatprep.subr.mxu0 %v1878
    %3067 = vmatpush1.msra.mxu0 %v1877
    %3068 = vmatprep.subr.mxu0 %v1882
    %3069 = vmatpush1.msra.mxu0 %v1881
    %3070 = vmatprep.subr.mxu0 %v1886
    %3071 = vmatpush1.msra.mxu0 %v1885
    %3072 = vmatprep.subr.mxu0 %v1890
    %3073 = vmatpush1.msra.mxu0 %v1889
    %3074 = vmatprep.subr.mxu0 %v1894
    %3075 = vmatpush1.msra.mxu0 %v1893
    %3076 = vmatprep.subr.mxu0 %v1898
    %3077 = vmatpush1.msra.mxu0 %v1897
    %3078 = vmatprep.subr.mxu0 %v1902
    %3079 = vmatpush1.msra.mxu0 %v1901
    %3080 = vmatprep.subr.mxu0 %v1906
    %3081 = vmatpush1.msra.mxu0 %v1905
    %3082 = vmatprep.subr.mxu0 %v1910
    %3083 = vmatpush1.msra.mxu0 %v1909
    %3084 = vmatprep.subr.mxu0 %v1914
    %3085 = vmatpush1.msra.mxu0 %v1913
    %3086 = vmatprep.subr.mxu0 %v1918
    %3087 = vmatpush1.msra.mxu0 %v1917
    %3088 = vmatprep.subr.mxu0 %v1922
    %3089 = vmatpush1.msra.mxu0 %v1921
    %3090 = vmatprep.subr.mxu0 %v1926
    %3091 = vmatpush1.msra.mxu0 %v1925
    %3092 = vmatprep.subr.mxu0 %v1930
    %3093 = vmatpush1.msra.mxu0 %v1929
    %3094 = vmatprep.subr.mxu0 %v1934
    %3095 = vmatpush1.msra.mxu0 %v1933
    %3096 = vmatprep.subr.mxu0 %v1938
    %3097 = vmatpush1.msra.mxu0 %v1937
    %3098 = vmatprep.subr.mxu0 %v1942
    %3099 = vmatpush1.msra.mxu0 %v1941
    %3100 = vmatprep.subr.mxu0 %v1946
    %3101 = vmatpush1.msra.mxu0 %v1945
    %3102 = vmatprep.subr.mxu0 %v1950
    %3103 = vmatpush1.msra.mxu0 %v1949
    %3104 = vmatprep.mubr.f32.mxu0 %v918
    %3105 = vmatmul.mubr.f32.gmra.mrb[0].mxu0 %v910
    %v3106 = vpop.f32.mrb[0].mxu0
    %v3107 = vadd.f32 %v2605, %v3106
    %v3108 = vpop.f32.mrb[0].mxu0
    %v3109 = vadd.f32 %v2609, %v3108
    %3110 = vdwg.mxu0
    %3111 = vmatprep.subr.mxu0 %v1954
    %3112 = vmatpush1.msra.mxu0 %v1953
    %3113 = vmatprep.subr.mxu0 %v1958
    %3114 = vmatpush1.msra.mxu0 %v1957
    %3115 = vmatprep.subr.mxu0 %v1962
    %3116 = vmatpush1.msra.mxu0 %v1961
    %3117 = vmatprep.subr.mxu0 %v1966
    %3118 = vmatpush1.msra.mxu0 %v1965
    %3119 = vmatprep.subr.mxu0 %v1970
    %3120 = vmatpush1.msra.mxu0 %v1969
    %3121 = vmatprep.subr.mxu0 %v1974
    %3122 = vmatpush1.msra.mxu0 %v1973
    %3123 = vmatprep.subr.mxu0 %v1978
    %3124 = vmatpush1.msra.mxu0 %v1977
    %3125 = vmatprep.subr.mxu0 %v1982
    %3126 = vmatpush1.msra.mxu0 %v1981
    %3127 = vmatprep.subr.mxu0 %v1986
    %3128 = vmatpush1.msra.mxu0 %v1985
    %3129 = vmatprep.subr.mxu0 %v1990
    %3130 = vmatpush1.msra.mxu0 %v1989
    %3131 = vmatprep.subr.mxu0 %v1994
    %3132 = vmatpush1.msra.mxu0 %v1993
    %3133 = vmatprep.subr.mxu0 %v1998
    %3134 = vmatpush1.msra.mxu0 %v1997
    %3135 = vmatprep.subr.mxu0 %v2002
    %3136 = vmatpush1.msra.mxu0 %v2001
    %3137 = vmatprep.subr.mxu0 %v2006
    %3138 = vmatpush1.msra.mxu0 %v2005
    %3139 = vmatprep.subr.mxu0 %v2010
    %3140 = vmatpush1.msra.mxu0 %v2009
    %3141 = vmatprep.subr.mxu0 %v2014
    %3142 = vmatpush1.msra.mxu0 %v2013
    %3143 = vmatprep.subr.mxu0 %v2018
    %3144 = vmatpush1.msra.mxu0 %v2017
    %3145 = vmatprep.subr.mxu0 %v2022
    %3146 = vmatpush1.msra.mxu0 %v2021
    %3147 = vmatprep.subr.mxu0 %v2026
    %3148 = vmatpush1.msra.mxu0 %v2025
    %3149 = vmatprep.subr.mxu0 %v2030
    %3150 = vmatpush1.msra.mxu0 %v2029
    %3151 = vmatprep.subr.mxu0 %v2034
    %3152 = vmatpush1.msra.mxu0 %v2033
    %3153 = vmatprep.subr.mxu0 %v2038
    %3154 = vmatpush1.msra.mxu0 %v2037
    %3155 = vmatprep.subr.mxu0 %v2042
    %3156 = vmatpush1.msra.mxu0 %v2041
    %3157 = vmatprep.subr.mxu0 %v2046
    %3158 = vmatpush1.msra.mxu0 %v2045
    %3159 = vmatprep.subr.mxu0 %v2050
    %3160 = vmatpush1.msra.mxu0 %v2049
    %3161 = vmatprep.subr.mxu0 %v2054
    %3162 = vmatpush1.msra.mxu0 %v2053
    %3163 = vmatprep.subr.mxu0 %v2058
    %3164 = vmatpush1.msra.mxu0 %v2057
    %3165 = vmatprep.subr.mxu0 %v2062
    %3166 = vmatpush1.msra.mxu0 %v2061
    %3167 = vmatprep.subr.mxu0 %v2066
    %3168 = vmatpush1.msra.mxu0 %v2065
    %3169 = vmatprep.subr.mxu0 %v2070
    %3170 = vmatpush1.msra.mxu0 %v2069
    %3171 = vmatprep.subr.mxu0 %v2074
    %3172 = vmatpush1.msra.mxu0 %v2073
    %3173 = vmatprep.subr.mxu0 %v2078
    %3174 = vmatpush1.msra.mxu0 %v2077
    %3175 = vmatprep.mubr.f32.mxu0 %v919
    %3176 = vmatmul.mubr.f32.gmra.mrb[0].mxu0 %v917
    %v3177 = vpop.f32.mrb[0].mxu0
    %v3178 = vadd.f32 %v3107, %v3177
    %v3179 = vpop.f32.mrb[0].mxu0
    %v3180 = vadd.f32 %v3109, %v3179
    %3181 = vdwg.mxu0
    %3182 = vmatprep.subr.mxu0 %v2082
    %3183 = vmatpush1.msra.mxu0 %v2081
    %3184 = vmatprep.subr.mxu0 %v2086
    %3185 = vmatpush1.msra.mxu0 %v2085
    %3186 = vmatprep.subr.mxu0 %v2090
    %3187 = vmatpush1.msra.mxu0 %v2089
    %3188 = vmatprep.subr.mxu0 %v2094
    %3189 = vmatpush1.msra.mxu0 %v2093
    %3190 = vmatprep.subr.mxu0 %v2098
    %3191 = vmatpush1.msra.mxu0 %v2097
    %3192 = vmatprep.subr.mxu0 %v2102
    %3193 = vmatpush1.msra.mxu0 %v2101
    %3194 = vmatprep.subr.mxu0 %v2106
    %3195 = vmatpush1.msra.mxu0 %v2105
    %3196 = vmatprep.subr.mxu0 %v2110
    %3197 = vmatpush1.msra.mxu0 %v2109
    %3198 = vmatprep.subr.mxu0 %v2114
    %3199 = vmatpush1.msra.mxu0 %v2113
    %3200 = vmatprep.subr.mxu0 %v2118
    %3201 = vmatpush1.msra.mxu0 %v2117
    %3202 = vmatprep.subr.mxu0 %v2122
    %3203 = vmatpush1.msra.mxu0 %v2121
    %3204 = vmatprep.subr.mxu0 %v2126
    %3205 = vmatpush1.msra.mxu0 %v2125
    %3206 = vmatprep.subr.mxu0 %v2130
    %3207 = vmatpush1.msra.mxu0 %v2129
    %3208 = vmatprep.subr.mxu0 %v2134
    %3209 = vmatpush1.msra.mxu0 %v2133
    %3210 = vmatprep.subr.mxu0 %v2138
    %3211 = vmatpush1.msra.mxu0 %v2137
    %3212 = vmatprep.subr.mxu0 %v2142
    %3213 = vmatpush1.msra.mxu0 %v2141
    %3214 = vmatprep.subr.mxu0 %v2146
    %3215 = vmatpush1.msra.mxu0 %v2145
    %3216 = vmatprep.subr.mxu0 %v2150
    %3217 = vmatpush1.msra.mxu0 %v2149
    %3218 = vmatprep.subr.mxu0 %v2154
    %3219 = vmatpush1.msra.mxu0 %v2153
    %3220 = vmatprep.subr.mxu0 %v2158
    %3221 = vmatpush1.msra.mxu0 %v2157
    %3222 = vmatprep.subr.mxu0 %v2162
    %3223 = vmatpush1.msra.mxu0 %v2161
    %3224 = vmatprep.subr.mxu0 %v2166
    %3225 = vmatpush1.msra.mxu0 %v2165
    %3226 = vmatprep.subr.mxu0 %v2170
    %3227 = vmatpush1.msra.mxu0 %v2169
    %3228 = vmatprep.subr.mxu0 %v2174
    %3229 = vmatpush1.msra.mxu0 %v2173
    %3230 = vmatprep.subr.mxu0 %v2178
    %3231 = vmatpush1.msra.mxu0 %v2177
    %3232 = vmatprep.subr.mxu0 %v2182
    %3233 = vmatpush1.msra.mxu0 %v2181
    %3234 = vmatprep.subr.mxu0 %v2186
    %3235 = vmatpush1.msra.mxu0 %v2185
    %3236 = vmatprep.subr.mxu0 %v2190
    %3237 = vmatpush1.msra.mxu0 %v2189
    %3238 = vmatprep.subr.mxu0 %v2194
    %3239 = vmatpush1.msra.mxu0 %v2193
    %3240 = vmatprep.subr.mxu0 %v2198
    %3241 = vmatpush1.msra.mxu0 %v2197
    %3242 = vmatprep.subr.mxu0 %v2202
    %3243 = vmatpush1.msra.mxu0 %v2201
    %3244 = vmatprep.subr.mxu0 %v2206
    %3245 = vmatpush1.msra.mxu0 %v2205
    %3246 = vmatprep.mubr.f32.mxu0 %v935
    %3247 = vmatmul.mubr.f32.gmra.mrb[0].mxu0 %v927
    %v3248 = vpop.f32.mrb[0].mxu0
    %v3249 = vadd.f32 %v3178, %v3248
    %v3250 = vpop.f32.mrb[0].mxu0
    %v3251 = vadd.f32 %v3180, %v3250
    %3252 = vdwg.mxu0
    %3253 = vmatprep.subr.mxu0 %v2210
    %3254 = vmatpush1.msra.mxu0 %v2209
    %3255 = vmatprep.subr.mxu0 %v2214
    %3256 = vmatpush1.msra.mxu0 %v2213
    %3257 = vmatprep.subr.mxu0 %v2218
    %3258 = vmatpush1.msra.mxu0 %v2217
    %3259 = vmatprep.subr.mxu0 %v2222
    %3260 = vmatpush1.msra.mxu0 %v2221
    %3261 = vmatprep.subr.mxu0 %v2226
    %3262 = vmatpush1.msra.mxu0 %v2225
    %3263 = vmatprep.subr.mxu0 %v2230
    %3264 = vmatpush1.msra.mxu0 %v2229
    %3265 = vmatprep.subr.mxu0 %v2234
    %3266 = vmatpush1.msra.mxu0 %v2233
    %3267 = vmatprep.subr.mxu0 %v2238
    %3268 = vmatpush1.msra.mxu0 %v2237
    %3269 = vmatprep.subr.mxu0 %v2242
    %3270 = vmatpush1.msra.mxu0 %v2241
    %3271 = vmatprep.subr.mxu0 %v2246
    %3272 = vmatpush1.msra.mxu0 %v2245
    %3273 = vmatprep.subr.mxu0 %v2250
    %3274 = vmatpush1.msra.mxu0 %v2249
    %3275 = vmatprep.subr.mxu0 %v2254
    %3276 = vmatpush1.msra.mxu0 %v2253
    %3277 = vmatprep.subr.mxu0 %v2258
    %3278 = vmatpush1.msra.mxu0 %v2257
    %3279 = vmatprep.subr.mxu0 %v2262
    %3280 = vmatpush1.msra.mxu0 %v2261
    %3281 = vmatprep.subr.mxu0 %v2266
    %3282 = vmatpush1.msra.mxu0 %v2265
    %3283 = vmatprep.subr.mxu0 %v2270
    %3284 = vmatpush1.msra.mxu0 %v2269
    %3285 = vmatprep.subr.mxu0 %v2274
    %3286 = vmatpush1.msra.mxu0 %v2273
    %3287 = vmatprep.subr.mxu0 %v2278
    %3288 = vmatpush1.msra.mxu0 %v2277
    %3289 = vmatprep.subr.mxu0 %v2282
    %3290 = vmatpush1.msra.mxu0 %v2281
    %3291 = vmatprep.subr.mxu0 %v2286
    %3292 = vmatpush1.msra.mxu0 %v2285
    %3293 = vmatprep.subr.mxu0 %v2290
    %3294 = vmatpush1.msra.mxu0 %v2289
    %3295 = vmatprep.subr.mxu0 %v2294
    %3296 = vmatpush1.msra.mxu0 %v2293
    %3297 = vmatprep.subr.mxu0 %v2298
    %3298 = vmatpush1.msra.mxu0 %v2297
    %3299 = vmatprep.subr.mxu0 %v2302
    %3300 = vmatpush1.msra.mxu0 %v2301
    %3301 = vmatprep.subr.mxu0 %v2306
    %3302 = vmatpush1.msra.mxu0 %v2305
    %3303 = vmatprep.subr.mxu0 %v2310
    %3304 = vmatpush1.msra.mxu0 %v2309
    %3305 = vmatprep.subr.mxu0 %v2314
    %3306 = vmatpush1.msra.mxu0 %v2313
    %3307 = vmatprep.subr.mxu0 %v2318
    %3308 = vmatpush1.msra.mxu0 %v2317
    %3309 = vmatprep.subr.mxu0 %v2322
    %3310 = vmatpush1.msra.mxu0 %v2321
    %3311 = vmatprep.subr.mxu0 %v2326
    %3312 = vmatpush1.msra.mxu0 %v2325
    %3313 = vmatprep.subr.mxu0 %v2330
    %3314 = vmatpush1.msra.mxu0 %v2329
    %3315 = vmatprep.subr.mxu0 %v2334
    %3316 = vmatpush1.msra.mxu0 %v2333
    %3317 = vmatprep.mubr.f32.mxu0 %v936
    %3318 = vmatmul.mubr.f32.gmra.mrb[0].mxu0 %v934
    %v3319 = vpop.f32.mrb[0].mxu0
    %v3320 = vadd.f32 %v3249, %v3319
    %v3321 = vpop.f32.mrb[0].mxu0
    %v3322 = vadd.f32 %v3251, %v3321
    %3323 = vdwg.mxu0
    %3324 = vmatprep.subr.mxu0 %v2338
    %3325 = vmatpush1.msra.mxu0 %v2337
    %3326 = vmatprep.subr.mxu0 %v2342
    %3327 = vmatpush1.msra.mxu0 %v2341
    %3328 = vmatprep.subr.mxu0 %v2346
    %3329 = vmatpush1.msra.mxu0 %v2345
    %3330 = vmatprep.subr.mxu0 %v2350
    %3331 = vmatpush1.msra.mxu0 %v2349
    %3332 = vmatprep.subr.mxu0 %v2354
    %3333 = vmatpush1.msra.mxu0 %v2353
    %3334 = vmatprep.subr.mxu0 %v2358
    %3335 = vmatpush1.msra.mxu0 %v2357
    %3336 = vmatprep.subr.mxu0 %v2362
    %3337 = vmatpush1.msra.mxu0 %v2361
    %3338 = vmatprep.subr.mxu0 %v2366
    %3339 = vmatpush1.msra.mxu0 %v2365
    %3340 = vmatprep.subr.mxu0 %v2370
    %3341 = vmatpush1.msra.mxu0 %v2369
    %3342 = vmatprep.subr.mxu0 %v2374
    %3343 = vmatpush1.msra.mxu0 %v2373
    %3344 = vmatprep.subr.mxu0 %v2378
    %3345 = vmatpush1.msra.mxu0 %v2377
    %3346 = vmatprep.subr.mxu0 %v2382
    %3347 = vmatpush1.msra.mxu0 %v2381
    %3348 = vmatprep.subr.mxu0 %v2386
    %3349 = vmatpush1.msra.mxu0 %v2385
    %3350 = vmatprep.subr.mxu0 %v2390
    %3351 = vmatpush1.msra.mxu0 %v2389
    %3352 = vmatprep.subr.mxu0 %v2394
    %3353 = vmatpush1.msra.mxu0 %v2393
    %3354 = vmatprep.subr.mxu0 %v2398
    %3355 = vmatpush1.msra.mxu0 %v2397
    %3356 = vmatprep.subr.mxu0 %v2402
    %3357 = vmatpush1.msra.mxu0 %v2401
    %3358 = vmatprep.subr.mxu0 %v2406
    %3359 = vmatpush1.msra.mxu0 %v2405
    %3360 = vmatprep.subr.mxu0 %v2410
    %3361 = vmatpush1.msra.mxu0 %v2409
    %3362 = vmatprep.subr.mxu0 %v2414
    %3363 = vmatpush1.msra.mxu0 %v2413
    %3364 = vmatprep.subr.mxu0 %v2418
    %3365 = vmatpush1.msra.mxu0 %v2417
    %3366 = vmatprep.subr.mxu0 %v2422
    %3367 = vmatpush1.msra.mxu0 %v2421
    %3368 = vmatprep.subr.mxu0 %v2426
    %3369 = vmatpush1.msra.mxu0 %v2425
    %3370 = vmatprep.subr.mxu0 %v2430
    %3371 = vmatpush1.msra.mxu0 %v2429
    %3372 = vmatprep.subr.mxu0 %v2434
    %3373 = vmatpush1.msra.mxu0 %v2433
    %3374 = vmatprep.subr.mxu0 %v2438
    %3375 = vmatpush1.msra.mxu0 %v2437
    %3376 = vmatprep.subr.mxu0 %v2442
    %3377 = vmatpush1.msra.mxu0 %v2441
    %3378 = vmatprep.subr.mxu0 %v2446
    %3379 = vmatpush1.msra.mxu0 %v2445
    %3380 = vmatprep.subr.mxu0 %v2450
    %3381 = vmatpush1.msra.mxu0 %v2449
    %3382 = vmatprep.subr.mxu0 %v2454
    %3383 = vmatpush1.msra.mxu0 %v2453
    %3384 = vmatprep.subr.mxu0 %v2458
    %3385 = vmatpush1.msra.mxu0 %v2457
    %3386 = vmatprep.subr.mxu0 %v2462
    %3387 = vmatpush1.msra.mxu0 %v2461
    %3388 = vmatprep.mubr.f32.mxu0 %v952
    %3389 = vmatmul.mubr.f32.gmra.mrb[0].mxu0 %v944
    %v3390 = vpop.f32.mrb[0].mxu0
    %v3391 = vadd.f32 %v3320, %v3390
    %v3392 = vpop.f32.mrb[0].mxu0
    %v3393 = vadd.f32 %v3322, %v3392
    %3394 = vdwg.mxu0
    %3395 = vmatprep.subr.mxu0 %v2466
    %3396 = vmatpush1.msra.mxu0 %v2465
    %3397 = vmatprep.subr.mxu0 %v2470
    %3398 = vmatpush1.msra.mxu0 %v2469
    %3399 = vmatprep.subr.mxu0 %v2474
    %3400 = vmatpush1.msra.mxu0 %v2473
    %3401 = vmatprep.subr.mxu0 %v2478
    %3402 = vmatpush1.msra.mxu0 %v2477
    %3403 = vmatprep.subr.mxu0 %v2482
    %3404 = vmatpush1.msra.mxu0 %v2481
    %3405 = vmatprep.subr.mxu0 %v2486
    %3406 = vmatpush1.msra.mxu0 %v2485
    %3407 = vmatprep.subr.mxu0 %v2490
    %3408 = vmatpush1.msra.mxu0 %v2489
    %3409 = vmatprep.subr.mxu0 %v2494
    %3410 = vmatpush1.msra.mxu0 %v2493
    %3411 = vmatprep.subr.mxu0 %v2498
    %3412 = vmatpush1.msra.mxu0 %v2497
    %3413 = vmatprep.subr.mxu0 %v2502
    %3414 = vmatpush1.msra.mxu0 %v2501
    %3415 = vmatprep.subr.mxu0 %v2506
    %3416 = vmatpush1.msra.mxu0 %v2505
    %3417 = vmatprep.subr.mxu0 %v2510
    %3418 = vmatpush1.msra.mxu0 %v2509
    %3419 = vmatprep.subr.mxu0 %v2514
    %3420 = vmatpush1.msra.mxu0 %v2513
    %3421 = vmatprep.subr.mxu0 %v2518
    %3422 = vmatpush1.msra.mxu0 %v2517
    %3423 = vmatprep.subr.mxu0 %v2522
    %3424 = vmatpush1.msra.mxu0 %v2521
    %3425 = vmatprep.subr.mxu0 %v2526
    %3426 = vmatpush1.msra.mxu0 %v2525
    %3427 = vmatprep.subr.mxu0 %v2530
    %3428 = vmatpush1.msra.mxu0 %v2529
    %3429 = vmatprep.subr.mxu0 %v2534
    %3430 = vmatpush1.msra.mxu0 %v2533
    %3431 = vmatprep.subr.mxu0 %v2538
    %3432 = vmatpush1.msra.mxu0 %v2537
    %3433 = vmatprep.subr.mxu0 %v2542
    %3434 = vmatpush1.msra.mxu0 %v2541
    %3435 = vmatprep.subr.mxu0 %v2546
    %3436 = vmatpush1.msra.mxu0 %v2545
    %3437 = vmatprep.subr.mxu0 %v2550
    %3438 = vmatpush1.msra.mxu0 %v2549
    %3439 = vmatprep.subr.mxu0 %v2554
    %3440 = vmatpush1.msra.mxu0 %v2553
    %3441 = vmatprep.subr.mxu0 %v2558
    %3442 = vmatpush1.msra.mxu0 %v2557
    %3443 = vmatprep.subr.mxu0 %v2562
    %3444 = vmatpush1.msra.mxu0 %v2561
    %3445 = vmatprep.subr.mxu0 %v2566
    %3446 = vmatpush1.msra.mxu0 %v2565
    %3447 = vmatprep.subr.mxu0 %v2570
    %3448 = vmatpush1.msra.mxu0 %v2569
    %3449 = vmatprep.subr.mxu0 %v2574
    %3450 = vmatpush1.msra.mxu0 %v2573
    %3451 = vmatprep.subr.mxu0 %v2578
    %3452 = vmatpush1.msra.mxu0 %v2577
    %3453 = vmatprep.subr.mxu0 %v2582
    %3454 = vmatpush1.msra.mxu0 %v2581
    %3455 = vmatprep.subr.mxu0 %v2586
    %3456 = vmatpush1.msra.mxu0 %v2585
    %3457 = vmatprep.subr.mxu0 %v2590
    %3458 = vmatpush1.msra.mxu0 %v2589
    %3459 = vmatprep.mubr.f32.mxu0 %v953
    %3460 = vmatmul.mubr.f32.gmra.mrb[0].mxu0 %v951
    %v3461 = vpop.f32.mrb[0].mxu0
    %v3462 = vadd.f32 %v3391, %v3461
    %v3463 = vpop.f32.mrb[0].mxu0
    %v3464 = vadd.f32 %v3393, %v3463
    %3465 = vdwg.mxu0
    %v3466 = vmax.f32 %v3036, 0.0
    %v3467 = vmax.f32 %v3038, 0.0
    %v3468 = vmax.f32 %v3462, 0.0
    %v3469 = vmax.f32 %v3464, 0.0
    %v3470 = vld [vmem:[#allocation8] sm:$0xff]
    %v3471 = vld [vmem:[#allocation8 + $0x8] sm:$0xff]
    %v3472 = vld [vmem:[#allocation8 + $0x10] sm:$0xff]
    %v3473 = vld [vmem:[#allocation8 + $0x18] sm:$0xff]
    %v3474 = vld [vmem:[#allocation8 + $0x20] sm:$0xff]
    %v3475 = vld [vmem:[#allocation8 + $0x28] sm:$0xff]
    %v3476 = vld [vmem:[#allocation8 + $0x30] sm:$0xff]
    %v3477 = vld [vmem:[#allocation8 + $0x38] sm:$0xff]
    %v3478 = vld [vmem:[#allocation8 + $0x40] sm:$0xff]
    %v3479 = vld [vmem:[#allocation8 + $0x48] sm:$0xff]
    %v3480 = vld [vmem:[#allocation8 + $0x50] sm:$0xff]
    %v3481 = vld [vmem:[#allocation8 + $0x58] sm:$0xff]
    %v3482 = vld [vmem:[#allocation8 + $0x60] sm:$0xff]
    %v3483 = vld [vmem:[#allocation8 + $0x68] sm:$0xff]
    %v3484 = vld [vmem:[#allocation8 + $0x70] sm:$0xff]
    %v3485 = vld [vmem:[#allocation8 + $0x78] sm:$0xff]
    %v3486 = vld [vmem:[#allocation8 + $0x80] sm:$0xff]
    %v3487 = vld [vmem:[#allocation8 + $0x88] sm:$0xff]
    %v3488 = vld [vmem:[#allocation8 + $0x90] sm:$0xff]
    %v3489 = vld [vmem:[#allocation8 + $0x98] sm:$0xff]
    %v3490 = vld [vmem:[#allocation8 + $0xa0] sm:$0xff]
    %v3491 = vld [vmem:[#allocation8 + $0xa8] sm:$0xff]
    %v3492 = vld [vmem:[#allocation8 + $0xb0] sm:$0xff]
    %v3493 = vld [vmem:[#allocation8 + $0xb8] sm:$0xff]
    %v3494 = vld [vmem:[#allocation8 + $0xc0] sm:$0xff]
    %v3495 = vld [vmem:[#allocation8 + $0xc8] sm:$0xff]
    %v3496 = vld [vmem:[#allocation8 + $0xd0] sm:$0xff]
    %v3497 = vld [vmem:[#allocation8 + $0xd8] sm:$0xff]
    %v3498 = vld [vmem:[#allocation8 + $0xe0] sm:$0xff]
    %v3499 = vld [vmem:[#allocation8 + $0xe8] sm:$0xff]
    %v3500 = vld [vmem:[#allocation8 + $0xf0] sm:$0xff]
    %v3501 = vld [vmem:[#allocation8 + $0xf8] sm:$0xff]
    %v3502 = vld [vmem:[#allocation8 + $0x100] sm:$0xff]
    %v3503 = vld [vmem:[#allocation8 + $0x108] sm:$0xff]
    %v3504 = vld [vmem:[#allocation8 + $0x110] sm:$0xff]
    %v3505 = vld [vmem:[#allocation8 + $0x118] sm:$0xff]
    %v3506 = vld [vmem:[#allocation8 + $0x120] sm:$0xff]
    %v3507 = vld [vmem:[#allocation8 + $0x128] sm:$0xff]
    %v3508 = vld [vmem:[#allocation8 + $0x130] sm:$0xff]
    %v3509 = vld [vmem:[#allocation8 + $0x138] sm:$0xff]
    %v3510 = vld [vmem:[#allocation8 + $0x140] sm:$0xff]
    %v3511 = vld [vmem:[#allocation8 + $0x148] sm:$0xff]
    %v3512 = vld [vmem:[#allocation8 + $0x150] sm:$0xff]
    %v3513 = vld [vmem:[#allocation8 + $0x158] sm:$0xff]
    %v3514 = vld [vmem:[#allocation8 + $0x160] sm:$0xff]
    %v3515 = vld [vmem:[#allocation8 + $0x168] sm:$0xff]
    %v3516 = vld [vmem:[#allocation8 + $0x170] sm:$0xff]
    %v3517 = vld [vmem:[#allocation8 + $0x178] sm:$0xff]
    %v3518 = vld [vmem:[#allocation8 + $0x180] sm:$0xff]
    %v3519 = vld [vmem:[#allocation8 + $0x188] sm:$0xff]
    %v3520 = vld [vmem:[#allocation8 + $0x190] sm:$0xff]
    %v3521 = vld [vmem:[#allocation8 + $0x198] sm:$0xff]
    %v3522 = vld [vmem:[#allocation8 + $0x1a0] sm:$0xff]
    %v3523 = vld [vmem:[#allocation8 + $0x1a8] sm:$0xff]
    %v3524 = vld [vmem:[#allocation8 + $0x1b0] sm:$0xff]
    %v3525 = vld [vmem:[#allocation8 + $0x1b8] sm:$0xff]
    %v3526 = vld [vmem:[#allocation8 + $0x1c0] sm:$0xff]
    %v3527 = vld [vmem:[#allocation8 + $0x1c8] sm:$0xff]
    %v3528 = vld [vmem:[#allocation8 + $0x1d0] sm:$0xff]
    %v3529 = vld [vmem:[#allocation8 + $0x1d8] sm:$0xff]
    %v3530 = vld [vmem:[#allocation8 + $0x1e0] sm:$0xff]
    %v3531 = vld [vmem:[#allocation8 + $0x1e8] sm:$0xff]
    %v3532 = vld [vmem:[#allocation8 + $0x1f0] sm:$0xff]
    %v3533 = vld [vmem:[#allocation8 + $0x1f8] sm:$0xff]
    %v3534 = vld [vmem:[#allocation8 + $0x200] sm:$0xff]
    %v3535 = vld [vmem:[#allocation8 + $0x208] sm:$0xff]
    %v3536 = vld [vmem:[#allocation8 + $0x210] sm:$0xff]
    %v3537 = vld [vmem:[#allocation8 + $0x218] sm:$0xff]
    %v3538 = vld [vmem:[#allocation8 + $0x220] sm:$0xff]
    %v3539 = vld [vmem:[#allocation8 + $0x228] sm:$0xff]
    %v3540 = vld [vmem:[#allocation8 + $0x230] sm:$0xff]
    %v3541 = vld [vmem:[#allocation8 + $0x238] sm:$0xff]
    %v3542 = vld [vmem:[#allocation8 + $0x240] sm:$0xff]
    %v3543 = vld [vmem:[#allocation8 + $0x248] sm:$0xff]
    %v3544 = vld [vmem:[#allocation8 + $0x250] sm:$0xff]
    %v3545 = vld [vmem:[#allocation8 + $0x258] sm:$0xff]
    %v3546 = vld [vmem:[#allocation8 + $0x260] sm:$0xff]
    %v3547 = vld [vmem:[#allocation8 + $0x268] sm:$0xff]
    %v3548 = vld [vmem:[#allocation8 + $0x270] sm:$0xff]
    %v3549 = vld [vmem:[#allocation8 + $0x278] sm:$0xff]
    %v3550 = vld [vmem:[#allocation8 + $0x280] sm:$0xff]
    %v3551 = vld [vmem:[#allocation8 + $0x288] sm:$0xff]
    %v3552 = vld [vmem:[#allocation8 + $0x290] sm:$0xff]
    %v3553 = vld [vmem:[#allocation8 + $0x298] sm:$0xff]
    %v3554 = vld [vmem:[#allocation8 + $0x2a0] sm:$0xff]
    %v3555 = vld [vmem:[#allocation8 + $0x2a8] sm:$0xff]
    %v3556 = vld [vmem:[#allocation8 + $0x2b0] sm:$0xff]
    %v3557 = vld [vmem:[#allocation8 + $0x2b8] sm:$0xff]
    %v3558 = vld [vmem:[#allocation8 + $0x2c0] sm:$0xff]
    %v3559 = vld [vmem:[#allocation8 + $0x2c8] sm:$0xff]
    %v3560 = vld [vmem:[#allocation8 + $0x2d0] sm:$0xff]
    %v3561 = vld [vmem:[#allocation8 + $0x2d8] sm:$0xff]
    %v3562 = vld [vmem:[#allocation8 + $0x2e0] sm:$0xff]
    %v3563 = vld [vmem:[#allocation8 + $0x2e8] sm:$0xff]
    %v3564 = vld [vmem:[#allocation8 + $0x2f0] sm:$0xff]
    %v3565 = vld [vmem:[#allocation8 + $0x2f8] sm:$0xff]
    %v3566 = vld [vmem:[#allocation8 + $0x300] sm:$0xff]
    %v3567 = vld [vmem:[#allocation8 + $0x308] sm:$0xff]
    %v3568 = vld [vmem:[#allocation8 + $0x310] sm:$0xff]
    %v3569 = vld [vmem:[#allocation8 + $0x318] sm:$0xff]
    %v3570 = vld [vmem:[#allocation8 + $0x320] sm:$0xff]
    %v3571 = vld [vmem:[#allocation8 + $0x328] sm:$0xff]
    %v3572 = vld [vmem:[#allocation8 + $0x330] sm:$0xff]
    %v3573 = vld [vmem:[#allocation8 + $0x338] sm:$0xff]
    %v3574 = vld [vmem:[#allocation8 + $0x340] sm:$0xff]
    %v3575 = vld [vmem:[#allocation8 + $0x348] sm:$0xff]
    %v3576 = vld [vmem:[#allocation8 + $0x350] sm:$0xff]
    %v3577 = vld [vmem:[#allocation8 + $0x358] sm:$0xff]
    %v3578 = vld [vmem:[#allocation8 + $0x360] sm:$0xff]
    %v3579 = vld [vmem:[#allocation8 + $0x368] sm:$0xff]
    %v3580 = vld [vmem:[#allocation8 + $0x370] sm:$0xff]
    %v3581 = vld [vmem:[#allocation8 + $0x378] sm:$0xff]
    %v3582 = vld [vmem:[#allocation8 + $0x380] sm:$0xff]
    %v3583 = vld [vmem:[#allocation8 + $0x388] sm:$0xff]
    %v3584 = vld [vmem:[#allocation8 + $0x390] sm:$0xff]
    %v3585 = vld [vmem:[#allocation8 + $0x398] sm:$0xff]
    %v3586 = vld [vmem:[#allocation8 + $0x3a0] sm:$0xff]
    %v3587 = vld [vmem:[#allocation8 + $0x3a8] sm:$0xff]
    %v3588 = vld [vmem:[#allocation8 + $0x3b0] sm:$0xff]
    %v3589 = vld [vmem:[#allocation8 + $0x3b8] sm:$0xff]
    %v3590 = vld [vmem:[#allocation8 + $0x3c0] sm:$0xff]
    %v3591 = vld [vmem:[#allocation8 + $0x3c8] sm:$0xff]
    %v3592 = vld [vmem:[#allocation8 + $0x3d0] sm:$0xff]
    %v3593 = vld [vmem:[#allocation8 + $0x3d8] sm:$0xff]
    %v3594 = vld [vmem:[#allocation8 + $0x3e0] sm:$0xff]
    %v3595 = vld [vmem:[#allocation8 + $0x3e8] sm:$0xff]
    %v3596 = vld [vmem:[#allocation8 + $0x3f0] sm:$0xff]
    %v3597 = vld [vmem:[#allocation8 + $0x3f8] sm:$0xff]
    %v3598 = vld [vmem:[#allocation8 + $0x400] sm:$0xff]
    %v3599 = vld [vmem:[#allocation8 + $0x408] sm:$0xff]
    %v3600 = vld [vmem:[#allocation8 + $0x410] sm:$0xff]
    %v3601 = vld [vmem:[#allocation8 + $0x418] sm:$0xff]
    %v3602 = vld [vmem:[#allocation8 + $0x420] sm:$0xff]
    %v3603 = vld [vmem:[#allocation8 + $0x428] sm:$0xff]
    %v3604 = vld [vmem:[#allocation8 + $0x430] sm:$0xff]
    %v3605 = vld [vmem:[#allocation8 + $0x438] sm:$0xff]
    %v3606 = vld [vmem:[#allocation8 + $0x440] sm:$0xff]
    %v3607 = vld [vmem:[#allocation8 + $0x448] sm:$0xff]
    %v3608 = vld [vmem:[#allocation8 + $0x450] sm:$0xff]
    %v3609 = vld [vmem:[#allocation8 + $0x458] sm:$0xff]
    %v3610 = vld [vmem:[#allocation8 + $0x460] sm:$0xff]
    %v3611 = vld [vmem:[#allocation8 + $0x468] sm:$0xff]
    %v3612 = vld [vmem:[#allocation8 + $0x470] sm:$0xff]
    %v3613 = vld [vmem:[#allocation8 + $0x478] sm:$0xff]
    %v3614 = vld [vmem:[#allocation8 + $0x480] sm:$0xff]
    %v3615 = vld [vmem:[#allocation8 + $0x488] sm:$0xff]
    %v3616 = vld [vmem:[#allocation8 + $0x490] sm:$0xff]
    %v3617 = vld [vmem:[#allocation8 + $0x498] sm:$0xff]
    %v3618 = vld [vmem:[#allocation8 + $0x4a0] sm:$0xff]
    %v3619 = vld [vmem:[#allocation8 + $0x4a8] sm:$0xff]
    %v3620 = vld [vmem:[#allocation8 + $0x4b0] sm:$0xff]
    %v3621 = vld [vmem:[#allocation8 + $0x4b8] sm:$0xff]
    %v3622 = vld [vmem:[#allocation8 + $0x4c0] sm:$0xff]
    %v3623 = vld [vmem:[#allocation8 + $0x4c8] sm:$0xff]
    %v3624 = vld [vmem:[#allocation8 + $0x4d0] sm:$0xff]
    %v3625 = vld [vmem:[#allocation8 + $0x4d8] sm:$0xff]
    %v3626 = vld [vmem:[#allocation8 + $0x4e0] sm:$0xff]
    %v3627 = vld [vmem:[#allocation8 + $0x4e8] sm:$0xff]
    %v3628 = vld [vmem:[#allocation8 + $0x4f0] sm:$0xff]
    %v3629 = vld [vmem:[#allocation8 + $0x4f8] sm:$0xff]
    %v3630 = vld [vmem:[#allocation8 + $0x500] sm:$0xff]
    %v3631 = vld [vmem:[#allocation8 + $0x508] sm:$0xff]
    %v3632 = vld [vmem:[#allocation8 + $0x510] sm:$0xff]
    %v3633 = vld [vmem:[#allocation8 + $0x518] sm:$0xff]
    %v3634 = vld [vmem:[#allocation8 + $0x520] sm:$0xff]
    %v3635 = vld [vmem:[#allocation8 + $0x528] sm:$0xff]
    %v3636 = vld [vmem:[#allocation8 + $0x530] sm:$0xff]
    %v3637 = vld [vmem:[#allocation8 + $0x538] sm:$0xff]
    %v3638 = vld [vmem:[#allocation8 + $0x540] sm:$0xff]
    %v3639 = vld [vmem:[#allocation8 + $0x548] sm:$0xff]
    %v3640 = vld [vmem:[#allocation8 + $0x550] sm:$0xff]
    %v3641 = vld [vmem:[#allocation8 + $0x558] sm:$0xff]
    %v3642 = vld [vmem:[#allocation8 + $0x560] sm:$0xff]
    %v3643 = vld [vmem:[#allocation8 + $0x568] sm:$0xff]
    %v3644 = vld [vmem:[#allocation8 + $0x570] sm:$0xff]
    %v3645 = vld [vmem:[#allocation8 + $0x578] sm:$0xff]
    %v3646 = vld [vmem:[#allocation8 + $0x580] sm:$0xff]
    %v3647 = vld [vmem:[#allocation8 + $0x588] sm:$0xff]
    %v3648 = vld [vmem:[#allocation8 + $0x590] sm:$0xff]
    %v3649 = vld [vmem:[#allocation8 + $0x598] sm:$0xff]
    %v3650 = vld [vmem:[#allocation8 + $0x5a0] sm:$0xff]
    %v3651 = vld [vmem:[#allocation8 + $0x5a8] sm:$0xff]
    %v3652 = vld [vmem:[#allocation8 + $0x5b0] sm:$0xff]
    %v3653 = vld [vmem:[#allocation8 + $0x5b8] sm:$0xff]
    %v3654 = vld [vmem:[#allocation8 + $0x5c0] sm:$0xff]
    %v3655 = vld [vmem:[#allocation8 + $0x5c8] sm:$0xff]
    %v3656 = vld [vmem:[#allocation8 + $0x5d0] sm:$0xff]
    %v3657 = vld [vmem:[#allocation8 + $0x5d8] sm:$0xff]
    %v3658 = vld [vmem:[#allocation8 + $0x5e0] sm:$0xff]
    %v3659 = vld [vmem:[#allocation8 + $0x5e8] sm:$0xff]
    %v3660 = vld [vmem:[#allocation8 + $0x5f0] sm:$0xff]
    %v3661 = vld [vmem:[#allocation8 + $0x5f8] sm:$0xff]
    %v3662 = vld [vmem:[#allocation8 + $0x600] sm:$0xff]
    %v3663 = vld [vmem:[#allocation8 + $0x608] sm:$0xff]
    %v3664 = vld [vmem:[#allocation8 + $0x610] sm:$0xff]
    %v3665 = vld [vmem:[#allocation8 + $0x618] sm:$0xff]
    %v3666 = vld [vmem:[#allocation8 + $0x620] sm:$0xff]
    %v3667 = vld [vmem:[#allocation8 + $0x628] sm:$0xff]
    %v3668 = vld [vmem:[#allocation8 + $0x630] sm:$0xff]
    %v3669 = vld [vmem:[#allocation8 + $0x638] sm:$0xff]
    %v3670 = vld [vmem:[#allocation8 + $0x640] sm:$0xff]
    %v3671 = vld [vmem:[#allocation8 + $0x648] sm:$0xff]
    %v3672 = vld [vmem:[#allocation8 + $0x650] sm:$0xff]
    %v3673 = vld [vmem:[#allocation8 + $0x658] sm:$0xff]
    %v3674 = vld [vmem:[#allocation8 + $0x660] sm:$0xff]
    %v3675 = vld [vmem:[#allocation8 + $0x668] sm:$0xff]
    %v3676 = vld [vmem:[#allocation8 + $0x670] sm:$0xff]
    %v3677 = vld [vmem:[#allocation8 + $0x678] sm:$0xff]
    %v3678 = vld [vmem:[#allocation8 + $0x680] sm:$0xff]
    %v3679 = vld [vmem:[#allocation8 + $0x688] sm:$0xff]
    %v3680 = vld [vmem:[#allocation8 + $0x690] sm:$0xff]
    %v3681 = vld [vmem:[#allocation8 + $0x698] sm:$0xff]
    %v3682 = vld [vmem:[#allocation8 + $0x6a0] sm:$0xff]
    %v3683 = vld [vmem:[#allocation8 + $0x6a8] sm:$0xff]
    %v3684 = vld [vmem:[#allocation8 + $0x6b0] sm:$0xff]
    %v3685 = vld [vmem:[#allocation8 + $0x6b8] sm:$0xff]
    %v3686 = vld [vmem:[#allocation8 + $0x6c0] sm:$0xff]
    %v3687 = vld [vmem:[#allocation8 + $0x6c8] sm:$0xff]
    %v3688 = vld [vmem:[#allocation8 + $0x6d0] sm:$0xff]
    %v3689 = vld [vmem:[#allocation8 + $0x6d8] sm:$0xff]
    %v3690 = vld [vmem:[#allocation8 + $0x6e0] sm:$0xff]
    %v3691 = vld [vmem:[#allocation8 + $0x6e8] sm:$0xff]
    %v3692 = vld [vmem:[#allocation8 + $0x6f0] sm:$0xff]
    %v3693 = vld [vmem:[#allocation8 + $0x6f8] sm:$0xff]
    %v3694 = vld [vmem:[#allocation8 + $0x700] sm:$0xff]
    %v3695 = vld [vmem:[#allocation8 + $0x708] sm:$0xff]
    %v3696 = vld [vmem:[#allocation8 + $0x710] sm:$0xff]
    %v3697 = vld [vmem:[#allocation8 + $0x718] sm:$0xff]
    %v3698 = vld [vmem:[#allocation8 + $0x720] sm:$0xff]
    %v3699 = vld [vmem:[#allocation8 + $0x728] sm:$0xff]
    %v3700 = vld [vmem:[#allocation8 + $0x730] sm:$0xff]
    %v3701 = vld [vmem:[#allocation8 + $0x738] sm:$0xff]
    %v3702 = vld [vmem:[#allocation8 + $0x740] sm:$0xff]
    %v3703 = vld [vmem:[#allocation8 + $0x748] sm:$0xff]
    %v3704 = vld [vmem:[#allocation8 + $0x750] sm:$0xff]
    %v3705 = vld [vmem:[#allocation8 + $0x758] sm:$0xff]
    %v3706 = vld [vmem:[#allocation8 + $0x760] sm:$0xff]
    %v3707 = vld [vmem:[#allocation8 + $0x768] sm:$0xff]
    %v3708 = vld [vmem:[#allocation8 + $0x770] sm:$0xff]
    %v3709 = vld [vmem:[#allocation8 + $0x778] sm:$0xff]
    %v3710 = vld [vmem:[#allocation8 + $0x780] sm:$0xff]
    %v3711 = vld [vmem:[#allocation8 + $0x788] sm:$0xff]
    %v3712 = vld [vmem:[#allocation8 + $0x790] sm:$0xff]
    %v3713 = vld [vmem:[#allocation8 + $0x798] sm:$0xff]
    %v3714 = vld [vmem:[#allocation8 + $0x7a0] sm:$0xff]
    %v3715 = vld [vmem:[#allocation8 + $0x7a8] sm:$0xff]
    %v3716 = vld [vmem:[#allocation8 + $0x7b0] sm:$0xff]
    %v3717 = vld [vmem:[#allocation8 + $0x7b8] sm:$0xff]
    %v3718 = vld [vmem:[#allocation8 + $0x7c0] sm:$0xff]
    %v3719 = vld [vmem:[#allocation8 + $0x7c8] sm:$0xff]
    %v3720 = vld [vmem:[#allocation8 + $0x7d0] sm:$0xff]
    %v3721 = vld [vmem:[#allocation8 + $0x7d8] sm:$0xff]
    %v3722 = vld [vmem:[#allocation8 + $0x7e0] sm:$0xff]
    %v3723 = vld [vmem:[#allocation8 + $0x7e8] sm:$0xff]
    %v3724 = vld [vmem:[#allocation8 + $0x7f0] sm:$0xff]
    %v3725 = vld [vmem:[#allocation8 + $0x7f8] sm:$0xff]
    %v3726 = vld [vmem:[#allocation10] sm:$0xf]
    %v3728 = vlaneseq
    %v3729 = vshrl.u32 %v3728, 7
    %v3730 = vsub.s32 0, %v3729
    %v3731 = vrot.slane %v3726, %v3730
    %v3732 = vlaneseq
    %v3733 = vshrl.u32 %v3732, 7
    %v3734 = vsub.s32 1, %v3733
    %v3735 = vrot.slane %v3726, %v3734
    %v3736 = vlaneseq
    %v3737 = vshrl.u32 %v3736, 7
    %v3738 = vsub.s32 2, %v3737
    %v3739 = vrot.slane %v3726, %v3738
    %v3740 = vlaneseq
    %v3741 = vshrl.u32 %v3740, 7
    %v3742 = vsub.s32 3, %v3741
    %v3743 = vrot.slane %v3726, %v3742
    %3748 = vmatprep.subr.mxu0 %v3471
    %3749 = vmatpush1.msra.mxu0 %v3470
    %3750 = vmatprep.subr.mxu0 %v3475
    %3751 = vmatpush1.msra.mxu0 %v3474
    %3752 = vmatprep.subr.mxu0 %v3479
    %3753 = vmatpush1.msra.mxu0 %v3478
    %3754 = vmatprep.subr.mxu0 %v3483
    %3755 = vmatpush1.msra.mxu0 %v3482
    %3756 = vmatprep.subr.mxu0 %v3487
    %3757 = vmatpush1.msra.mxu0 %v3486
    %3758 = vmatprep.subr.mxu0 %v3491
    %3759 = vmatpush1.msra.mxu0 %v3490
    %3760 = vmatprep.subr.mxu0 %v3495
    %3761 = vmatpush1.msra.mxu0 %v3494
    %3762 = vmatprep.subr.mxu0 %v3499
    %3763 = vmatpush1.msra.mxu0 %v3498
    %3764 = vmatprep.subr.mxu0 %v3503
    %3765 = vmatpush1.msra.mxu0 %v3502
    %3766 = vmatprep.subr.mxu0 %v3507
    %3767 = vmatpush1.msra.mxu0 %v3506
    %3768 = vmatprep.subr.mxu0 %v3511
    %3769 = vmatpush1.msra.mxu0 %v3510
    %3770 = vmatprep.subr.mxu0 %v3515
    %3771 = vmatpush1.msra.mxu0 %v3514
    %3772 = vmatprep.subr.mxu0 %v3519
    %3773 = vmatpush1.msra.mxu0 %v3518
    %3774 = vmatprep.subr.mxu0 %v3523
    %3775 = vmatpush1.msra.mxu0 %v3522
    %3776 = vmatprep.subr.mxu0 %v3527
    %3777 = vmatpush1.msra.mxu0 %v3526
    %3778 = vmatprep.subr.mxu0 %v3531
    %3779 = vmatpush1.msra.mxu0 %v3530
    %3780 = vmatprep.subr.mxu0 %v3535
    %3781 = vmatpush1.msra.mxu0 %v3534
    %3782 = vmatprep.subr.mxu0 %v3539
    %3783 = vmatpush1.msra.mxu0 %v3538
    %3784 = vmatprep.subr.mxu0 %v3543
    %3785 = vmatpush1.msra.mxu0 %v3542
    %3786 = vmatprep.subr.mxu0 %v3547
    %3787 = vmatpush1.msra.mxu0 %v3546
    %3788 = vmatprep.subr.mxu0 %v3551
    %3789 = vmatpush1.msra.mxu0 %v3550
    %3790 = vmatprep.subr.mxu0 %v3555
    %3791 = vmatpush1.msra.mxu0 %v3554
    %3792 = vmatprep.subr.mxu0 %v3559
    %3793 = vmatpush1.msra.mxu0 %v3558
    %3794 = vmatprep.subr.mxu0 %v3563
    %3795 = vmatpush1.msra.mxu0 %v3562
    %3796 = vmatprep.subr.mxu0 %v3567
    %3797 = vmatpush1.msra.mxu0 %v3566
    %3798 = vmatprep.subr.mxu0 %v3571
    %3799 = vmatpush1.msra.mxu0 %v3570
    %3800 = vmatprep.subr.mxu0 %v3575
    %3801 = vmatpush1.msra.mxu0 %v3574
    %3802 = vmatprep.subr.mxu0 %v3579
    %3803 = vmatpush1.msra.mxu0 %v3578
    %3804 = vmatprep.subr.mxu0 %v3583
    %3805 = vmatpush1.msra.mxu0 %v3582
    %3806 = vmatprep.subr.mxu0 %v3587
    %3807 = vmatpush1.msra.mxu0 %v3586
    %3808 = vmatprep.subr.mxu0 %v3591
    %3809 = vmatpush1.msra.mxu0 %v3590
    %3810 = vmatprep.subr.mxu0 %v3595
    %3811 = vmatpush1.msra.mxu0 %v3594
    %3812 = vmatprep.mubr.f32.mxu0 %v1819
    %3813 = vmatmul.mubr.f32.gmra.mrb[0].mxu0 %v1818
    %v3814 = vpop.f32.mrb[0].mxu0
    %v3815 = vadd.f32 %v3731, %v3814
    %v3816 = vpop.f32.mrb[0].mxu0
    %v3817 = vadd.f32 %v3735, %v3816
    %3818 = vdwg.mxu0
    %3819 = vmatprep.subr.mxu0 %v3599
    %3820 = vmatpush1.msra.mxu0 %v3598
    %3821 = vmatprep.subr.mxu0 %v3603
    %3822 = vmatpush1.msra.mxu0 %v3602
    %3823 = vmatprep.subr.mxu0 %v3607
    %3824 = vmatpush1.msra.mxu0 %v3606
    %3825 = vmatprep.subr.mxu0 %v3611
    %3826 = vmatpush1.msra.mxu0 %v3610
    %3827 = vmatprep.subr.mxu0 %v3615
    %3828 = vmatpush1.msra.mxu0 %v3614
    %3829 = vmatprep.subr.mxu0 %v3619
    %3830 = vmatpush1.msra.mxu0 %v3618
    %3831 = vmatprep.subr.mxu0 %v3623
    %3832 = vmatpush1.msra.mxu0 %v3622
    %3833 = vmatprep.subr.mxu0 %v3627
    %3834 = vmatpush1.msra.mxu0 %v3626
    %3835 = vmatprep.subr.mxu0 %v3631
    %3836 = vmatpush1.msra.mxu0 %v3630
    %3837 = vmatprep.subr.mxu0 %v3635
    %3838 = vmatpush1.msra.mxu0 %v3634
    %3839 = vmatprep.subr.mxu0 %v3639
    %3840 = vmatpush1.msra.mxu0 %v3638
    %3841 = vmatprep.subr.mxu0 %v3643
    %3842 = vmatpush1.msra.mxu0 %v3642
    %3843 = vmatprep.subr.mxu0 %v3647
    %3844 = vmatpush1.msra.mxu0 %v3646
    %3845 = vmatprep.subr.mxu0 %v3651
    %3846 = vmatpush1.msra.mxu0 %v3650
    %3847 = vmatprep.subr.mxu0 %v3655
    %3848 = vmatpush1.msra.mxu0 %v3654
    %3849 = vmatprep.subr.mxu0 %v3659
    %3850 = vmatpush1.msra.mxu0 %v3658
    %3851 = vmatprep.subr.mxu0 %v3663
    %3852 = vmatpush1.msra.mxu0 %v3662
    %3853 = vmatprep.subr.mxu0 %v3667
    %3854 = vmatpush1.msra.mxu0 %v3666
    %3855 = vmatprep.subr.mxu0 %v3671
    %3856 = vmatpush1.msra.mxu0 %v3670
    %3857 = vmatprep.subr.mxu0 %v3675
    %3858 = vmatpush1.msra.mxu0 %v3674
    %3859 = vmatprep.subr.mxu0 %v3679
    %3860 = vmatpush1.msra.mxu0 %v3678
    %3861 = vmatprep.subr.mxu0 %v3683
    %3862 = vmatpush1.msra.mxu0 %v3682
    %3863 = vmatprep.subr.mxu0 %v3687
    %3864 = vmatpush1.msra.mxu0 %v3686
    %3865 = vmatprep.subr.mxu0 %v3691
    %3866 = vmatpush1.msra.mxu0 %v3690
    %3867 = vmatprep.subr.mxu0 %v3695
    %3868 = vmatpush1.msra.mxu0 %v3694
    %3869 = vmatprep.subr.mxu0 %v3699
    %3870 = vmatpush1.msra.mxu0 %v3698
    %3871 = vmatprep.subr.mxu0 %v3703
    %3872 = vmatpush1.msra.mxu0 %v3702
    %3873 = vmatprep.subr.mxu0 %v3707
    %3874 = vmatpush1.msra.mxu0 %v3706
    %3875 = vmatprep.subr.mxu0 %v3711
    %3876 = vmatpush1.msra.mxu0 %v3710
    %3877 = vmatprep.subr.mxu0 %v3715
    %3878 = vmatpush1.msra.mxu0 %v3714
    %3879 = vmatprep.subr.mxu0 %v3719
    %3880 = vmatpush1.msra.mxu0 %v3718
    %3881 = vmatprep.subr.mxu0 %v3723
    %3882 = vmatpush1.msra.mxu0 %v3722
    %3883 = vmatprep.mubr.f32.mxu0 %v1821
    %3884 = vmatmul.mubr.f32.gmra.mrb[0].mxu0 %v1820
    %v3885 = vpop.f32.mrb[0].mxu0
    %v3886 = vadd.f32 %v3815, %v3885
    %v3887 = vpop.f32.mrb[0].mxu0
    %v3888 = vadd.f32 %v3817, %v3887
    %3889 = vdwg.mxu0
    %3890 = vmatprep.subr.mxu0 %v3473
    %3891 = vmatpush1.msra.mxu0 %v3472
    %3892 = vmatprep.subr.mxu0 %v3477
    %3893 = vmatpush1.msra.mxu0 %v3476
    %3894 = vmatprep.subr.mxu0 %v3481
    %3895 = vmatpush1.msra.mxu0 %v3480
    %3896 = vmatprep.subr.mxu0 %v3485
    %3897 = vmatpush1.msra.mxu0 %v3484
    %3898 = vmatprep.subr.mxu0 %v3489
    %3899 = vmatpush1.msra.mxu0 %v3488
    %3900 = vmatprep.subr.mxu0 %v3493
    %3901 = vmatpush1.msra.mxu0 %v3492
    %3902 = vmatprep.subr.mxu0 %v3497
    %3903 = vmatpush1.msra.mxu0 %v3496
    %3904 = vmatprep.subr.mxu0 %v3501
    %3905 = vmatpush1.msra.mxu0 %v3500
    %3906 = vmatprep.subr.mxu0 %v3505
    %3907 = vmatpush1.msra.mxu0 %v3504
    %3908 = vmatprep.subr.mxu0 %v3509
    %3909 = vmatpush1.msra.mxu0 %v3508
    %3910 = vmatprep.subr.mxu0 %v3513
    %3911 = vmatpush1.msra.mxu0 %v3512
    %3912 = vmatprep.subr.mxu0 %v3517
    %3913 = vmatpush1.msra.mxu0 %v3516
    %3914 = vmatprep.subr.mxu0 %v3521
    %3915 = vmatpush1.msra.mxu0 %v3520
    %3916 = vmatprep.subr.mxu0 %v3525
    %3917 = vmatpush1.msra.mxu0 %v3524
    %3918 = vmatprep.subr.mxu0 %v3529
    %3919 = vmatpush1.msra.mxu0 %v3528
    %3920 = vmatprep.subr.mxu0 %v3533
    %3921 = vmatpush1.msra.mxu0 %v3532
    %3922 = vmatprep.subr.mxu0 %v3537
    %3923 = vmatpush1.msra.mxu0 %v3536
    %3924 = vmatprep.subr.mxu0 %v3541
    %3925 = vmatpush1.msra.mxu0 %v3540
    %3926 = vmatprep.subr.mxu0 %v3545
    %3927 = vmatpush1.msra.mxu0 %v3544
    %3928 = vmatprep.subr.mxu0 %v3549
    %3929 = vmatpush1.msra.mxu0 %v3548
    %3930 = vmatprep.subr.mxu0 %v3553
    %3931 = vmatpush1.msra.mxu0 %v3552
    %3932 = vmatprep.subr.mxu0 %v3557
    %3933 = vmatpush1.msra.mxu0 %v3556
    %3934 = vmatprep.subr.mxu0 %v3561
    %3935 = vmatpush1.msra.mxu0 %v3560
    %3936 = vmatprep.subr.mxu0 %v3565
    %3937 = vmatpush1.msra.mxu0 %v3564
    %3938 = vmatprep.subr.mxu0 %v3569
    %3939 = vmatpush1.msra.mxu0 %v3568
    %3940 = vmatprep.subr.mxu0 %v3573
    %3941 = vmatpush1.msra.mxu0 %v3572
    %3942 = vmatprep.subr.mxu0 %v3577
    %3943 = vmatpush1.msra.mxu0 %v3576
    %3944 = vmatprep.subr.mxu0 %v3581
    %3945 = vmatpush1.msra.mxu0 %v3580
    %3946 = vmatprep.subr.mxu0 %v3585
    %3947 = vmatpush1.msra.mxu0 %v3584
    %3948 = vmatprep.subr.mxu0 %v3589
    %3949 = vmatpush1.msra.mxu0 %v3588
    %3950 = vmatprep.subr.mxu0 %v3593
    %3951 = vmatpush1.msra.mxu0 %v3592
    %3952 = vmatprep.subr.mxu0 %v3597
    %3953 = vmatpush1.msra.mxu0 %v3596
    %3954 = vmatprep.mubr.f32.mxu0 %v1819
    %3955 = vmatmul.mubr.f32.gmra.mrb[0].mxu0 %v1818
    %v3956 = vpop.f32.mrb[0].mxu0
    %v3957 = vadd.f32 %v3739, %v3956
    %v3958 = vpop.f32.mrb[0].mxu0
    %v3959 = vadd.f32 %v3743, %v3958
    %3960 = vdwg.mxu0
    %3961 = vmatprep.subr.mxu0 %v3601
    %3962 = vmatpush1.msra.mxu0 %v3600
    %3963 = vmatprep.subr.mxu0 %v3605
    %3964 = vmatpush1.msra.mxu0 %v3604
    %3965 = vmatprep.subr.mxu0 %v3609
    %3966 = vmatpush1.msra.mxu0 %v3608
    %3967 = vmatprep.subr.mxu0 %v3613
    %3968 = vmatpush1.msra.mxu0 %v3612
    %3969 = vmatprep.subr.mxu0 %v3617
    %3970 = vmatpush1.msra.mxu0 %v3616
    %3971 = vmatprep.subr.mxu0 %v3621
    %3972 = vmatpush1.msra.mxu0 %v3620
    %3973 = vmatprep.subr.mxu0 %v3625
    %3974 = vmatpush1.msra.mxu0 %v3624
    %3975 = vmatprep.subr.mxu0 %v3629
    %3976 = vmatpush1.msra.mxu0 %v3628
    %3977 = vmatprep.subr.mxu0 %v3633
    %3978 = vmatpush1.msra.mxu0 %v3632
    %3979 = vmatprep.subr.mxu0 %v3637
    %3980 = vmatpush1.msra.mxu0 %v3636
    %3981 = vmatprep.subr.mxu0 %v3641
    %3982 = vmatpush1.msra.mxu0 %v3640
    %3983 = vmatprep.subr.mxu0 %v3645
    %3984 = vmatpush1.msra.mxu0 %v3644
    %3985 = vmatprep.subr.mxu0 %v3649
    %3986 = vmatpush1.msra.mxu0 %v3648
    %3987 = vmatprep.subr.mxu0 %v3653
    %3988 = vmatpush1.msra.mxu0 %v3652
    %3989 = vmatprep.subr.mxu0 %v3657
    %3990 = vmatpush1.msra.mxu0 %v3656
    %3991 = vmatprep.subr.mxu0 %v3661
    %3992 = vmatpush1.msra.mxu0 %v3660
    %3993 = vmatprep.subr.mxu0 %v3665
    %3994 = vmatpush1.msra.mxu0 %v3664
    %3995 = vmatprep.subr.mxu0 %v3669
    %3996 = vmatpush1.msra.mxu0 %v3668
    %3997 = vmatprep.subr.mxu0 %v3673
    %3998 = vmatpush1.msra.mxu0 %v3672
    %3999 = vmatprep.subr.mxu0 %v3677
    %4000 = vmatpush1.msra.mxu0 %v3676
    %4001 = vmatprep.subr.mxu0 %v3681
    %4002 = vmatpush1.msra.mxu0 %v3680
    %4003 = vmatprep.subr.mxu0 %v3685
    %4004 = vmatpush1.msra.mxu0 %v3684
    %4005 = vmatprep.subr.mxu0 %v3689
    %4006 = vmatpush1.msra.mxu0 %v3688
    %4007 = vmatprep.subr.mxu0 %v3693
    %4008 = vmatpush1.msra.mxu0 %v3692
    %4009 = vmatprep.subr.mxu0 %v3697
    %4010 = vmatpush1.msra.mxu0 %v3696
    %4011 = vmatprep.subr.mxu0 %v3701
    %4012 = vmatpush1.msra.mxu0 %v3700
    %4013 = vmatprep.subr.mxu0 %v3705
    %4014 = vmatpush1.msra.mxu0 %v3704
    %4015 = vmatprep.subr.mxu0 %v3709
    %4016 = vmatpush1.msra.mxu0 %v3708
    %4017 = vmatprep.subr.mxu0 %v3713
    %4018 = vmatpush1.msra.mxu0 %v3712
    %4019 = vmatprep.subr.mxu0 %v3717
    %4020 = vmatpush1.msra.mxu0 %v3716
    %4021 = vmatprep.subr.mxu0 %v3721
    %4022 = vmatpush1.msra.mxu0 %v3720
    %4023 = vmatprep.subr.mxu0 %v3725
    %4024 = vmatpush1.msra.mxu0 %v3724
    %4025 = vmatprep.mubr.f32.mxu0 %v1821
    %4026 = vmatmul.mubr.f32.gmra.mrb[0].mxu0 %v1820
    %v4027 = vpop.f32.mrb[0].mxu0
    %v4028 = vadd.f32 %v3957, %v4027
    %v4029 = vpop.f32.mrb[0].mxu0
    %v4030 = vadd.f32 %v3959, %v4029
    %4031 = vdwg.mxu0
    %v4032 = vld [vmem:[#allocation11] sm:$0xf]
    %v4034 = vlaneseq
    %v4035 = vshrl.u32 %v4034, 7
    %v4036 = vsub.s32 0, %v4035
    %v4037 = vrot.slane %v4032, %v4036
    %v4038 = vlaneseq
    %v4039 = vshrl.u32 %v4038, 7
    %v4040 = vsub.s32 1, %v4039
    %v4041 = vrot.slane %v4032, %v4040
    %v4042 = vlaneseq
    %v4043 = vshrl.u32 %v4042, 7
    %v4044 = vsub.s32 2, %v4043
    %v4045 = vrot.slane %v4032, %v4044
    %v4046 = vlaneseq
    %v4047 = vshrl.u32 %v4046, 7
    %v4048 = vsub.s32 3, %v4047
    %v4049 = vrot.slane %v4032, %v4048
    %v4054 = vadd.f32 %v3886, %v4037
    %v4055 = vadd.f32 %v3888, %v4041
    %v4056 = vadd.f32 %v4028, %v4045
    %v4057 = vadd.f32 %v4030, %v4049
    %v4062 = vcombine.low %v4054, %v4055
    %v4063 = vcombine.low %v4056, %v4057
    %v4065 = vunpack.c.l.s4 1983009808
    %v4066 = vunpack.c.0.s8 %v4065
    %v4067 = vlaneseq
    %v4068 = vshrl.u32 %v4067, 7
    %v4069 = vsub.s32 %v4066, %v4068
    %v4070 = vrot.slane %v4062, %v4069
    %v4072 = vunpack.c.l.s4 1983009808
    %v4073 = vunpack.c.0.s8 %v4072
    %v4074 = vlaneseq
    %v4075 = vshrl.u32 %v4074, 7
    %v4076 = vsub.s32 %v4073, %v4075
    %v4077 = vrot.slane %v4063, %v4076
    %v4078 = vcombine.low %v4070, %v4077
    %4080 = vst [vmem:[#allocation13] sm:$0xff] %v4078
    %s4081 = scalar_lea.vmem [#allocation8], 2048
    %v4082 = vld [vmem:[%s4081] sm:$0xff]
    %v4083 = vld [vmem:[%s4081 + $0x8] sm:$0xff]
    %v4084 = vld [vmem:[%s4081 + $0x10] sm:$0xff]
    %v4085 = vld [vmem:[%s4081 + $0x18] sm:$0xff]
    %v4086 = vld [vmem:[%s4081 + $0x20] sm:$0xff]
    %v4087 = vld [vmem:[%s4081 + $0x28] sm:$0xff]
    %v4088 = vld [vmem:[%s4081 + $0x30] sm:$0xff]
    %v4089 = vld [vmem:[%s4081 + $0x38] sm:$0xff]
    %v4090 = vld [vmem:[%s4081 + $0x40] sm:$0xff]
    %v4091 = vld [vmem:[%s4081 + $0x48] sm:$0xff]
    %v4092 = vld [vmem:[%s4081 + $0x50] sm:$0xff]
    %v4093 = vld [vmem:[%s4081 + $0x58] sm:$0xff]
    %v4094 = vld [vmem:[%s4081 + $0x60] sm:$0xff]
    %v4095 = vld [vmem:[%s4081 + $0x68] sm:$0xff]
    %v4096 = vld [vmem:[%s4081 + $0x70] sm:$0xff]
    %v4097 = vld [vmem:[%s4081 + $0x78] sm:$0xff]
    %v4098 = vld [vmem:[%s4081 + $0x80] sm:$0xff]
    %v4099 = vld [vmem:[%s4081 + $0x88] sm:$0xff]
    %v4100 = vld [vmem:[%s4081 + $0x90] sm:$0xff]
    %v4101 = vld [vmem:[%s4081 + $0x98] sm:$0xff]
    %v4102 = vld [vmem:[%s4081 + $0xa0] sm:$0xff]
    %v4103 = vld [vmem:[%s4081 + $0xa8] sm:$0xff]
    %v4104 = vld [vmem:[%s4081 + $0xb0] sm:$0xff]
    %v4105 = vld [vmem:[%s4081 + $0xb8] sm:$0xff]
    %v4106 = vld [vmem:[%s4081 + $0xc0] sm:$0xff]
    %v4107 = vld [vmem:[%s4081 + $0xc8] sm:$0xff]
    %v4108 = vld [vmem:[%s4081 + $0xd0] sm:$0xff]
    %v4109 = vld [vmem:[%s4081 + $0xd8] sm:$0xff]
    %v4110 = vld [vmem:[%s4081 + $0xe0] sm:$0xff]
    %v4111 = vld [vmem:[%s4081 + $0xe8] sm:$0xff]
    %v4112 = vld [vmem:[%s4081 + $0xf0] sm:$0xff]
    %v4113 = vld [vmem:[%s4081 + $0xf8] sm:$0xff]
    %v4114 = vld [vmem:[%s4081 + $0x100] sm:$0xff]
    %v4115 = vld [vmem:[%s4081 + $0x108] sm:$0xff]
    %v4116 = vld [vmem:[%s4081 + $0x110] sm:$0xff]
    %v4117 = vld [vmem:[%s4081 + $0x118] sm:$0xff]
    %v4118 = vld [vmem:[%s4081 + $0x120] sm:$0xff]
    %v4119 = vld [vmem:[%s4081 + $0x128] sm:$0xff]
    %v4120 = vld [vmem:[%s4081 + $0x130] sm:$0xff]
    %v4121 = vld [vmem:[%s4081 + $0x138] sm:$0xff]
    %v4122 = vld [vmem:[%s4081 + $0x140] sm:$0xff]
    %v4123 = vld [vmem:[%s4081 + $0x148] sm:$0xff]
    %v4124 = vld [vmem:[%s4081 + $0x150] sm:$0xff]
    %v4125 = vld [vmem:[%s4081 + $0x158] sm:$0xff]
    %v4126 = vld [vmem:[%s4081 + $0x160] sm:$0xff]
    %v4127 = vld [vmem:[%s4081 + $0x168] sm:$0xff]
    %v4128 = vld [vmem:[%s4081 + $0x170] sm:$0xff]
    %v4129 = vld [vmem:[%s4081 + $0x178] sm:$0xff]
    %v4130 = vld [vmem:[%s4081 + $0x180] sm:$0xff]
    %v4131 = vld [vmem:[%s4081 + $0x188] sm:$0xff]
    %v4132 = vld [vmem:[%s4081 + $0x190] sm:$0xff]
    %v4133 = vld [vmem:[%s4081 + $0x198] sm:$0xff]
    %v4134 = vld [vmem:[%s4081 + $0x1a0] sm:$0xff]
    %v4135 = vld [vmem:[%s4081 + $0x1a8] sm:$0xff]
    %v4136 = vld [vmem:[%s4081 + $0x1b0] sm:$0xff]
    %v4137 = vld [vmem:[%s4081 + $0x1b8] sm:$0xff]
    %v4138 = vld [vmem:[%s4081 + $0x1c0] sm:$0xff]
    %v4139 = vld [vmem:[%s4081 + $0x1c8] sm:$0xff]
    %v4140 = vld [vmem:[%s4081 + $0x1d0] sm:$0xff]
    %v4141 = vld [vmem:[%s4081 + $0x1d8] sm:$0xff]
    %v4142 = vld [vmem:[%s4081 + $0x1e0] sm:$0xff]
    %v4143 = vld [vmem:[%s4081 + $0x1e8] sm:$0xff]
    %v4144 = vld [vmem:[%s4081 + $0x1f0] sm:$0xff]
    %v4145 = vld [vmem:[%s4081 + $0x1f8] sm:$0xff]
    %v4146 = vld [vmem:[%s4081 + $0x200] sm:$0xff]
    %v4147 = vld [vmem:[%s4081 + $0x208] sm:$0xff]
    %v4148 = vld [vmem:[%s4081 + $0x210] sm:$0xff]
    %v4149 = vld [vmem:[%s4081 + $0x218] sm:$0xff]
    %v4150 = vld [vmem:[%s4081 + $0x220] sm:$0xff]
    %v4151 = vld [vmem:[%s4081 + $0x228] sm:$0xff]
    %v4152 = vld [vmem:[%s4081 + $0x230] sm:$0xff]
    %v4153 = vld [vmem:[%s4081 + $0x238] sm:$0xff]
    %v4154 = vld [vmem:[%s4081 + $0x240] sm:$0xff]
    %v4155 = vld [vmem:[%s4081 + $0x248] sm:$0xff]
    %v4156 = vld [vmem:[%s4081 + $0x250] sm:$0xff]
    %v4157 = vld [vmem:[%s4081 + $0x258] sm:$0xff]
    %v4158 = vld [vmem:[%s4081 + $0x260] sm:$0xff]
    %v4159 = vld [vmem:[%s4081 + $0x268] sm:$0xff]
    %v4160 = vld [vmem:[%s4081 + $0x270] sm:$0xff]
    %v4161 = vld [vmem:[%s4081 + $0x278] sm:$0xff]
    %v4162 = vld [vmem:[%s4081 + $0x280] sm:$0xff]
    %v4163 = vld [vmem:[%s4081 + $0x288] sm:$0xff]
    %v4164 = vld [vmem:[%s4081 + $0x290] sm:$0xff]
    %v4165 = vld [vmem:[%s4081 + $0x298] sm:$0xff]
    %v4166 = vld [vmem:[%s4081 + $0x2a0] sm:$0xff]
    %v4167 = vld [vmem:[%s4081 + $0x2a8] sm:$0xff]
    %v4168 = vld [vmem:[%s4081 + $0x2b0] sm:$0xff]
    %v4169 = vld [vmem:[%s4081 + $0x2b8] sm:$0xff]
    %v4170 = vld [vmem:[%s4081 + $0x2c0] sm:$0xff]
    %v4171 = vld [vmem:[%s4081 + $0x2c8] sm:$0xff]
    %v4172 = vld [vmem:[%s4081 + $0x2d0] sm:$0xff]
    %v4173 = vld [vmem:[%s4081 + $0x2d8] sm:$0xff]
    %v4174 = vld [vmem:[%s4081 + $0x2e0] sm:$0xff]
    %v4175 = vld [vmem:[%s4081 + $0x2e8] sm:$0xff]
    %v4176 = vld [vmem:[%s4081 + $0x2f0] sm:$0xff]
    %v4177 = vld [vmem:[%s4081 + $0x2f8] sm:$0xff]
    %v4178 = vld [vmem:[%s4081 + $0x300] sm:$0xff]
    %v4179 = vld [vmem:[%s4081 + $0x308] sm:$0xff]
    %v4180 = vld [vmem:[%s4081 + $0x310] sm:$0xff]
    %v4181 = vld [vmem:[%s4081 + $0x318] sm:$0xff]
    %v4182 = vld [vmem:[%s4081 + $0x320] sm:$0xff]
    %v4183 = vld [vmem:[%s4081 + $0x328] sm:$0xff]
    %v4184 = vld [vmem:[%s4081 + $0x330] sm:$0xff]
    %v4185 = vld [vmem:[%s4081 + $0x338] sm:$0xff]
    %v4186 = vld [vmem:[%s4081 + $0x340] sm:$0xff]
    %v4187 = vld [vmem:[%s4081 + $0x348] sm:$0xff]
    %v4188 = vld [vmem:[%s4081 + $0x350] sm:$0xff]
    %v4189 = vld [vmem:[%s4081 + $0x358] sm:$0xff]
    %v4190 = vld [vmem:[%s4081 + $0x360] sm:$0xff]
    %v4191 = vld [vmem:[%s4081 + $0x368] sm:$0xff]
    %v4192 = vld [vmem:[%s4081 + $0x370] sm:$0xff]
    %v4193 = vld [vmem:[%s4081 + $0x378] sm:$0xff]
    %v4194 = vld [vmem:[%s4081 + $0x380] sm:$0xff]
    %v4195 = vld [vmem:[%s4081 + $0x388] sm:$0xff]
    %v4196 = vld [vmem:[%s4081 + $0x390] sm:$0xff]
    %v4197 = vld [vmem:[%s4081 + $0x398] sm:$0xff]
    %v4198 = vld [vmem:[%s4081 + $0x3a0] sm:$0xff]
    %v4199 = vld [vmem:[%s4081 + $0x3a8] sm:$0xff]
    %v4200 = vld [vmem:[%s4081 + $0x3b0] sm:$0xff]
    %v4201 = vld [vmem:[%s4081 + $0x3b8] sm:$0xff]
    %v4202 = vld [vmem:[%s4081 + $0x3c0] sm:$0xff]
    %v4203 = vld [vmem:[%s4081 + $0x3c8] sm:$0xff]
    %v4204 = vld [vmem:[%s4081 + $0x3d0] sm:$0xff]
    %v4205 = vld [vmem:[%s4081 + $0x3d8] sm:$0xff]
    %v4206 = vld [vmem:[%s4081 + $0x3e0] sm:$0xff]
    %v4207 = vld [vmem:[%s4081 + $0x3e8] sm:$0xff]
    %v4208 = vld [vmem:[%s4081 + $0x3f0] sm:$0xff]
    %v4209 = vld [vmem:[%s4081 + $0x3f8] sm:$0xff]
    %v4210 = vld [vmem:[%s4081 + $0x400] sm:$0xff]
    %v4211 = vld [vmem:[%s4081 + $0x408] sm:$0xff]
    %v4212 = vld [vmem:[%s4081 + $0x410] sm:$0xff]
    %v4213 = vld [vmem:[%s4081 + $0x418] sm:$0xff]
    %v4214 = vld [vmem:[%s4081 + $0x420] sm:$0xff]
    %v4215 = vld [vmem:[%s4081 + $0x428] sm:$0xff]
    %v4216 = vld [vmem:[%s4081 + $0x430] sm:$0xff]
    %v4217 = vld [vmem:[%s4081 + $0x438] sm:$0xff]
    %v4218 = vld [vmem:[%s4081 + $0x440] sm:$0xff]
    %v4219 = vld [vmem:[%s4081 + $0x448] sm:$0xff]
    %v4220 = vld [vmem:[%s4081 + $0x450] sm:$0xff]
    %v4221 = vld [vmem:[%s4081 + $0x458] sm:$0xff]
    %v4222 = vld [vmem:[%s4081 + $0x460] sm:$0xff]
    %v4223 = vld [vmem:[%s4081 + $0x468] sm:$0xff]
    %v4224 = vld [vmem:[%s4081 + $0x470] sm:$0xff]
    %v4225 = vld [vmem:[%s4081 + $0x478] sm:$0xff]
    %v4226 = vld [vmem:[%s4081 + $0x480] sm:$0xff]
    %v4227 = vld [vmem:[%s4081 + $0x488] sm:$0xff]
    %v4228 = vld [vmem:[%s4081 + $0x490] sm:$0xff]
    %v4229 = vld [vmem:[%s4081 + $0x498] sm:$0xff]
    %v4230 = vld [vmem:[%s4081 + $0x4a0] sm:$0xff]
    %v4231 = vld [vmem:[%s4081 + $0x4a8] sm:$0xff]
    %v4232 = vld [vmem:[%s4081 + $0x4b0] sm:$0xff]
    %v4233 = vld [vmem:[%s4081 + $0x4b8] sm:$0xff]
    %v4234 = vld [vmem:[%s4081 + $0x4c0] sm:$0xff]
    %v4235 = vld [vmem:[%s4081 + $0x4c8] sm:$0xff]
    %v4236 = vld [vmem:[%s4081 + $0x4d0] sm:$0xff]
    %v4237 = vld [vmem:[%s4081 + $0x4d8] sm:$0xff]
    %v4238 = vld [vmem:[%s4081 + $0x4e0] sm:$0xff]
    %v4239 = vld [vmem:[%s4081 + $0x4e8] sm:$0xff]
    %v4240 = vld [vmem:[%s4081 + $0x4f0] sm:$0xff]
    %v4241 = vld [vmem:[%s4081 + $0x4f8] sm:$0xff]
    %v4242 = vld [vmem:[%s4081 + $0x500] sm:$0xff]
    %v4243 = vld [vmem:[%s4081 + $0x508] sm:$0xff]
    %v4244 = vld [vmem:[%s4081 + $0x510] sm:$0xff]
    %v4245 = vld [vmem:[%s4081 + $0x518] sm:$0xff]
    %v4246 = vld [vmem:[%s4081 + $0x520] sm:$0xff]
    %v4247 = vld [vmem:[%s4081 + $0x528] sm:$0xff]
    %v4248 = vld [vmem:[%s4081 + $0x530] sm:$0xff]
    %v4249 = vld [vmem:[%s4081 + $0x538] sm:$0xff]
    %v4250 = vld [vmem:[%s4081 + $0x540] sm:$0xff]
    %v4251 = vld [vmem:[%s4081 + $0x548] sm:$0xff]
    %v4252 = vld [vmem:[%s4081 + $0x550] sm:$0xff]
    %v4253 = vld [vmem:[%s4081 + $0x558] sm:$0xff]
    %v4254 = vld [vmem:[%s4081 + $0x560] sm:$0xff]
    %v4255 = vld [vmem:[%s4081 + $0x568] sm:$0xff]
    %v4256 = vld [vmem:[%s4081 + $0x570] sm:$0xff]
    %v4257 = vld [vmem:[%s4081 + $0x578] sm:$0xff]
    %v4258 = vld [vmem:[%s4081 + $0x580] sm:$0xff]
    %v4259 = vld [vmem:[%s4081 + $0x588] sm:$0xff]
    %v4260 = vld [vmem:[%s4081 + $0x590] sm:$0xff]
    %v4261 = vld [vmem:[%s4081 + $0x598] sm:$0xff]
    %v4262 = vld [vmem:[%s4081 + $0x5a0] sm:$0xff]
    %v4263 = vld [vmem:[%s4081 + $0x5a8] sm:$0xff]
    %v4264 = vld [vmem:[%s4081 + $0x5b0] sm:$0xff]
    %v4265 = vld [vmem:[%s4081 + $0x5b8] sm:$0xff]
    %v4266 = vld [vmem:[%s4081 + $0x5c0] sm:$0xff]
    %v4267 = vld [vmem:[%s4081 + $0x5c8] sm:$0xff]
    %v4268 = vld [vmem:[%s4081 + $0x5d0] sm:$0xff]
    %v4269 = vld [vmem:[%s4081 + $0x5d8] sm:$0xff]
    %v4270 = vld [vmem:[%s4081 + $0x5e0] sm:$0xff]
    %v4271 = vld [vmem:[%s4081 + $0x5e8] sm:$0xff]
    %v4272 = vld [vmem:[%s4081 + $0x5f0] sm:$0xff]
    %v4273 = vld [vmem:[%s4081 + $0x5f8] sm:$0xff]
    %v4274 = vld [vmem:[%s4081 + $0x600] sm:$0xff]
    %v4275 = vld [vmem:[%s4081 + $0x608] sm:$0xff]
    %v4276 = vld [vmem:[%s4081 + $0x610] sm:$0xff]
    %v4277 = vld [vmem:[%s4081 + $0x618] sm:$0xff]
    %v4278 = vld [vmem:[%s4081 + $0x620] sm:$0xff]
    %v4279 = vld [vmem:[%s4081 + $0x628] sm:$0xff]
    %v4280 = vld [vmem:[%s4081 + $0x630] sm:$0xff]
    %v4281 = vld [vmem:[%s4081 + $0x638] sm:$0xff]
    %v4282 = vld [vmem:[%s4081 + $0x640] sm:$0xff]
    %v4283 = vld [vmem:[%s4081 + $0x648] sm:$0xff]
    %v4284 = vld [vmem:[%s4081 + $0x650] sm:$0xff]
    %v4285 = vld [vmem:[%s4081 + $0x658] sm:$0xff]
    %v4286 = vld [vmem:[%s4081 + $0x660] sm:$0xff]
    %v4287 = vld [vmem:[%s4081 + $0x668] sm:$0xff]
    %v4288 = vld [vmem:[%s4081 + $0x670] sm:$0xff]
    %v4289 = vld [vmem:[%s4081 + $0x678] sm:$0xff]
    %v4290 = vld [vmem:[%s4081 + $0x680] sm:$0xff]
    %v4291 = vld [vmem:[%s4081 + $0x688] sm:$0xff]
    %v4292 = vld [vmem:[%s4081 + $0x690] sm:$0xff]
    %v4293 = vld [vmem:[%s4081 + $0x698] sm:$0xff]
    %v4294 = vld [vmem:[%s4081 + $0x6a0] sm:$0xff]
    %v4295 = vld [vmem:[%s4081 + $0x6a8] sm:$0xff]
    %v4296 = vld [vmem:[%s4081 + $0x6b0] sm:$0xff]
    %v4297 = vld [vmem:[%s4081 + $0x6b8] sm:$0xff]
    %v4298 = vld [vmem:[%s4081 + $0x6c0] sm:$0xff]
    %v4299 = vld [vmem:[%s4081 + $0x6c8] sm:$0xff]
    %v4300 = vld [vmem:[%s4081 + $0x6d0] sm:$0xff]
    %v4301 = vld [vmem:[%s4081 + $0x6d8] sm:$0xff]
    %v4302 = vld [vmem:[%s4081 + $0x6e0] sm:$0xff]
    %v4303 = vld [vmem:[%s4081 + $0x6e8] sm:$0xff]
    %v4304 = vld [vmem:[%s4081 + $0x6f0] sm:$0xff]
    %v4305 = vld [vmem:[%s4081 + $0x6f8] sm:$0xff]
    %v4306 = vld [vmem:[%s4081 + $0x700] sm:$0xff]
    %v4307 = vld [vmem:[%s4081 + $0x708] sm:$0xff]
    %v4308 = vld [vmem:[%s4081 + $0x710] sm:$0xff]
    %v4309 = vld [vmem:[%s4081 + $0x718] sm:$0xff]
    %v4310 = vld [vmem:[%s4081 + $0x720] sm:$0xff]
    %v4311 = vld [vmem:[%s4081 + $0x728] sm:$0xff]
    %v4312 = vld [vmem:[%s4081 + $0x730] sm:$0xff]
    %v4313 = vld [vmem:[%s4081 + $0x738] sm:$0xff]
    %v4314 = vld [vmem:[%s4081 + $0x740] sm:$0xff]
    %v4315 = vld [vmem:[%s4081 + $0x748] sm:$0xff]
    %v4316 = vld [vmem:[%s4081 + $0x750] sm:$0xff]
    %v4317 = vld [vmem:[%s4081 + $0x758] sm:$0xff]
    %v4318 = vld [vmem:[%s4081 + $0x760] sm:$0xff]
    %v4319 = vld [vmem:[%s4081 + $0x768] sm:$0xff]
    %v4320 = vld [vmem:[%s4081 + $0x770] sm:$0xff]
    %v4321 = vld [vmem:[%s4081 + $0x778] sm:$0xff]
    %v4322 = vld [vmem:[%s4081 + $0x780] sm:$0xff]
    %v4323 = vld [vmem:[%s4081 + $0x788] sm:$0xff]
    %v4324 = vld [vmem:[%s4081 + $0x790] sm:$0xff]
    %v4325 = vld [vmem:[%s4081 + $0x798] sm:$0xff]
    %v4326 = vld [vmem:[%s4081 + $0x7a0] sm:$0xff]
    %v4327 = vld [vmem:[%s4081 + $0x7a8] sm:$0xff]
    %v4328 = vld [vmem:[%s4081 + $0x7b0] sm:$0xff]
    %v4329 = vld [vmem:[%s4081 + $0x7b8] sm:$0xff]
    %v4330 = vld [vmem:[%s4081 + $0x7c0] sm:$0xff]
    %v4331 = vld [vmem:[%s4081 + $0x7c8] sm:$0xff]
    %v4332 = vld [vmem:[%s4081 + $0x7d0] sm:$0xff]
    %v4333 = vld [vmem:[%s4081 + $0x7d8] sm:$0xff]
    %v4334 = vld [vmem:[%s4081 + $0x7e0] sm:$0xff]
    %v4335 = vld [vmem:[%s4081 + $0x7e8] sm:$0xff]
    %v4336 = vld [vmem:[%s4081 + $0x7f0] sm:$0xff]
    %v4337 = vld [vmem:[%s4081 + $0x7f8] sm:$0xff]
    %s4338 = scalar_lea.vmem [#allocation10], 4
    %v4339 = vld [vmem:[%s4338] sm:$0xf]
    %v4341 = vlaneseq
    %v4342 = vshrl.u32 %v4341, 7
    %v4343 = vsub.s32 0, %v4342
    %v4344 = vrot.slane %v4339, %v4343
    %v4345 = vlaneseq
    %v4346 = vshrl.u32 %v4345, 7
    %v4347 = vsub.s32 1, %v4346
    %v4348 = vrot.slane %v4339, %v4347
    %v4349 = vlaneseq
    %v4350 = vshrl.u32 %v4349, 7
    %v4351 = vsub.s32 2, %v4350
    %v4352 = vrot.slane %v4339, %v4351
    %v4353 = vlaneseq
    %v4354 = vshrl.u32 %v4353, 7
    %v4355 = vsub.s32 3, %v4354
    %v4356 = vrot.slane %v4339, %v4355
    %4361 = vmatprep.subr.mxu0 %v4083
    %4362 = vmatpush1.msra.mxu0 %v4082
    %4363 = vmatprep.subr.mxu0 %v4087
    %4364 = vmatpush1.msra.mxu0 %v4086
    %4365 = vmatprep.subr.mxu0 %v4091
    %4366 = vmatpush1.msra.mxu0 %v4090
    %4367 = vmatprep.subr.mxu0 %v4095
    %4368 = vmatpush1.msra.mxu0 %v4094
    %4369 = vmatprep.subr.mxu0 %v4099
    %4370 = vmatpush1.msra.mxu0 %v4098
    %4371 = vmatprep.subr.mxu0 %v4103
    %4372 = vmatpush1.msra.mxu0 %v4102
    %4373 = vmatprep.subr.mxu0 %v4107
    %4374 = vmatpush1.msra.mxu0 %v4106
    %4375 = vmatprep.subr.mxu0 %v4111
    %4376 = vmatpush1.msra.mxu0 %v4110
    %4377 = vmatprep.subr.mxu0 %v4115
    %4378 = vmatpush1.msra.mxu0 %v4114
    %4379 = vmatprep.subr.mxu0 %v4119
    %4380 = vmatpush1.msra.mxu0 %v4118
    %4381 = vmatprep.subr.mxu0 %v4123
    %4382 = vmatpush1.msra.mxu0 %v4122
    %4383 = vmatprep.subr.mxu0 %v4127
    %4384 = vmatpush1.msra.mxu0 %v4126
    %4385 = vmatprep.subr.mxu0 %v4131
    %4386 = vmatpush1.msra.mxu0 %v4130
    %4387 = vmatprep.subr.mxu0 %v4135
    %4388 = vmatpush1.msra.mxu0 %v4134
    %4389 = vmatprep.subr.mxu0 %v4139
    %4390 = vmatpush1.msra.mxu0 %v4138
    %4391 = vmatprep.subr.mxu0 %v4143
    %4392 = vmatpush1.msra.mxu0 %v4142
    %4393 = vmatprep.subr.mxu0 %v4147
    %4394 = vmatpush1.msra.mxu0 %v4146
    %4395 = vmatprep.subr.mxu0 %v4151
    %4396 = vmatpush1.msra.mxu0 %v4150
    %4397 = vmatprep.subr.mxu0 %v4155
    %4398 = vmatpush1.msra.mxu0 %v4154
    %4399 = vmatprep.subr.mxu0 %v4159
    %4400 = vmatpush1.msra.mxu0 %v4158
    %4401 = vmatprep.subr.mxu0 %v4163
    %4402 = vmatpush1.msra.mxu0 %v4162
    %4403 = vmatprep.subr.mxu0 %v4167
    %4404 = vmatpush1.msra.mxu0 %v4166
    %4405 = vmatprep.subr.mxu0 %v4171
    %4406 = vmatpush1.msra.mxu0 %v4170
    %4407 = vmatprep.subr.mxu0 %v4175
    %4408 = vmatpush1.msra.mxu0 %v4174
    %4409 = vmatprep.subr.mxu0 %v4179
    %4410 = vmatpush1.msra.mxu0 %v4178
    %4411 = vmatprep.subr.mxu0 %v4183
    %4412 = vmatpush1.msra.mxu0 %v4182
    %4413 = vmatprep.subr.mxu0 %v4187
    %4414 = vmatpush1.msra.mxu0 %v4186
    %4415 = vmatprep.subr.mxu0 %v4191
    %4416 = vmatpush1.msra.mxu0 %v4190
    %4417 = vmatprep.subr.mxu0 %v4195
    %4418 = vmatpush1.msra.mxu0 %v4194
    %4419 = vmatprep.subr.mxu0 %v4199
    %4420 = vmatpush1.msra.mxu0 %v4198
    %4421 = vmatprep.subr.mxu0 %v4203
    %4422 = vmatpush1.msra.mxu0 %v4202
    %4423 = vmatprep.subr.mxu0 %v4207
    %4424 = vmatpush1.msra.mxu0 %v4206
    %4425 = vmatprep.mubr.f32.mxu0 %v3467
    %4426 = vmatmul.mubr.f32.gmra.mrb[0].mxu0 %v3466
    %v4427 = vpop.f32.mrb[0].mxu0
    %v4428 = vadd.f32 %v4344, %v4427
    %v4429 = vpop.f32.mrb[0].mxu0
    %v4430 = vadd.f32 %v4348, %v4429
    %4431 = vdwg.mxu0
    %4432 = vmatprep.subr.mxu0 %v4211
    %4433 = vmatpush1.msra.mxu0 %v4210
    %4434 = vmatprep.subr.mxu0 %v4215
    %4435 = vmatpush1.msra.mxu0 %v4214
    %4436 = vmatprep.subr.mxu0 %v4219
    %4437 = vmatpush1.msra.mxu0 %v4218
    %4438 = vmatprep.subr.mxu0 %v4223
    %4439 = vmatpush1.msra.mxu0 %v4222
    %4440 = vmatprep.subr.mxu0 %v4227
    %4441 = vmatpush1.msra.mxu0 %v4226
    %4442 = vmatprep.subr.mxu0 %v4231
    %4443 = vmatpush1.msra.mxu0 %v4230
    %4444 = vmatprep.subr.mxu0 %v4235
    %4445 = vmatpush1.msra.mxu0 %v4234
    %4446 = vmatprep.subr.mxu0 %v4239
    %4447 = vmatpush1.msra.mxu0 %v4238
    %4448 = vmatprep.subr.mxu0 %v4243
    %4449 = vmatpush1.msra.mxu0 %v4242
    %4450 = vmatprep.subr.mxu0 %v4247
    %4451 = vmatpush1.msra.mxu0 %v4246
    %4452 = vmatprep.subr.mxu0 %v4251
    %4453 = vmatpush1.msra.mxu0 %v4250
    %4454 = vmatprep.subr.mxu0 %v4255
    %4455 = vmatpush1.msra.mxu0 %v4254
    %4456 = vmatprep.subr.mxu0 %v4259
    %4457 = vmatpush1.msra.mxu0 %v4258
    %4458 = vmatprep.subr.mxu0 %v4263
    %4459 = vmatpush1.msra.mxu0 %v4262
    %4460 = vmatprep.subr.mxu0 %v4267
    %4461 = vmatpush1.msra.mxu0 %v4266
    %4462 = vmatprep.subr.mxu0 %v4271
    %4463 = vmatpush1.msra.mxu0 %v4270
    %4464 = vmatprep.subr.mxu0 %v4275
    %4465 = vmatpush1.msra.mxu0 %v4274
    %4466 = vmatprep.subr.mxu0 %v4279
    %4467 = vmatpush1.msra.mxu0 %v4278
    %4468 = vmatprep.subr.mxu0 %v4283
    %4469 = vmatpush1.msra.mxu0 %v4282
    %4470 = vmatprep.subr.mxu0 %v4287
    %4471 = vmatpush1.msra.mxu0 %v4286
    %4472 = vmatprep.subr.mxu0 %v4291
    %4473 = vmatpush1.msra.mxu0 %v4290
    %4474 = vmatprep.subr.mxu0 %v4295
    %4475 = vmatpush1.msra.mxu0 %v4294
    %4476 = vmatprep.subr.mxu0 %v4299
    %4477 = vmatpush1.msra.mxu0 %v4298
    %4478 = vmatprep.subr.mxu0 %v4303
    %4479 = vmatpush1.msra.mxu0 %v4302
    %4480 = vmatprep.subr.mxu0 %v4307
    %4481 = vmatpush1.msra.mxu0 %v4306
    %4482 = vmatprep.subr.mxu0 %v4311
    %4483 = vmatpush1.msra.mxu0 %v4310
    %4484 = vmatprep.subr.mxu0 %v4315
    %4485 = vmatpush1.msra.mxu0 %v4314
    %4486 = vmatprep.subr.mxu0 %v4319
    %4487 = vmatpush1.msra.mxu0 %v4318
    %4488 = vmatprep.subr.mxu0 %v4323
    %4489 = vmatpush1.msra.mxu0 %v4322
    %4490 = vmatprep.subr.mxu0 %v4327
    %4491 = vmatpush1.msra.mxu0 %v4326
    %4492 = vmatprep.subr.mxu0 %v4331
    %4493 = vmatpush1.msra.mxu0 %v4330
    %4494 = vmatprep.subr.mxu0 %v4335
    %4495 = vmatpush1.msra.mxu0 %v4334
    %4496 = vmatprep.mubr.f32.mxu0 %v3469
    %4497 = vmatmul.mubr.f32.gmra.mrb[0].mxu0 %v3468
    %v4498 = vpop.f32.mrb[0].mxu0
    %v4499 = vadd.f32 %v4428, %v4498
    %v4500 = vpop.f32.mrb[0].mxu0
    %v4501 = vadd.f32 %v4430, %v4500
    %4502 = vdwg.mxu0
    %4503 = vmatprep.subr.mxu0 %v4085
    %4504 = vmatpush1.msra.mxu0 %v4084
    %4505 = vmatprep.subr.mxu0 %v4089
    %4506 = vmatpush1.msra.mxu0 %v4088
    %4507 = vmatprep.subr.mxu0 %v4093
    %4508 = vmatpush1.msra.mxu0 %v4092
    %4509 = vmatprep.subr.mxu0 %v4097
    %4510 = vmatpush1.msra.mxu0 %v4096
    %4511 = vmatprep.subr.mxu0 %v4101
    %4512 = vmatpush1.msra.mxu0 %v4100
    %4513 = vmatprep.subr.mxu0 %v4105
    %4514 = vmatpush1.msra.mxu0 %v4104
    %4515 = vmatprep.subr.mxu0 %v4109
    %4516 = vmatpush1.msra.mxu0 %v4108
    %4517 = vmatprep.subr.mxu0 %v4113
    %4518 = vmatpush1.msra.mxu0 %v4112
    %4519 = vmatprep.subr.mxu0 %v4117
    %4520 = vmatpush1.msra.mxu0 %v4116
    %4521 = vmatprep.subr.mxu0 %v4121
    %4522 = vmatpush1.msra.mxu0 %v4120
    %4523 = vmatprep.subr.mxu0 %v4125
    %4524 = vmatpush1.msra.mxu0 %v4124
    %4525 = vmatprep.subr.mxu0 %v4129
    %4526 = vmatpush1.msra.mxu0 %v4128
    %4527 = vmatprep.subr.mxu0 %v4133
    %4528 = vmatpush1.msra.mxu0 %v4132
    %4529 = vmatprep.subr.mxu0 %v4137
    %4530 = vmatpush1.msra.mxu0 %v4136
    %4531 = vmatprep.subr.mxu0 %v4141
    %4532 = vmatpush1.msra.mxu0 %v4140
    %4533 = vmatprep.subr.mxu0 %v4145
    %4534 = vmatpush1.msra.mxu0 %v4144
    %4535 = vmatprep.subr.mxu0 %v4149
    %4536 = vmatpush1.msra.mxu0 %v4148
    %4537 = vmatprep.subr.mxu0 %v4153
    %4538 = vmatpush1.msra.mxu0 %v4152
    %4539 = vmatprep.subr.mxu0 %v4157
    %4540 = vmatpush1.msra.mxu0 %v4156
    %4541 = vmatprep.subr.mxu0 %v4161
    %4542 = vmatpush1.msra.mxu0 %v4160
    %4543 = vmatprep.subr.mxu0 %v4165
    %4544 = vmatpush1.msra.mxu0 %v4164
    %4545 = vmatprep.subr.mxu0 %v4169
    %4546 = vmatpush1.msra.mxu0 %v4168
    %4547 = vmatprep.subr.mxu0 %v4173
    %4548 = vmatpush1.msra.mxu0 %v4172
    %4549 = vmatprep.subr.mxu0 %v4177
    %4550 = vmatpush1.msra.mxu0 %v4176
    %4551 = vmatprep.subr.mxu0 %v4181
    %4552 = vmatpush1.msra.mxu0 %v4180
    %4553 = vmatprep.subr.mxu0 %v4185
    %4554 = vmatpush1.msra.mxu0 %v4184
    %4555 = vmatprep.subr.mxu0 %v4189
    %4556 = vmatpush1.msra.mxu0 %v4188
    %4557 = vmatprep.subr.mxu0 %v4193
    %4558 = vmatpush1.msra.mxu0 %v4192
    %4559 = vmatprep.subr.mxu0 %v4197
    %4560 = vmatpush1.msra.mxu0 %v4196
    %4561 = vmatprep.subr.mxu0 %v4201
    %4562 = vmatpush1.msra.mxu0 %v4200
    %4563 = vmatprep.subr.mxu0 %v4205
    %4564 = vmatpush1.msra.mxu0 %v4204
    %4565 = vmatprep.subr.mxu0 %v4209
    %4566 = vmatpush1.msra.mxu0 %v4208
    %4567 = vmatprep.mubr.f32.mxu0 %v3467
    %4568 = vmatmul.mubr.f32.gmra.mrb[0].mxu0 %v3466
    %v4569 = vpop.f32.mrb[0].mxu0
    %v4570 = vadd.f32 %v4352, %v4569
    %v4571 = vpop.f32.mrb[0].mxu0
    %v4572 = vadd.f32 %v4356, %v4571
    %4573 = vdwg.mxu0
    %4574 = vmatprep.subr.mxu0 %v4213
    %4575 = vmatpush1.msra.mxu0 %v4212
    %4576 = vmatprep.subr.mxu0 %v4217
    %4577 = vmatpush1.msra.mxu0 %v4216
    %4578 = vmatprep.subr.mxu0 %v4221
    %4579 = vmatpush1.msra.mxu0 %v4220
    %4580 = vmatprep.subr.mxu0 %v4225
    %4581 = vmatpush1.msra.mxu0 %v4224
    %4582 = vmatprep.subr.mxu0 %v4229
    %4583 = vmatpush1.msra.mxu0 %v4228
    %4584 = vmatprep.subr.mxu0 %v4233
    %4585 = vmatpush1.msra.mxu0 %v4232
    %4586 = vmatprep.subr.mxu0 %v4237
    %4587 = vmatpush1.msra.mxu0 %v4236
    %4588 = vmatprep.subr.mxu0 %v4241
    %4589 = vmatpush1.msra.mxu0 %v4240
    %4590 = vmatprep.subr.mxu0 %v4245
    %4591 = vmatpush1.msra.mxu0 %v4244
    %4592 = vmatprep.subr.mxu0 %v4249
    %4593 = vmatpush1.msra.mxu0 %v4248
    %4594 = vmatprep.subr.mxu0 %v4253
    %4595 = vmatpush1.msra.mxu0 %v4252
    %4596 = vmatprep.subr.mxu0 %v4257
    %4597 = vmatpush1.msra.mxu0 %v4256
    %4598 = vmatprep.subr.mxu0 %v4261
    %4599 = vmatpush1.msra.mxu0 %v4260
    %4600 = vmatprep.subr.mxu0 %v4265
    %4601 = vmatpush1.msra.mxu0 %v4264
    %4602 = vmatprep.subr.mxu0 %v4269
    %4603 = vmatpush1.msra.mxu0 %v4268
    %4604 = vmatprep.subr.mxu0 %v4273
    %4605 = vmatpush1.msra.mxu0 %v4272
    %4606 = vmatprep.subr.mxu0 %v4277
    %4607 = vmatpush1.msra.mxu0 %v4276
    %4608 = vmatprep.subr.mxu0 %v4281
    %4609 = vmatpush1.msra.mxu0 %v4280
    %4610 = vmatprep.subr.mxu0 %v4285
    %4611 = vmatpush1.msra.mxu0 %v4284
    %4612 = vmatprep.subr.mxu0 %v4289
    %4613 = vmatpush1.msra.mxu0 %v4288
    %4614 = vmatprep.subr.mxu0 %v4293
    %4615 = vmatpush1.msra.mxu0 %v4292
    %4616 = vmatprep.subr.mxu0 %v4297
    %4617 = vmatpush1.msra.mxu0 %v4296
    %4618 = vmatprep.subr.mxu0 %v4301
    %4619 = vmatpush1.msra.mxu0 %v4300
    %4620 = vmatprep.subr.mxu0 %v4305
    %4621 = vmatpush1.msra.mxu0 %v4304
    %4622 = vmatprep.subr.mxu0 %v4309
    %4623 = vmatpush1.msra.mxu0 %v4308
    %4624 = vmatprep.subr.mxu0 %v4313
    %4625 = vmatpush1.msra.mxu0 %v4312
    %4626 = vmatprep.subr.mxu0 %v4317
    %4627 = vmatpush1.msra.mxu0 %v4316
    %4628 = vmatprep.subr.mxu0 %v4321
    %4629 = vmatpush1.msra.mxu0 %v4320
    %4630 = vmatprep.subr.mxu0 %v4325
    %4631 = vmatpush1.msra.mxu0 %v4324
    %4632 = vmatprep.subr.mxu0 %v4329
    %4633 = vmatpush1.msra.mxu0 %v4328
    %4634 = vmatprep.subr.mxu0 %v4333
    %4635 = vmatpush1.msra.mxu0 %v4332
    %4636 = vmatprep.subr.mxu0 %v4337
    %4637 = vmatpush1.msra.mxu0 %v4336
    %4638 = vmatprep.mubr.f32.mxu0 %v3469
    %4639 = vmatmul.mubr.f32.gmra.mrb[0].mxu0 %v3468
    %v4640 = vpop.f32.mrb[0].mxu0
    %v4641 = vadd.f32 %v4570, %v4640
    %v4642 = vpop.f32.mrb[0].mxu0
    %v4643 = vadd.f32 %v4572, %v4642
    %4644 = vdwg.mxu0
    %s4645 = scalar_lea.vmem [#allocation11], 4
    %v4646 = vld [vmem:[%s4645] sm:$0xf]
    %v4648 = vlaneseq
    %v4649 = vshrl.u32 %v4648, 7
    %v4650 = vsub.s32 0, %v4649
    %v4651 = vrot.slane %v4646, %v4650
    %v4652 = vlaneseq
    %v4653 = vshrl.u32 %v4652, 7
    %v4654 = vsub.s32 1, %v4653
    %v4655 = vrot.slane %v4646, %v4654
    %v4656 = vlaneseq
    %v4657 = vshrl.u32 %v4656, 7
    %v4658 = vsub.s32 2, %v4657
    %v4659 = vrot.slane %v4646, %v4658
    %v4660 = vlaneseq
    %v4661 = vshrl.u32 %v4660, 7
    %v4662 = vsub.s32 3, %v4661
    %v4663 = vrot.slane %v4646, %v4662
    %v4668 = vadd.f32 %v4499, %v4651
    %v4669 = vadd.f32 %v4501, %v4655
    %v4670 = vadd.f32 %v4641, %v4659
    %v4671 = vadd.f32 %v4643, %v4663
    %v4676 = vcombine.low %v4668, %v4669
    %v4677 = vcombine.low %v4670, %v4671
    %v4679 = vunpack.c.l.s4 1983009808
    %v4680 = vunpack.c.0.s8 %v4679
    %v4681 = vlaneseq
    %v4682 = vshrl.u32 %v4681, 7
    %v4683 = vsub.s32 %v4680, %v4682
    %v4684 = vrot.slane %v4676, %v4683
    %v4686 = vunpack.c.l.s4 1983009808
    %v4687 = vunpack.c.0.s8 %v4686
    %v4688 = vlaneseq
    %v4689 = vshrl.u32 %v4688, 7
    %v4690 = vsub.s32 %v4687, %v4689
    %v4691 = vrot.slane %v4677, %v4690
    %v4692 = vcombine.low %v4684, %v4691
    %4694 = vst [vmem:[#allocation14] sm:$0xff] %v4692
    // Predicated region
    $region50: #{tpu_custom_call.1} parent=1 // pred_check
      _
    $region51: #{tpu_custom_call.1} parent=1 // pred_check_branch
      %4696 = sbr.rel (0) target = $region53
    $region52: #{tpu_custom_call.1} parent=1 // pred_region
      %s4698 = ssub.s32 128, 128
      %4699 = vsyncadd [#allocation4], %s4698
      %s4701 = sshll.u32 [#allocation13], 4
      %s4702 = int_to_ptr.vmem [resolvable:$true] %s4701
      %4704 = dma.vmem_to_hbm [thread:$0]  %s4702, 128, %s6, [#allocation4]
    $region53: #{tpu_custom_call.1} parent=1 // pred_fallthru
      _
    // Predicated region
    $region54: #{tpu_custom_call.1} parent=1 // pred_check
      _
    $region55: #{tpu_custom_call.1} parent=1 // pred_check_branch
      %4706 = sbr.rel (0) target = $region57
    $region56: #{tpu_custom_call.1} parent=1 // pred_region
      %s4708 = ssub.s32 128, 128
      %4709 = vsyncadd [#allocation15], %s4708
      %s4711 = sshll.u32 [#allocation14], 4
      %s4712 = int_to_ptr.vmem [resolvable:$true] %s4711
      %4714 = dma.vmem_to_hbm [thread:$0]  %s4712, 128, %s7, [#allocation15]
    $region57: #{tpu_custom_call.1} parent=1 // pred_fallthru
      _
    // Predicated region
    $region58: #{tpu_custom_call.1} parent=1 // pred_check
      _
    $region59: #{tpu_custom_call.1} parent=1 // pred_check_branch
      %4716 = sbr.rel (0) target = $region61
    $region60: #{tpu_custom_call.1} parent=1 // pred_region
      %4717 = dma.done [#allocation4], 128
    $region61: #{tpu_custom_call.1} parent=1 // pred_fallthru
      _
    // Predicated region
    $region62: #{tpu_custom_call.1} parent=1 // pred_check
      _
    $region63: #{tpu_custom_call.1} parent=1 // pred_check_branch
      %4719 = sbr.rel (0) target = $region65
    $region64: #{tpu_custom_call.1} parent=1 // pred_region
      %4720 = dma.done [#allocation15], 128
    $region65: #{tpu_custom_call.1} parent=1 // pred_fallthru
      _
    %4721 = vsyncpa [#allocation3], 1
    %4722 = vsyncpa [#allocation6], 1
    %4723 = vsyncpa [#allocation9], 1
    %4724 = vsyncpa [#allocation12], 1
    %4725 = vsyncpa [#allocation4], 1
    %4726 = vsyncpa [#allocation15], 1

</llo_original>
